<compile_context>
chip_gen: v5e
topology: v5e:2x2
jax: 0.10.0
libtpu: 0.0.40
codegen_flags: <defaults>
</compile_context>

<pallas_src>
import functools

import jax
import jax.numpy as jnp
import numpy as np
from jax import lax
from jax.experimental import pallas as pl
from jax.experimental.pallas import tpu as pltpu

LEAKY_SLOPE = 0.01
BN_EPS = 1e-5


def _vmem_limit_bytes():
    """~75% of physical VMEM (v7x: 48 MiB, v5e/v6e: 96 MiB); safe fallback."""
    try:
        cap = pltpu.get_tpu_info().vmem_capacity_bytes
    except Exception:
        cap = 64 * 1024 * 1024
    return int(min(cap * 3 // 4, 112 * 1024 * 1024))


_VMEM_LIMIT = _vmem_limit_bytes()


# ----------------------------- Pallas kernels ------------------------------ #

def _zero_border(pad_ref, H, W, C):
    """Zero only the 1-pixel border of the (H+2, W+2, C) pad scratch."""
    zrow = jnp.zeros((1, W + 2, C), pad_ref.dtype)
    zcol = jnp.zeros((H + 2, 1, C), pad_ref.dtype)
    pad_ref[0:1, :, :] = zrow
    pad_ref[H + 1:H + 2, :, :] = zrow
    pad_ref[:, 0:1, :] = zcol
    pad_ref[:, W + 1:W + 2, :] = zcol


def conv1_kernel(x_ref, w_ref, b_ref, y_ref, s_ref, q_ref, xpad_ref,
                 *, H, W, C, slope):
    """3x3/s1 conv + bias + LeakyReLU, plus per-image BN partial stats."""
    _zero_border(xpad_ref, H, W, C)
    xpad_ref[1:H + 1, 1:W + 1, :] = x_ref[0]
    # per-tap accumulation: 9 bf16 MXU dots into an f32 accumulator
    acc = None
    for dy in range(3):
        for dx in range(3):
            t = dy * 3 + dx
            tap = xpad_ref[dy:dy + H, dx:dx + W, :]
            tap = tap.reshape(H * W, C).astype(jnp.bfloat16)
            d = jnp.dot(tap, w_ref[t], preferred_element_type=jnp.float32)
            acc = d if acc is None else acc + d
    acc = acc + b_ref[...]
    acc = jnp.where(acc >= 0, acc, slope * acc)            # LeakyReLU (f32)
    y_ref[0] = acc.reshape(H, W, -1).astype(y_ref.dtype)   # bf16 to HBM
    # BatchNorm1 sees the post-activation tensor -> stats of f32 `acc`
    s_ref[0] = acc.sum(axis=0, keepdims=True)
    q_ref[0] = (acc * acc).sum(axis=0, keepdims=True)


def conv2_kernel(y_ref, a_ref, b_ref, w_ref, bias_ref, o_ref, s_ref, q_ref,
                 ypad_ref, *, H, W, C, Ho, Wo):
    """BN1 affine (in VMEM) + 3x3/s2 conv + bias, plus BN2 partial stats."""
    _zero_border(ypad_ref, H, W, C)
    # Apply BN1 affine in f32 to the tile *before* padding so the border
    # stays zero (matches PyTorch padding the BN output with zeros).
    y = y_ref[0].astype(jnp.float32)
    ypad_ref[1:H + 1, 1:W + 1, :] = y * a_ref[...] + b_ref[...]
    # stride-2 per-tap accumulation via strided loads from the padded scratch
    acc = None
    for dy in range(3):
        for dx in range(3):
            t = dy * 3 + dx
            tap = ypad_ref[pl.ds(dy, Ho, stride=2), pl.ds(dx, Wo, stride=2), :]
            tap = tap.reshape(Ho * Wo, C).astype(jnp.bfloat16)
            d = jnp.dot(tap, w_ref[t], preferred_element_type=jnp.float32)
            acc = d if acc is None else acc + d
    acc = acc + bias_ref[...]
    o_ref[0] = acc.reshape(Ho, Wo, -1).astype(o_ref.dtype)  # bf16 to HBM
    # BatchNorm2 sees the conv2 (pre-activation) output -> stats of f32 `acc`
    s_ref[0] = acc.sum(axis=0, keepdims=True)
    q_ref[0] = (acc * acc).sum(axis=0, keepdims=True)


def affine_lrelu_kernel(x_ref, a_ref, b_ref, o_ref, *, slope):
    """y = LeakyReLU(x * a + b)   (BN2 apply with fused activation, f32 math)."""
    x = x_ref[...].astype(jnp.float32)
    y = x * a_ref[...] + b_ref[...]
    o_ref[...] = jnp.where(y >= 0, y, slope * y).astype(o_ref.dtype)


# ------------------------------ glue wrappers ------------------------------ #

def _tap_weights(w_oihw):
    """(Cout, Cin, 3, 3) -> (9, Cin, Cout) bf16, tap-major (t = dy*3 + dx)."""
    c_out, c_in = w_oihw.shape[0], w_oihw.shape[1]
    w = jnp.transpose(w_oihw, (2, 3, 1, 0)).reshape(9, c_in, c_out)
    return w.astype(jnp.bfloat16)


def _conv1_fused(x_nhwc, w_oihw, bias):
    N, H, W, C = x_nhwc.shape
    c_out = w_oihw.shape[0]
    w = _tap_weights(w_oihw)
    kern = functools.partial(conv1_kernel, H=H, W=W, C=C, slope=LEAKY_SLOPE)
    return pl.pallas_call(
        kern,
        out_shape=(jax.ShapeDtypeStruct((N, H, W, c_out), jnp.bfloat16),
                   jax.ShapeDtypeStruct((N, 1, c_out), jnp.float32),
                   jax.ShapeDtypeStruct((N, 1, c_out), jnp.float32)),
        grid=(N,),
        in_specs=[pl.BlockSpec((1, H, W, C), lambda n: (n, 0, 0, 0)),
                  pl.BlockSpec((9, C, c_out), lambda n: (0, 0, 0)),
                  pl.BlockSpec((1, c_out), lambda n: (0, 0))],
        out_specs=(pl.BlockSpec((1, H, W, c_out), lambda n: (n, 0, 0, 0)),
                   pl.BlockSpec((1, 1, c_out), lambda n: (n, 0, 0)),
                   pl.BlockSpec((1, 1, c_out), lambda n: (n, 0, 0))),
        scratch_shapes=[pltpu.VMEM((H + 2, W + 2, C), jnp.float32)],
        compiler_params=pltpu.CompilerParams(
            dimension_semantics=("parallel",), vmem_limit_bytes=_VMEM_LIMIT),
    )(x_nhwc, w, bias.reshape(1, c_out))


def _conv2_fused(y_nhwc, a1, b1, w_oihw, bias):
    N, H, W, C = y_nhwc.shape
    c_out = w_oihw.shape[0]
    Ho, Wo = H // 2, W // 2
    w = _tap_weights(w_oihw)
    kern = functools.partial(conv2_kernel, H=H, W=W, C=C, Ho=Ho, Wo=Wo)
    return pl.pallas_call(
        kern,
        out_shape=(jax.ShapeDtypeStruct((N, Ho, Wo, c_out), jnp.bfloat16),
                   jax.ShapeDtypeStruct((N, 1, c_out), jnp.float32),
                   jax.ShapeDtypeStruct((N, 1, c_out), jnp.float32)),
        grid=(N,),
        in_specs=[pl.BlockSpec((1, H, W, C), lambda n: (n, 0, 0, 0)),
                  pl.BlockSpec((1, C), lambda n: (0, 0)),
                  pl.BlockSpec((1, C), lambda n: (0, 0)),
                  pl.BlockSpec((9, C, c_out), lambda n: (0, 0, 0)),
                  pl.BlockSpec((1, c_out), lambda n: (0, 0))],
        out_specs=(pl.BlockSpec((1, Ho, Wo, c_out), lambda n: (n, 0, 0, 0)),
                   pl.BlockSpec((1, 1, c_out), lambda n: (n, 0, 0)),
                   pl.BlockSpec((1, 1, c_out), lambda n: (n, 0, 0))),
        scratch_shapes=[pltpu.VMEM((H + 2, W + 2, C), jnp.float32)],
        compiler_params=pltpu.CompilerParams(
            dimension_semantics=("parallel",), vmem_limit_bytes=_VMEM_LIMIT),
    )(y_nhwc, a1, b1, w, bias.reshape(1, c_out))


def _bn_affine(psum, psq, count, gamma, beta):
    """Fold per-image partial sums into the BatchNorm per-channel affine."""
    s = psum.sum(axis=(0, 1))
    q = psq.sum(axis=(0, 1))
    mean = s / count
    # biased batch variance (training-mode BN); partials are f32.
    # TODO(synk): switch to a centered/Welford combine for very large N*H*W.
    var = q / count - mean * mean
    a = gamma * lax.rsqrt(var + BN_EPS)
    b = beta - mean * a
    C = a.shape[0]
    return a.reshape(1, C), b.reshape(1, C)


def _affine_lrelu(x_nhwc, a, b):
    N, H, W, C = x_nhwc.shape
    M = N * H * W
    x2d = x_nhwc.reshape(M, C)          # free reshape (leading-dim merge)
    tm = M
    for cand in (8192, 4096, 2048, 1024, 512, 256, 128, 64, 32, 16, 8):
        if M % cand == 0:
            tm = cand
            break
    out = pl.pallas_call(
        functools.partial(affine_lrelu_kernel, slope=LEAKY_SLOPE),
        out_shape=jax.ShapeDtypeStruct((M, C), x2d.dtype),
        grid=(M // tm,),
        in_specs=[pl.BlockSpec((tm, C), lambda i: (i, 0)),
                  pl.BlockSpec((1, C), lambda i: (0, 0)),
                  pl.BlockSpec((1, C), lambda i: (0, 0))],
        out_specs=pl.BlockSpec((tm, C), lambda i: (i, 0)),
        input_output_aliases={0: 0},     # update y2's HBM buffer in place
        compiler_params=pltpu.CompilerParams(
            dimension_semantics=("parallel",), vmem_limit_bytes=_VMEM_LIMIT),
    )(x2d, a, b)
    return out.reshape(N, H, W, C)


def downsample_forward(x_nchw, params):
    N, C, H, W = x_nchw.shape
    assert H % 2 == 0 and W % 2 == 0, "even spatial dims expected"
    x = jnp.transpose(x_nchw, (0, 2, 3, 1))                    # NCHW -> NHWC
    y1, s1, q1 = _conv1_fused(x, params["w1"], params["b1"])   # conv1+lrelu+stats
    a1, b1 = _bn_affine(s1, q1, float(N * H * W), params["g1"], params["be1"])
    y2, s2, q2 = _conv2_fused(y1, a1, b1, params["w2"], params["b2"])
    Ho, Wo = H // 2, W // 2
    a2, b2 = _bn_affine(s2, q2, float(N * Ho * Wo), params["g2"], params["be2"])
    y = _affine_lrelu(y2, a2, b2)                              # BN2 + LeakyReLU (bf16)
    # NHWC -> NCHW; the f32 upcast is fused by XLA into this existing pass.
    # TODO(synk): drop the transpose+upcast entirely if the surrounding model
    #             consumes NHWC/bf16 activations (saves a full HBM pass).
    return jnp.transpose(y, (0, 3, 1, 2)).astype(jnp.float32)


# --------------------------- pure-JAX reference ----------------------------- #

def ref_downsample(x, p):
    def conv(x, w, b, stride):
        y = lax.conv_general_dilated(x, w, (stride, stride), ((1, 1), (1, 1)),
                                     dimension_numbers=("NCHW", "OIHW", "NCHW"))
        return y + b[None, :, None, None]

    def bn(x, g, be):
        mean = x.mean(axis=(0, 2, 3), keepdims=True)
        var = x.var(axis=(0, 2, 3), keepdims=True)
        return ((x - mean) * lax.rsqrt(var + BN_EPS)
                * g[None, :, None, None] + be[None, :, None, None])

    def lrelu(x):
        return jnp.where(x >= 0, x, LEAKY_SLOPE * x)

    y = lrelu(conv(x, p["w1"], p["b1"], 1))
    y = bn(y, p["g1"], p["be1"])
    y = conv(y, p["w2"], p["b2"], 2)
    y = lrelu(bn(y, p["g2"], p["be2"]))
    return y


# --------------------------------- main ------------------------------------ #

if __name__ == "__main__":
    C_IN = 4
    C_OUT = 2 * C_IN
    N, H, W = 2, 16, 16

    key = jax.random.PRNGKey(0)
    ks = jax.random.split(key, 9)
    params = {
        "w1": 0.1 * jax.random.normal(ks[0], (C_IN, C_IN, 3, 3), jnp.float32),   # OIHW
        "b1": 0.1 * jax.random.normal(ks[1], (C_IN,), jnp.float32),
        "g1": 1.0 + 0.1 * jax.random.normal(ks[2], (C_IN,), jnp.float32),
        "be1": 0.1 * jax.random.normal(ks[3], (C_IN,), jnp.float32),
        "w2": 0.1 * jax.random.normal(ks[4], (C_OUT, C_IN, 3, 3), jnp.float32),  # OIHW
        "b2": 0.1 * jax.random.normal(ks[5], (C_OUT,), jnp.float32),
        "g2": 1.0 + 0.1 * jax.random.normal(ks[6], (C_OUT,), jnp.float32),
        "be2": 0.1 * jax.random.normal(ks[7], (C_OUT,), jnp.float32),
    }
    x = jax.random.normal(ks[8], (N, C_IN, H, W), jnp.float32)   # NCHW, like PyTorch

    fwd = jax.jit(downsample_forward)
    out = jax.block_until_ready(fwd(x, params))
    ref = ref_downsample(x, params)

    assert out.shape == (N, C_OUT, H // 2, W // 2), out.shape
    # bf16 intermediates/operands -> compare against the f32 reference with
    # correspondingly looser tolerances.
    np.testing.assert_allclose(np.asarray(out), np.asarray(ref), rtol=5e-2, atol=5e-2)
    print("KERNEL_OK")
</pallas_src>

<mosaic_0001>
module attributes {stable_mosaic.version = 11 : i64} {
  func.func @conv1_kernel(%arg0: i32, %arg1: memref<1x16x16x4xf32, #tpu.memory_space<vmem>>, %arg2: memref<9x4x4xbf16, #tpu.memory_space<vmem>>, %arg3: memref<1x4xf32, #tpu.memory_space<vmem>>, %arg4: memref<1x16x16x4xbf16, #tpu.memory_space<vmem>>, %arg5: memref<1x1x4xf32, #tpu.memory_space<vmem>>, %arg6: memref<1x1x4xf32, #tpu.memory_space<vmem>>, %arg7: memref<18x18x4xf32, #tpu.memory_space<vmem>>) attributes {dimension_semantics = [#tpu.dimension_semantics<parallel>], iteration_bounds = array<i64: 2>, scalar_prefetch = 0 : i64, scratch_operands = 1 : i64, tpu.core_type = #tpu.core_type<tc>, window_params = [{transform_indices = @transform_0, window_bounds = array<i64: 1, 16, 16, 4>}, {pipeline_mode = #tpu.pipeline_mode<synchronous>, transform_indices = @transform_1, window_bounds = array<i64: 9, 4, 4>}, {pipeline_mode = #tpu.pipeline_mode<synchronous>, transform_indices = @transform_2, window_bounds = array<i64: 1, 4>}, {transform_indices = @transform_3, window_bounds = array<i64: 1, 16, 16, 4>}, {transform_indices = @transform_4, window_bounds = array<i64: 1, 1, 4>}, {transform_indices = @transform_5, window_bounds = array<i64: 1, 1, 4>}]} {
    %cst = arith.constant 0.000000e+00 : f32
    %0 = vector.broadcast %cst : f32 to vector<1x18x4xf32>
    %cst_0 = arith.constant 0.000000e+00 : f32
    %1 = vector.broadcast %cst_0 : f32 to vector<18x1x4xf32>
    %c0 = arith.constant 0 : index
    %c0_1 = arith.constant 0 : index
    %c0_2 = arith.constant 0 : index
    %2 = vector.load %arg7[%c0, %c0_1, %c0_2] : memref<18x18x4xf32, #tpu.memory_space<vmem>>, vector<1x18x4xf32>
    tpu.vector_store %arg7[%c0, %c0_1, %c0_2], %0 {strides = array<i32>} : memref<18x18x4xf32, #tpu.memory_space<vmem>>, vector<1x18x4xf32>,
    %c17 = arith.constant 17 : index
    %c0_3 = arith.constant 0 : index
    %c0_4 = arith.constant 0 : index
    %3 = vector.load %arg7[%c17, %c0_3, %c0_4] : memref<18x18x4xf32, #tpu.memory_space<vmem>>, vector<1x18x4xf32>
    tpu.vector_store %arg7[%c17, %c0_3, %c0_4], %0 {strides = array<i32>} : memref<18x18x4xf32, #tpu.memory_space<vmem>>, vector<1x18x4xf32>,
    %c0_5 = arith.constant 0 : index
    %c0_6 = arith.constant 0 : index
    %c0_7 = arith.constant 0 : index
    %4 = vector.load %arg7[%c0_5, %c0_6, %c0_7] : memref<18x18x4xf32, #tpu.memory_space<vmem>>, vector<18x1x4xf32>
    tpu.vector_store %arg7[%c0_5, %c0_6, %c0_7], %1 {strides = array<i32>} : memref<18x18x4xf32, #tpu.memory_space<vmem>>, vector<18x1x4xf32>,
    %c0_8 = arith.constant 0 : index
    %c17_9 = arith.constant 17 : index
    %c0_10 = arith.constant 0 : index
    %5 = vector.load %arg7[%c0_8, %c17_9, %c0_10] : memref<18x18x4xf32, #tpu.memory_space<vmem>>, vector<18x1x4xf32>
    tpu.vector_store %arg7[%c0_8, %c17_9, %c0_10], %1 {strides = array<i32>} : memref<18x18x4xf32, #tpu.memory_space<vmem>>, vector<18x1x4xf32>,
    %c0_11 = arith.constant 0 : index
    %c0_12 = arith.constant 0 : index
    %c0_13 = arith.constant 0 : index
    %c0_14 = arith.constant 0 : index
    %6 = vector.load %arg1[%c0_11, %c0_12, %c0_13, %c0_14] : memref<1x16x16x4xf32, #tpu.memory_space<vmem>>, vector<1x16x16x4xf32>
    %7 = vector.shape_cast %6 : vector<1x16x16x4xf32> to vector<16x16x4xf32>
    %c1 = arith.constant 1 : index
    %c1_15 = arith.constant 1 : index
    %c0_16 = arith.constant 0 : index
    %8 = vector.load %arg7[%c1, %c1_15, %c0_16] : memref<18x18x4xf32, #tpu.memory_space<vmem>>, vector<16x16x4xf32>
    tpu.vector_store %arg7[%c1, %c1_15, %c0_16], %7 {strides = array<i32>} : memref<18x18x4xf32, #tpu.memory_space<vmem>>, vector<16x16x4xf32>,
    %c0_17 = arith.constant 0 : index
    %c0_18 = arith.constant 0 : index
    %c0_19 = arith.constant 0 : index
    %9 = vector.load %arg7[%c0_17, %c0_18, %c0_19] : memref<18x18x4xf32, #tpu.memory_space<vmem>>, vector<16x16x4xf32>
    %10 = vector.shape_cast %9 : vector<16x16x4xf32> to vector<256x4xf32>
    %11 = arith.truncf %10 : vector<256x4xf32> to vector<256x4xbf16>
    %c0_20 = arith.constant 0 : index
    %c0_21 = arith.constant 0 : index
    %c0_22 = arith.constant 0 : index
    %12 = vector.load %arg2[%c0_20, %c0_21, %c0_22] : memref<9x4x4xbf16, #tpu.memory_space<vmem>>, vector<1x4x4xbf16>
    %13 = vector.shape_cast %12 : vector<1x4x4xbf16> to vector<4x4xbf16>
    %cst_23 = arith.constant dense<0.000000e+00> : vector<256x4xf32>
    %14 = tpu.matmul %11, %13, %cst_23 {dimension_numbers = #tpu.dot_dimension_numbers<[1], [0], [0], [1], [0, 0, 1, 1], [], []>} : vector<256x4xbf16>, vector<4x4xbf16>, vector<256x4xf32> -> vector<256x4xf32>
    %c0_24 = arith.constant 0 : index
    %c1_25 = arith.constant 1 : index
    %c0_26 = arith.constant 0 : index
    %15 = vector.load %arg7[%c0_24, %c1_25, %c0_26] : memref<18x18x4xf32, #tpu.memory_space<vmem>>, vector<16x16x4xf32>
    %16 = vector.shape_cast %15 : vector<16x16x4xf32> to vector<256x4xf32>
    %17 = arith.truncf %16 : vector<256x4xf32> to vector<256x4xbf16>
    %c1_27 = arith.constant 1 : index
    %c0_28 = arith.constant 0 : index
    %c0_29 = arith.constant 0 : index
    %18 = vector.load %arg2[%c1_27, %c0_28, %c0_29] : memref<9x4x4xbf16, #tpu.memory_space<vmem>>, vector<1x4x4xbf16>
    %19 = vector.shape_cast %18 : vector<1x4x4xbf16> to vector<4x4xbf16>
    %cst_30 = arith.constant dense<0.000000e+00> : vector<256x4xf32>
    %20 = tpu.matmul %17, %19, %cst_30 {dimension_numbers = #tpu.dot_dimension_numbers<[1], [0], [0], [1], [0, 0, 1, 1], [], []>} : vector<256x4xbf16>, vector<4x4xbf16>, vector<256x4xf32> -> vector<256x4xf32>
    %21 = arith.addf %14, %20 : vector<256x4xf32>
    %c0_31 = arith.constant 0 : index
    %c2 = arith.constant 2 : index
    %c0_32 = arith.constant 0 : index
    %22 = vector.load %arg7[%c0_31, %c2, %c0_32] : memref<18x18x4xf32, #tpu.memory_space<vmem>>, vector<16x16x4xf32>
    %23 = vector.shape_cast %22 : vector<16x16x4xf32> to vector<256x4xf32>
    %24 = arith.truncf %23 : vector<256x4xf32> to vector<256x4xbf16>
    %c2_33 = arith.constant 2 : index
    %c0_34 = arith.constant 0 : index
    %c0_35 = arith.constant 0 : index
    %25 = vector.load %arg2[%c2_33, %c0_34, %c0_35] : memref<9x4x4xbf16, #tpu.memory_space<vmem>>, vector<1x4x4xbf16>
    %26 = vector.shape_cast %25 : vector<1x4x4xbf16> to vector<4x4xbf16>
    %cst_36 = arith.constant dense<0.000000e+00> : vector<256x4xf32>
    %27 = tpu.matmul %24, %26, %cst_36 {dimension_numbers = #tpu.dot_dimension_numbers<[1], [0], [0], [1], [0, 0, 1, 1], [], []>} : vector<256x4xbf16>, vector<4x4xbf16>, vector<256x4xf32> -> vector<256x4xf32>
    %28 = arith.addf %21, %27 : vector<256x4xf32>
    %c1_37 = arith.constant 1 : index
    %c0_38 = arith.constant 0 : index
    %c0_39 = arith.constant 0 : index
    %29 = vector.load %arg7[%c1_37, %c0_38, %c0_39] : memref<18x18x4xf32, #tpu.memory_space<vmem>>, vector<16x16x4xf32>
    %30 = vector.shape_cast %29 : vector<16x16x4xf32> to vector<256x4xf32>
    %31 = arith.truncf %30 : vector<256x4xf32> to vector<256x4xbf16>
    %c3 = arith.constant 3 : index
    %c0_40 = arith.constant 0 : index
    %c0_41 = arith.constant 0 : index
    %32 = vector.load %arg2[%c3, %c0_40, %c0_41] : memref<9x4x4xbf16, #tpu.memory_space<vmem>>, vector<1x4x4xbf16>
    %33 = vector.shape_cast %32 : vector<1x4x4xbf16> to vector<4x4xbf16>
    %cst_42 = arith.constant dense<0.000000e+00> : vector<256x4xf32>
    %34 = tpu.matmul %31, %33, %cst_42 {dimension_numbers = #tpu.dot_dimension_numbers<[1], [0], [0], [1], [0, 0, 1, 1], [], []>} : vector<256x4xbf16>, vector<4x4xbf16>, vector<256x4xf32> -> vector<256x4xf32>
    %35 = arith.addf %28, %34 : vector<256x4xf32>
    %c1_43 = arith.constant 1 : index
    %c1_44 = arith.constant 1 : index
    %c0_45 = arith.constant 0 : index
    %36 = vector.load %arg7[%c1_43, %c1_44, %c0_45] : memref<18x18x4xf32, #tpu.memory_space<vmem>>, vector<16x16x4xf32>
    %37 = vector.shape_cast %36 : vector<16x16x4xf32> to vector<256x4xf32>
    %38 = arith.truncf %37 : vector<256x4xf32> to vector<256x4xbf16>
    %c4 = arith.constant 4 : index
    %c0_46 = arith.constant 0 : index
    %c0_47 = arith.constant 0 : index
    %39 = vector.load %arg2[%c4, %c0_46, %c0_47] : memref<9x4x4xbf16, #tpu.memory_space<vmem>>, vector<1x4x4xbf16>
    %40 = vector.shape_cast %39 : vector<1x4x4xbf16> to vector<4x4xbf16>
    %cst_48 = arith.constant dense<0.000000e+00> : vector<256x4xf32>
    %41 = tpu.matmul %38, %40, %cst_48 {dimension_numbers = #tpu.dot_dimension_numbers<[1], [0], [0], [1], [0, 0, 1, 1], [], []>} : vector<256x4xbf16>, vector<4x4xbf16>, vector<256x4xf32> -> vector<256x4xf32>
    %42 = arith.addf %35, %41 : vector<256x4xf32>
    %c1_49 = arith.constant 1 : index
    %c2_50 = arith.constant 2 : index
    %c0_51 = arith.constant 0 : index
    %43 = vector.load %arg7[%c1_49, %c2_50, %c0_51] : memref<18x18x4xf32, #tpu.memory_space<vmem>>, vector<16x16x4xf32>
    %44 = vector.shape_cast %43 : vector<16x16x4xf32> to vector<256x4xf32>
    %45 = arith.truncf %44 : vector<256x4xf32> to vector<256x4xbf16>
    %c5 = arith.constant 5 : index
    %c0_52 = arith.constant 0 : index
    %c0_53 = arith.constant 0 : index
    %46 = vector.load %arg2[%c5, %c0_52, %c0_53] : memref<9x4x4xbf16, #tpu.memory_space<vmem>>, vector<1x4x4xbf16>
    %47 = vector.shape_cast %46 : vector<1x4x4xbf16> to vector<4x4xbf16>
    %cst_54 = arith.constant dense<0.000000e+00> : vector<256x4xf32>
    %48 = tpu.matmul %45, %47, %cst_54 {dimension_numbers = #tpu.dot_dimension_numbers<[1], [0], [0], [1], [0, 0, 1, 1], [], []>} : vector<256x4xbf16>, vector<4x4xbf16>, vector<256x4xf32> -> vector<256x4xf32>
    %49 = arith.addf %42, %48 : vector<256x4xf32>
    %c2_55 = arith.constant 2 : index
    %c0_56 = arith.constant 0 : index
    %c0_57 = arith.constant 0 : index
    %50 = vector.load %arg7[%c2_55, %c0_56, %c0_57] : memref<18x18x4xf32, #tpu.memory_space<vmem>>, vector<16x16x4xf32>
    %51 = vector.shape_cast %50 : vector<16x16x4xf32> to vector<256x4xf32>
    %52 = arith.truncf %51 : vector<256x4xf32> to vector<256x4xbf16>
    %c6 = arith.constant 6 : index
    %c0_58 = arith.constant 0 : index
    %c0_59 = arith.constant 0 : index
    %53 = vector.load %arg2[%c6, %c0_58, %c0_59] : memref<9x4x4xbf16, #tpu.memory_space<vmem>>, vector<1x4x4xbf16>
    %54 = vector.shape_cast %53 : vector<1x4x4xbf16> to vector<4x4xbf16>
    %cst_60 = arith.constant dense<0.000000e+00> : vector<256x4xf32>
    %55 = tpu.matmul %52, %54, %cst_60 {dimension_numbers = #tpu.dot_dimension_numbers<[1], [0], [0], [1], [0, 0, 1, 1], [], []>} : vector<256x4xbf16>, vector<4x4xbf16>, vector<256x4xf32> -> vector<256x4xf32>
    %56 = arith.addf %49, %55 : vector<256x4xf32>
    %c2_61 = arith.constant 2 : index
    %c1_62 = arith.constant 1 : index
    %c0_63 = arith.constant 0 : index
    %57 = vector.load %arg7[%c2_61, %c1_62, %c0_63] : memref<18x18x4xf32, #tpu.memory_space<vmem>>, vector<16x16x4xf32>
    %58 = vector.shape_cast %57 : vector<16x16x4xf32> to vector<256x4xf32>
    %59 = arith.truncf %58 : vector<256x4xf32> to vector<256x4xbf16>
    %c7 = arith.constant 7 : index
    %c0_64 = arith.constant 0 : index
    %c0_65 = arith.constant 0 : index
    %60 = vector.load %arg2[%c7, %c0_64, %c0_65] : memref<9x4x4xbf16, #tpu.memory_space<vmem>>, vector<1x4x4xbf16>
    %61 = vector.shape_cast %60 : vector<1x4x4xbf16> to vector<4x4xbf16>
    %cst_66 = arith.constant dense<0.000000e+00> : vector<256x4xf32>
    %62 = tpu.matmul %59, %61, %cst_66 {dimension_numbers = #tpu.dot_dimension_numbers<[1], [0], [0], [1], [0, 0, 1, 1], [], []>} : vector<256x4xbf16>, vector<4x4xbf16>, vector<256x4xf32> -> vector<256x4xf32>
    %63 = arith.addf %56, %62 : vector<256x4xf32>
    %c2_67 = arith.constant 2 : index
    %c2_68 = arith.constant 2 : index
    %c0_69 = arith.constant 0 : index
    %64 = vector.load %arg7[%c2_67, %c2_68, %c0_69] : memref<18x18x4xf32, #tpu.memory_space<vmem>>, vector<16x16x4xf32>
    %65 = vector.shape_cast %64 : vector<16x16x4xf32> to vector<256x4xf32>
    %66 = arith.truncf %65 : vector<256x4xf32> to vector<256x4xbf16>
    %c8 = arith.constant 8 : index
    %c0_70 = arith.constant 0 : index
    %c0_71 = arith.constant 0 : index
    %67 = vector.load %arg2[%c8, %c0_70, %c0_71] : memref<9x4x4xbf16, #tpu.memory_space<vmem>>, vector<1x4x4xbf16>
    %68 = vector.shape_cast %67 : vector<1x4x4xbf16> to vector<4x4xbf16>
    %cst_72 = arith.constant dense<0.000000e+00> : vector<256x4xf32>
    %69 = tpu.matmul %66, %68, %cst_72 {dimension_numbers = #tpu.dot_dimension_numbers<[1], [0], [0], [1], [0, 0, 1, 1], [], []>} : vector<256x4xbf16>, vector<4x4xbf16>, vector<256x4xf32> -> vector<256x4xf32>
    %70 = arith.addf %63, %69 : vector<256x4xf32>
    %c0_73 = arith.constant 0 : index
    %c0_74 = arith.constant 0 : index
    %71 = vector.load %arg3[%c0_73, %c0_74] : memref<1x4xf32, #tpu.memory_space<vmem>>, vector<1x4xf32>
    %72 = vector.broadcast %71 : vector<1x4xf32> to vector<256x4xf32>
    %73 = arith.addf %70, %72 : vector<256x4xf32>
    %cst_75 = arith.constant 0.000000e+00 : f32
    %74 = vector.broadcast %cst_75 : f32 to vector<256x4xf32>
    %75 = arith.cmpf oge, %73, %74 : vector<256x4xf32>
    %cst_76 = arith.constant 0.00999999977 : f32
    %76 = vector.broadcast %cst_76 : f32 to vector<256x4xf32>
    %77 = arith.mulf %76, %73 : vector<256x4xf32>
    %78 = arith.select %75, %73, %77 : vector<256x4xi1>, vector<256x4xf32>
    %79 = vector.shape_cast %78 : vector<256x4xf32> to vector<16x16x4xf32>
    %80 = arith.truncf %79 : vector<16x16x4xf32> to vector<16x16x4xbf16>
    %c0_77 = arith.constant 0 : index
    %c0_78 = arith.constant 0 : index
    %c0_79 = arith.constant 0 : index
    %c0_80 = arith.constant 0 : index
    %81 = vector.load %arg4[%c0_77, %c0_78, %c0_79, %c0_80] : memref<1x16x16x4xbf16, #tpu.memory_space<vmem>>, vector<1x16x16x4xbf16>
    %82 = vector.shape_cast %81 : vector<1x16x16x4xbf16> to vector<16x16x4xbf16>
    %83 = vector.shape_cast %80 : vector<16x16x4xbf16> to vector<1x16x16x4xbf16>
    tpu.vector_store %arg4[%c0_77, %c0_78, %c0_79, %c0_80], %83 {strides = array<i32>} : memref<1x16x16x4xbf16, #tpu.memory_space<vmem>>, vector<1x16x16x4xbf16>,
    %cst_81 = arith.constant dense<0.000000e+00> : vector<4xf32>
    %84 = vector.multi_reduction <add>, %78, %cst_81 [0] : vector<256x4xf32> to vector<4xf32>
    %85 = vector.shape_cast %84 : vector<4xf32> to vector<1x4xf32>
    %c0_82 = arith.constant 0 : index
    %c0_83 = arith.constant 0 : index
    %c0_84 = arith.constant 0 : index
    %86 = vector.load %arg5[%c0_82, %c0_83, %c0_84] : memref<1x1x4xf32, #tpu.memory_space<vmem>>, vector<1x1x4xf32>
    %87 = vector.shape_cast %86 : vector<1x1x4xf32> to vector<1x4xf32>
    %88 = vector.shape_cast %85 : vector<1x4xf32> to vector<1x1x4xf32>
    tpu.vector_store %arg5[%c0_82, %c0_83, %c0_84], %88 {strides = array<i32>} : memref<1x1x4xf32, #tpu.memory_space<vmem>>, vector<1x1x4xf32>,
    %89 = arith.mulf %78, %78 : vector<256x4xf32>
    %cst_85 = arith.constant dense<0.000000e+00> : vector<4xf32>
    %90 = vector.multi_reduction <add>, %89, %cst_85 [0] : vector<256x4xf32> to vector<4xf32>
    %91 = vector.shape_cast %90 : vector<4xf32> to vector<1x4xf32>
    %c0_86 = arith.constant 0 : index
    %c0_87 = arith.constant 0 : index
    %c0_88 = arith.constant 0 : index
    %92 = vector.load %arg6[%c0_86, %c0_87, %c0_88] : memref<1x1x4xf32, #tpu.memory_space<vmem>>, vector<1x1x4xf32>
    %93 = vector.shape_cast %92 : vector<1x1x4xf32> to vector<1x4xf32>
    %94 = vector.shape_cast %91 : vector<1x4xf32> to vector<1x1x4xf32>
    tpu.vector_store %arg6[%c0_86, %c0_87, %c0_88], %94 {strides = array<i32>} : memref<1x1x4xf32, #tpu.memory_space<vmem>>, vector<1x1x4xf32>,
    return
  }
  func.func @transform_0(%arg0: i32) -> (i32, i32, i32, i32) {
    %c0_i32 = arith.constant 0 : i32
    %c0_i32_0 = arith.constant 0 : i32
    %c0_i32_1 = arith.constant 0 : i32
    %c0_i32_2 = arith.constant 0 : i32
    return %arg0, %c0_i32, %c0_i32_0, %c0_i32_1 : i32, i32, i32, i32
  }
  func.func @transform_1(%arg0: i32) -> (i32, i32, i32) {
    %c0_i32 = arith.constant 0 : i32
    %c0_i32_0 = arith.constant 0 : i32
    %c0_i32_1 = arith.constant 0 : i32
    %c0_i32_2 = arith.constant 0 : i32
    return %c0_i32, %c0_i32_0, %c0_i32_1 : i32, i32, i32
  }
  func.func @transform_2(%arg0: i32) -> (i32, i32) {
    %c0_i32 = arith.constant 0 : i32
    %c0_i32_0 = arith.constant 0 : i32
    %c0_i32_1 = arith.constant 0 : i32
    return %c0_i32, %c0_i32_0 : i32, i32
  }
  func.func @transform_3(%arg0: i32) -> (i32, i32, i32, i32) {
    %c0_i32 = arith.constant 0 : i32
    %c0_i32_0 = arith.constant 0 : i32
    %c0_i32_1 = arith.constant 0 : i32
    %c0_i32_2 = arith.constant 0 : i32
    return %arg0, %c0_i32, %c0_i32_0, %c0_i32_1 : i32, i32, i32, i32
  }
  func.func @transform_4(%arg0: i32) -> (i32, i32, i32) {
    %c0_i32 = arith.constant 0 : i32
    %c0_i32_0 = arith.constant 0 : i32
    %c0_i32_1 = arith.constant 0 : i32
    return %arg0, %c0_i32, %c0_i32_0 : i32, i32, i32
  }
  func.func @transform_5(%arg0: i32) -> (i32, i32, i32) {
    %c0_i32 = arith.constant 0 : i32
    %c0_i32_0 = arith.constant 0 : i32
    %c0_i32_1 = arith.constant 0 : i32
    return %arg0, %c0_i32, %c0_i32_0 : i32, i32, i32
  }
}

module attributes {stable_mosaic.version = 11 : i64} {
  func.func @affine_lrelu_kernel(%arg0: i32, %arg1: memref<128x8xbf16, #tpu.memory_space<vmem>>, %arg2: memref<1x8xf32, #tpu.memory_space<vmem>>, %arg3: memref<1x8xf32, #tpu.memory_space<vmem>>, %arg4: memref<128x8xbf16, #tpu.memory_space<vmem>>) attributes {dimension_semantics = [#tpu.dimension_semantics<parallel>], iteration_bounds = array<i64: 1>, scalar_prefetch = 0 : i64, scratch_operands = 0 : i64, tpu.core_type = #tpu.core_type<tc>, window_params = [{transform_indices = @transform_0, window_bounds = array<i64: 128, 8>}, {pipeline_mode = #tpu.pipeline_mode<synchronous>, transform_indices = @transform_1, window_bounds = array<i64: 1, 8>}, {pipeline_mode = #tpu.pipeline_mode<synchronous>, transform_indices = @transform_2, window_bounds = array<i64: 1, 8>}, {transform_indices = @transform_3, window_bounds = array<i64: 128, 8>}]} {
    %c0 = arith.constant 0 : index
    %c0_0 = arith.constant 0 : index
    %0 = vector.load %arg1[%c0, %c0_0] : memref<128x8xbf16, #tpu.memory_space<vmem>>, vector<128x8xbf16>
    %1 = arith.extf %0 : vector<128x8xbf16> to vector<128x8xf32>
    %c0_1 = arith.constant 0 : index
    %c0_2 = arith.constant 0 : index
    %2 = vector.load %arg2[%c0_1, %c0_2] : memref<1x8xf32, #tpu.memory_space<vmem>>, vector<1x8xf32>
    %3 = vector.broadcast %2 : vector<1x8xf32> to vector<128x8xf32>
    %4 = arith.mulf %1, %3 : vector<128x8xf32>
    %c0_3 = arith.constant 0 : index
    %c0_4 = arith.constant 0 : index
    %5 = vector.load %arg3[%c0_3, %c0_4] : memref<1x8xf32, #tpu.memory_space<vmem>>, vector<1x8xf32>
    %6 = vector.broadcast %5 : vector<1x8xf32> to vector<128x8xf32>
    %7 = arith.addf %4, %6 : vector<128x8xf32>
    %cst = arith.constant 0.000000e+00 : f32
    %8 = vector.broadcast %cst : f32 to vector<128x8xf32>
    %9 = arith.cmpf oge, %7, %8 : vector<128x8xf32>
    %cst_5 = arith.constant 0.00999999977 : f32
    %10 = vector.broadcast %cst_5 : f32 to vector<128x8xf32>
    %11 = arith.mulf %10, %7 : vector<128x8xf32>
    %12 = arith.select %9, %7, %11 : vector<128x8xi1>, vector<128x8xf32>
    %13 = arith.truncf %12 : vector<128x8xf32> to vector<128x8xbf16>
    %c0_6 = arith.constant 0 : index
    %c0_7 = arith.constant 0 : index
    %14 = vector.load %arg4[%c0_6, %c0_7] : memref<128x8xbf16, #tpu.memory_space<vmem>>, vector<128x8xbf16>
    tpu.vector_store %arg4[%c0_6, %c0_7], %13 {strides = array<i32>} : memref<128x8xbf16, #tpu.memory_space<vmem>>, vector<128x8xbf16>,
    return
  }
  func.func @transform_0(%arg0: i32) -> (i32, i32) {
    %c0_i32 = arith.constant 0 : i32
    %c0_i32_0 = arith.constant 0 : i32
    return %arg0, %c0_i32 : i32, i32
  }
  func.func @transform_1(%arg0: i32) -> (i32, i32) {
    %c0_i32 = arith.constant 0 : i32
    %c0_i32_0 = arith.constant 0 : i32
    %c0_i32_1 = arith.constant 0 : i32
    return %c0_i32, %c0_i32_0 : i32, i32
  }
  func.func @transform_2(%arg0: i32) -> (i32, i32) {
    %c0_i32 = arith.constant 0 : i32
    %c0_i32_0 = arith.constant 0 : i32
    %c0_i32_1 = arith.constant 0 : i32
    return %c0_i32, %c0_i32_0 : i32, i32
  }
  func.func @transform_3(%arg0: i32) -> (i32, i32) {
    %c0_i32 = arith.constant 0 : i32
    %c0_i32_0 = arith.constant 0 : i32
    return %arg0, %c0_i32 : i32, i32
  }
}

module attributes {stable_mosaic.version = 11 : i64} {
  func.func @conv2_kernel(%arg0: i32, %arg1: memref<1x16x16x4xbf16, #tpu.memory_space<vmem>>, %arg2: memref<1x4xf32, #tpu.memory_space<vmem>>, %arg3: memref<1x4xf32, #tpu.memory_space<vmem>>, %arg4: memref<9x4x8xbf16, #tpu.memory_space<vmem>>, %arg5: memref<1x8xf32, #tpu.memory_space<vmem>>, %arg6: memref<1x8x8x8xbf16, #tpu.memory_space<vmem>>, %arg7: memref<1x1x8xf32, #tpu.memory_space<vmem>>, %arg8: memref<1x1x8xf32, #tpu.memory_space<vmem>>, %arg9: memref<18x18x4xf32, #tpu.memory_space<vmem>>) attributes {dimension_semantics = [#tpu.dimension_semantics<parallel>], iteration_bounds = array<i64: 2>, scalar_prefetch = 0 : i64, scratch_operands = 1 : i64, tpu.core_type = #tpu.core_type<tc>, window_params = [{transform_indices = @transform_0, window_bounds = array<i64: 1, 16, 16, 4>}, {pipeline_mode = #tpu.pipeline_mode<synchronous>, transform_indices = @transform_1, window_bounds = array<i64: 1, 4>}, {pipeline_mode = #tpu.pipeline_mode<synchronous>, transform_indices = @transform_2, window_bounds = array<i64: 1, 4>}, {pipeline_mode = #tpu.pipeline_mode<synchronous>, transform_indices = @transform_3, window_bounds = array<i64: 9, 4, 8>}, {pipeline_mode = #tpu.pipeline_mode<synchronous>, transform_indices = @transform_4, window_bounds = array<i64: 1, 8>}, {transform_indices = @transform_5, window_bounds = array<i64: 1, 8, 8, 8>}, {transform_indices = @transform_6, window_bounds = array<i64: 1, 1, 8>}, {transform_indices = @transform_7, window_bounds = array<i64: 1, 1, 8>}]} {
    %cst = arith.constant 0.000000e+00 : f32
    %0 = vector.broadcast %cst : f32 to vector<1x18x4xf32>
    %cst_0 = arith.constant 0.000000e+00 : f32
    %1 = vector.broadcast %cst_0 : f32 to vector<18x1x4xf32>
    %c0 = arith.constant 0 : index
    %c0_1 = arith.constant 0 : index
    %c0_2 = arith.constant 0 : index
    %2 = vector.load %arg9[%c0, %c0_1, %c0_2] : memref<18x18x4xf32, #tpu.memory_space<vmem>>, vector<1x18x4xf32>
    tpu.vector_store %arg9[%c0, %c0_1, %c0_2], %0 {strides = array<i32>} : memref<18x18x4xf32, #tpu.memory_space<vmem>>, vector<1x18x4xf32>,
    %c17 = arith.constant 17 : index
    %c0_3 = arith.constant 0 : index
    %c0_4 = arith.constant 0 : index
    %3 = vector.load %arg9[%c17, %c0_3, %c0_4] : memref<18x18x4xf32, #tpu.memory_space<vmem>>, vector<1x18x4xf32>
    tpu.vector_store %arg9[%c17, %c0_3, %c0_4], %0 {strides = array<i32>} : memref<18x18x4xf32, #tpu.memory_space<vmem>>, vector<1x18x4xf32>,
    %c0_5 = arith.constant 0 : index
    %c0_6 = arith.constant 0 : index
    %c0_7 = arith.constant 0 : index
    %4 = vector.load %arg9[%c0_5, %c0_6, %c0_7] : memref<18x18x4xf32, #tpu.memory_space<vmem>>, vector<18x1x4xf32>
    tpu.vector_store %arg9[%c0_5, %c0_6, %c0_7], %1 {strides = array<i32>} : memref<18x18x4xf32, #tpu.memory_space<vmem>>, vector<18x1x4xf32>,
    %c0_8 = arith.constant 0 : index
    %c17_9 = arith.constant 17 : index
    %c0_10 = arith.constant 0 : index
    %5 = vector.load %arg9[%c0_8, %c17_9, %c0_10] : memref<18x18x4xf32, #tpu.memory_space<vmem>>, vector<18x1x4xf32>
    tpu.vector_store %arg9[%c0_8, %c17_9, %c0_10], %1 {strides = array<i32>} : memref<18x18x4xf32, #tpu.memory_space<vmem>>, vector<18x1x4xf32>,
    %c0_11 = arith.constant 0 : index
    %c0_12 = arith.constant 0 : index
    %c0_13 = arith.constant 0 : index
    %c0_14 = arith.constant 0 : index
    %6 = vector.load %arg1[%c0_11, %c0_12, %c0_13, %c0_14] : memref<1x16x16x4xbf16, #tpu.memory_space<vmem>>, vector<1x16x16x4xbf16>
    %7 = vector.shape_cast %6 : vector<1x16x16x4xbf16> to vector<16x16x4xbf16>
    %8 = arith.extf %7 : vector<16x16x4xbf16> to vector<16x16x4xf32>
    %c0_15 = arith.constant 0 : index
    %c0_16 = arith.constant 0 : index
    %9 = vector.load %arg2[%c0_15, %c0_16] : memref<1x4xf32, #tpu.memory_space<vmem>>, vector<1x4xf32>
    %10 = vector.shape_cast %9 : vector<1x4xf32> to vector<1x1x4xf32>
    %11 = vector.broadcast %10 : vector<1x1x4xf32> to vector<16x16x4xf32>
    %12 = arith.mulf %8, %11 : vector<16x16x4xf32>
    %c0_17 = arith.constant 0 : index
    %c0_18 = arith.constant 0 : index
    %13 = vector.load %arg3[%c0_17, %c0_18] : memref<1x4xf32, #tpu.memory_space<vmem>>, vector<1x4xf32>
    %14 = vector.shape_cast %13 : vector<1x4xf32> to vector<1x1x4xf32>
    %15 = vector.broadcast %14 : vector<1x1x4xf32> to vector<16x16x4xf32>
    %16 = arith.addf %12, %15 : vector<16x16x4xf32>
    %c1 = arith.constant 1 : index
    %c1_19 = arith.constant 1 : index
    %c0_20 = arith.constant 0 : index
    %17 = vector.load %arg9[%c1, %c1_19, %c0_20] : memref<18x18x4xf32, #tpu.memory_space<vmem>>, vector<16x16x4xf32>
    tpu.vector_store %arg9[%c1, %c1_19, %c0_20], %16 {strides = array<i32>} : memref<18x18x4xf32, #tpu.memory_space<vmem>>, vector<16x16x4xf32>,
    %c0_21 = arith.constant 0 : index
    %c0_22 = arith.constant 0 : index
    %c0_23 = arith.constant 0 : index
    %18 = tpu.strided_load %arg9[%c0_21, %c0_22, %c0_23] {strides = array<i32: 2, 2, 1>} : memref<18x18x4xf32, #tpu.memory_space<vmem>>, vector<8x8x4xf32>
    %19 = vector.shape_cast %18 : vector<8x8x4xf32> to vector<64x4xf32>
    %20 = arith.truncf %19 : vector<64x4xf32> to vector<64x4xbf16>
    %c0_24 = arith.constant 0 : index
    %c0_25 = arith.constant 0 : index
    %c0_26 = arith.constant 0 : index
    %21 = vector.load %arg4[%c0_24, %c0_25, %c0_26] : memref<9x4x8xbf16, #tpu.memory_space<vmem>>, vector<1x4x8xbf16>
    %22 = vector.shape_cast %21 : vector<1x4x8xbf16> to vector<4x8xbf16>
    %cst_27 = arith.constant dense<0.000000e+00> : vector<64x8xf32>
    %23 = tpu.matmul %20, %22, %cst_27 {dimension_numbers = #tpu.dot_dimension_numbers<[1], [0], [0], [1], [0, 0, 1, 1], [], []>} : vector<64x4xbf16>, vector<4x8xbf16>, vector<64x8xf32> -> vector<64x8xf32>
    %c0_28 = arith.constant 0 : index
    %c1_29 = arith.constant 1 : index
    %c0_30 = arith.constant 0 : index
    %24 = tpu.strided_load %arg9[%c0_28, %c1_29, %c0_30] {strides = array<i32: 2, 2, 1>} : memref<18x18x4xf32, #tpu.memory_space<vmem>>, vector<8x8x4xf32>
    %25 = vector.shape_cast %24 : vector<8x8x4xf32> to vector<64x4xf32>
    %26 = arith.truncf %25 : vector<64x4xf32> to vector<64x4xbf16>
    %c1_31 = arith.constant 1 : index
    %c0_32 = arith.constant 0 : index
    %c0_33 = arith.constant 0 : index
    %27 = vector.load %arg4[%c1_31, %c0_32, %c0_33] : memref<9x4x8xbf16, #tpu.memory_space<vmem>>, vector<1x4x8xbf16>
    %28 = vector.shape_cast %27 : vector<1x4x8xbf16> to vector<4x8xbf16>
    %cst_34 = arith.constant dense<0.000000e+00> : vector<64x8xf32>
    %29 = tpu.matmul %26, %28, %cst_34 {dimension_numbers = #tpu.dot_dimension_numbers<[1], [0], [0], [1], [0, 0, 1, 1], [], []>} : vector<64x4xbf16>, vector<4x8xbf16>, vector<64x8xf32> -> vector<64x8xf32>
    %30 = arith.addf %23, %29 : vector<64x8xf32>
    %c0_35 = arith.constant 0 : index
    %c2 = arith.constant 2 : index
    %c0_36 = arith.constant 0 : index
    %31 = tpu.strided_load %arg9[%c0_35, %c2, %c0_36] {strides = array<i32: 2, 2, 1>} : memref<18x18x4xf32, #tpu.memory_space<vmem>>, vector<8x8x4xf32>
    %32 = vector.shape_cast %31 : vector<8x8x4xf32> to vector<64x4xf32>
    %33 = arith.truncf %32 : vector<64x4xf32> to vector<64x4xbf16>
    %c2_37 = arith.constant 2 : index
    %c0_38 = arith.constant 0 : index
    %c0_39 = arith.constant 0 : index
    %34 = vector.load %arg4[%c2_37, %c0_38, %c0_39] : memref<9x4x8xbf16, #tpu.memory_space<vmem>>, vector<1x4x8xbf16>
    %35 = vector.shape_cast %34 : vector<1x4x8xbf16> to vector<4x8xbf16>
    %cst_40 = arith.constant dense<0.000000e+00> : vector<64x8xf32>
    %36 = tpu.matmul %33, %35, %cst_40 {dimension_numbers = #tpu.dot_dimension_numbers<[1], [0], [0], [1], [0, 0, 1, 1], [], []>} : vector<64x4xbf16>, vector<4x8xbf16>, vector<64x8xf32> -> vector<64x8xf32>
    %37 = arith.addf %30, %36 : vector<64x8xf32>
    %c1_41 = arith.constant 1 : index
    %c0_42 = arith.constant 0 : index
    %c0_43 = arith.constant 0 : index
    %38 = tpu.strided_load %arg9[%c1_41, %c0_42, %c0_43] {strides = array<i32: 2, 2, 1>} : memref<18x18x4xf32, #tpu.memory_space<vmem>>, vector<8x8x4xf32>
    %39 = vector.shape_cast %38 : vector<8x8x4xf32> to vector<64x4xf32>
    %40 = arith.truncf %39 : vector<64x4xf32> to vector<64x4xbf16>
    %c3 = arith.constant 3 : index
    %c0_44 = arith.constant 0 : index
    %c0_45 = arith.constant 0 : index
    %41 = vector.load %arg4[%c3, %c0_44, %c0_45] : memref<9x4x8xbf16, #tpu.memory_space<vmem>>, vector<1x4x8xbf16>
    %42 = vector.shape_cast %41 : vector<1x4x8xbf16> to vector<4x8xbf16>
    %cst_46 = arith.constant dense<0.000000e+00> : vector<64x8xf32>
    %43 = tpu.matmul %40, %42, %cst_46 {dimension_numbers = #tpu.dot_dimension_numbers<[1], [0], [0], [1], [0, 0, 1, 1], [], []>} : vector<64x4xbf16>, vector<4x8xbf16>, vector<64x8xf32> -> vector<64x8xf32>
    %44 = arith.addf %37, %43 : vector<64x8xf32>
    %c1_47 = arith.constant 1 : index
    %c1_48 = arith.constant 1 : index
    %c0_49 = arith.constant 0 : index
    %45 = tpu.strided_load %arg9[%c1_47, %c1_48, %c0_49] {strides = array<i32: 2, 2, 1>} : memref<18x18x4xf32, #tpu.memory_space<vmem>>, vector<8x8x4xf32>
    %46 = vector.shape_cast %45 : vector<8x8x4xf32> to vector<64x4xf32>
    %47 = arith.truncf %46 : vector<64x4xf32> to vector<64x4xbf16>
    %c4 = arith.constant 4 : index
    %c0_50 = arith.constant 0 : index
    %c0_51 = arith.constant 0 : index
    %48 = vector.load %arg4[%c4, %c0_50, %c0_51] : memref<9x4x8xbf16, #tpu.memory_space<vmem>>, vector<1x4x8xbf16>
    %49 = vector.shape_cast %48 : vector<1x4x8xbf16> to vector<4x8xbf16>
    %cst_52 = arith.constant dense<0.000000e+00> : vector<64x8xf32>
    %50 = tpu.matmul %47, %49, %cst_52 {dimension_numbers = #tpu.dot_dimension_numbers<[1], [0], [0], [1], [0, 0, 1, 1], [], []>} : vector<64x4xbf16>, vector<4x8xbf16>, vector<64x8xf32> -> vector<64x8xf32>
    %51 = arith.addf %44, %50 : vector<64x8xf32>
    %c1_53 = arith.constant 1 : index
    %c2_54 = arith.constant 2 : index
    %c0_55 = arith.constant 0 : index
    %52 = tpu.strided_load %arg9[%c1_53, %c2_54, %c0_55] {strides = array<i32: 2, 2, 1>} : memref<18x18x4xf32, #tpu.memory_space<vmem>>, vector<8x8x4xf32>
    %53 = vector.shape_cast %52 : vector<8x8x4xf32> to vector<64x4xf32>
    %54 = arith.truncf %53 : vector<64x4xf32> to vector<64x4xbf16>
    %c5 = arith.constant 5 : index
    %c0_56 = arith.constant 0 : index
    %c0_57 = arith.constant 0 : index
    %55 = vector.load %arg4[%c5, %c0_56, %c0_57] : memref<9x4x8xbf16, #tpu.memory_space<vmem>>, vector<1x4x8xbf16>
    %56 = vector.shape_cast %55 : vector<1x4x8xbf16> to vector<4x8xbf16>
    %cst_58 = arith.constant dense<0.000000e+00> : vector<64x8xf32>
    %57 = tpu.matmul %54, %56, %cst_58 {dimension_numbers = #tpu.dot_dimension_numbers<[1], [0], [0], [1], [0, 0, 1, 1], [], []>} : vector<64x4xbf16>, vector<4x8xbf16>, vector<64x8xf32> -> vector<64x8xf32>
    %58 = arith.addf %51, %57 : vector<64x8xf32>
    %c2_59 = arith.constant 2 : index
    %c0_60 = arith.constant 0 : index
    %c0_61 = arith.constant 0 : index
    %59 = tpu.strided_load %arg9[%c2_59, %c0_60, %c0_61] {strides = array<i32: 2, 2, 1>} : memref<18x18x4xf32, #tpu.memory_space<vmem>>, vector<8x8x4xf32>
    %60 = vector.shape_cast %59 : vector<8x8x4xf32> to vector<64x4xf32>
    %61 = arith.truncf %60 : vector<64x4xf32> to vector<64x4xbf16>
    %c6 = arith.constant 6 : index
    %c0_62 = arith.constant 0 : index
    %c0_63 = arith.constant 0 : index
    %62 = vector.load %arg4[%c6, %c0_62, %c0_63] : memref<9x4x8xbf16, #tpu.memory_space<vmem>>, vector<1x4x8xbf16>
    %63 = vector.shape_cast %62 : vector<1x4x8xbf16> to vector<4x8xbf16>
    %cst_64 = arith.constant dense<0.000000e+00> : vector<64x8xf32>
    %64 = tpu.matmul %61, %63, %cst_64 {dimension_numbers = #tpu.dot_dimension_numbers<[1], [0], [0], [1], [0, 0, 1, 1], [], []>} : vector<64x4xbf16>, vector<4x8xbf16>, vector<64x8xf32> -> vector<64x8xf32>
    %65 = arith.addf %58, %64 : vector<64x8xf32>
    %c2_65 = arith.constant 2 : index
    %c1_66 = arith.constant 1 : index
    %c0_67 = arith.constant 0 : index
    %66 = tpu.strided_load %arg9[%c2_65, %c1_66, %c0_67] {strides = array<i32: 2, 2, 1>} : memref<18x18x4xf32, #tpu.memory_space<vmem>>, vector<8x8x4xf32>
    %67 = vector.shape_cast %66 : vector<8x8x4xf32> to vector<64x4xf32>
    %68 = arith.truncf %67 : vector<64x4xf32> to vector<64x4xbf16>
    %c7 = arith.constant 7 : index
    %c0_68 = arith.constant 0 : index
    %c0_69 = arith.constant 0 : index
    %69 = vector.load %arg4[%c7, %c0_68, %c0_69] : memref<9x4x8xbf16, #tpu.memory_space<vmem>>, vector<1x4x8xbf16>
    %70 = vector.shape_cast %69 : vector<1x4x8xbf16> to vector<4x8xbf16>
    %cst_70 = arith.constant dense<0.000000e+00> : vector<64x8xf32>
    %71 = tpu.matmul %68, %70, %cst_70 {dimension_numbers = #tpu.dot_dimension_numbers<[1], [0], [0], [1], [0, 0, 1, 1], [], []>} : vector<64x4xbf16>, vector<4x8xbf16>, vector<64x8xf32> -> vector<64x8xf32>
    %72 = arith.addf %65, %71 : vector<64x8xf32>
    %c2_71 = arith.constant 2 : index
    %c2_72 = arith.constant 2 : index
    %c0_73 = arith.constant 0 : index
    %73 = tpu.strided_load %arg9[%c2_71, %c2_72, %c0_73] {strides = array<i32: 2, 2, 1>} : memref<18x18x4xf32, #tpu.memory_space<vmem>>, vector<8x8x4xf32>
    %74 = vector.shape_cast %73 : vector<8x8x4xf32> to vector<64x4xf32>
    %75 = arith.truncf %74 : vector<64x4xf32> to vector<64x4xbf16>
    %c8 = arith.constant 8 : index
    %c0_74 = arith.constant 0 : index
    %c0_75 = arith.constant 0 : index
    %76 = vector.load %arg4[%c8, %c0_74, %c0_75] : memref<9x4x8xbf16, #tpu.memory_space<vmem>>, vector<1x4x8xbf16>
    %77 = vector.shape_cast %76 : vector<1x4x8xbf16> to vector<4x8xbf16>
    %cst_76 = arith.constant dense<0.000000e+00> : vector<64x8xf32>
    %78 = tpu.matmul %75, %77, %cst_76 {dimension_numbers = #tpu.dot_dimension_numbers<[1], [0], [0], [1], [0, 0, 1, 1], [], []>} : vector<64x4xbf16>, vector<4x8xbf16>, vector<64x8xf32> -> vector<64x8xf32>
    %79 = arith.addf %72, %78 : vector<64x8xf32>
    %c0_77 = arith.constant 0 : index
    %c0_78 = arith.constant 0 : index
    %80 = vector.load %arg5[%c0_77, %c0_78] : memref<1x8xf32, #tpu.memory_space<vmem>>, vector<1x8xf32>
    %81 = vector.broadcast %80 : vector<1x8xf32> to vector<64x8xf32>
    %82 = arith.addf %79, %81 : vector<64x8xf32>
    %83 = vector.shape_cast %82 : vector<64x8xf32> to vector<8x8x8xf32>
    %84 = arith.truncf %83 : vector<8x8x8xf32> to vector<8x8x8xbf16>
    %c0_79 = arith.constant 0 : index
    %c0_80 = arith.constant 0 : index
    %c0_81 = arith.constant 0 : index
    %c0_82 = arith.constant 0 : index
    %85 = vector.load %arg6[%c0_79, %c0_80, %c0_81, %c0_82] : memref<1x8x8x8xbf16, #tpu.memory_space<vmem>>, vector<1x8x8x8xbf16>
    %86 = vector.shape_cast %85 : vector<1x8x8x8xbf16> to vector<8x8x8xbf16>
    %87 = vector.shape_cast %84 : vector<8x8x8xbf16> to vector<1x8x8x8xbf16>
    tpu.vector_store %arg6[%c0_79, %c0_80, %c0_81, %c0_82], %87 {strides = array<i32>} : memref<1x8x8x8xbf16, #tpu.memory_space<vmem>>, vector<1x8x8x8xbf16>,
    %cst_83 = arith.constant dense<0.000000e+00> : vector<8xf32>
    %88 = vector.multi_reduction <add>, %82, %cst_83 [0] : vector<64x8xf32> to vector<8xf32>
    %89 = vector.shape_cast %88 : vector<8xf32> to vector<1x8xf32>
    %c0_84 = arith.constant 0 : index
    %c0_85 = arith.constant 0 : index
    %c0_86 = arith.constant 0 : index
    %90 = vector.load %arg7[%c0_84, %c0_85, %c0_86] : memref<1x1x8xf32, #tpu.memory_space<vmem>>, vector<1x1x8xf32>
    %91 = vector.shape_cast %90 : vector<1x1x8xf32> to vector<1x8xf32>
    %92 = vector.shape_cast %89 : vector<1x8xf32> to vector<1x1x8xf32>
    tpu.vector_store %arg7[%c0_84, %c0_85, %c0_86], %92 {strides = array<i32>} : memref<1x1x8xf32, #tpu.memory_space<vmem>>, vector<1x1x8xf32>,
    %93 = arith.mulf %82, %82 : vector<64x8xf32>
    %cst_87 = arith.constant dense<0.000000e+00> : vector<8xf32>
    %94 = vector.multi_reduction <add>, %93, %cst_87 [0] : vector<64x8xf32> to vector<8xf32>
    %95 = vector.shape_cast %94 : vector<8xf32> to vector<1x8xf32>
    %c0_88 = arith.constant 0 : index
    %c0_89 = arith.constant 0 : index
    %c0_90 = arith.constant 0 : index
    %96 = vector.load %arg8[%c0_88, %c0_89, %c0_90] : memref<1x1x8xf32, #tpu.memory_space<vmem>>, vector<1x1x8xf32>
    %97 = vector.shape_cast %96 : vector<1x1x8xf32> to vector<1x8xf32>
    %98 = vector.shape_cast %95 : vector<1x8xf32> to vector<1x1x8xf32>
    tpu.vector_store %arg8[%c0_88, %c0_89, %c0_90], %98 {strides = array<i32>} : memref<1x1x8xf32, #tpu.memory_space<vmem>>, vector<1x1x8xf32>,
    return
  }
  func.func @transform_0(%arg0: i32) -> (i32, i32, i32, i32) {
    %c0_i32 = arith.constant 0 : i32
    %c0_i32_0 = arith.constant 0 : i32
    %c0_i32_1 = arith.constant 0 : i32
    %c0_i32_2 = arith.constant 0 : i32
    return %arg0, %c0_i32, %c0_i32_0, %c0_i32_1 : i32, i32, i32, i32
  }
  func.func @transform_1(%arg0: i32) -> (i32, i32) {
    %c0_i32 = arith.constant 0 : i32
    %c0_i32_0 = arith.constant 0 : i32
    %c0_i32_1 = arith.constant 0 : i32
    return %c0_i32, %c0_i32_0 : i32, i32
  }
  func.func @transform_2(%arg0: i32) -> (i32, i32) {
    %c0_i32 = arith.constant 0 : i32
    %c0_i32_0 = arith.constant 0 : i32
    %c0_i32_1 = arith.constant 0 : i32
    return %c0_i32, %c0_i32_0 : i32, i32
  }
  func.func @transform_3(%arg0: i32) -> (i32, i32, i32) {
    %c0_i32 = arith.constant 0 : i32
    %c0_i32_0 = arith.constant 0 : i32
    %c0_i32_1 = arith.constant 0 : i32
    %c0_i32_2 = arith.constant 0 : i32
    return %c0_i32, %c0_i32_0, %c0_i32_1 : i32, i32, i32
  }
  func.func @transform_4(%arg0: i32) -> (i32, i32) {
    %c0_i32 = arith.constant 0 : i32
    %c0_i32_0 = arith.constant 0 : i32
    %c0_i32_1 = arith.constant 0 : i32
    return %c0_i32, %c0_i32_0 : i32, i32
  }
  func.func @transform_5(%arg0: i32) -> (i32, i32, i32, i32) {
    %c0_i32 = arith.constant 0 : i32
    %c0_i32_0 = arith.constant 0 : i32
    %c0_i32_1 = arith.constant 0 : i32
    %c0_i32_2 = arith.constant 0 : i32
    return %arg0, %c0_i32, %c0_i32_0, %c0_i32_1 : i32, i32, i32, i32
  }
  func.func @transform_6(%arg0: i32) -> (i32, i32, i32) {
    %c0_i32 = arith.constant 0 : i32
    %c0_i32_0 = arith.constant 0 : i32
    %c0_i32_1 = arith.constant 0 : i32
    return %arg0, %c0_i32, %c0_i32_0 : i32, i32, i32
  }
  func.func @transform_7(%arg0: i32) -> (i32, i32, i32) {
    %c0_i32 = arith.constant 0 : i32
    %c0_i32_0 = arith.constant 0 : i32
    %c0_i32_1 = arith.constant 0 : i32
    return %arg0, %c0_i32, %c0_i32_0 : i32, i32, i32
  }
}

</mosaic_0001>

<llo_original>
// kernel: downsample_forward.5
$region0: #{downsample_forward.5}
  #allocation0 [shape = 'u32[]', space=smem, size = 0x4, offset = 0x4, fixed_abs, tag = 'smem constant byte address 0x4 - core index']
  #allocation1 [shape = 'u32[72,128]{1,0:T(1,128)}', space=vmem, size = 0x9000, scoped, tag = 'internal scratch']
  %s0 = inlined_call_operand.vmem [shape: bf16[128,8], index: 0, kind: input, shape index: {}, may-alias: {0,3}]
  %s1 = inlined_call_operand.vmem [shape: f32[1,8], index: 1, kind: input, shape index: {}]
  %s2 = inlined_call_operand.vmem [shape: f32[1,8], index: 2, kind: input, shape index: {}]
  %s3 = inlined_call_operand.vmem [shape: bf16[128,8], index: 3, kind: output, shape index: {}, may-alias: {0,3}]
  %s4 = sld [smem:[#allocation0]]
  $region22: #{downsample_forward.5} parent=0
    _
  %s6 = ssub.s32 1, %s4
  %s7 = scalar_select 0, %s6, %s4
  // Predicated region
  $region2: #{downsample_forward.5} parent=0 // pred_check
    _
  $region3: #{downsample_forward.5} parent=0 // pred_check_branch
    %9 = sbr.rel (0) target = $region5
  $region4: #{downsample_forward.5} parent=0 // pred_region
    _
  $region5: #{downsample_forward.5} parent=0 // pred_fallthru
    _
  // Predicated region
  $region6: #{downsample_forward.5} parent=0 // pred_check
    _
  $region7: #{downsample_forward.5} parent=0 // pred_check_branch
    %11 = sbr.rel (0) target = $region9
  $region8: #{downsample_forward.5} parent=0 // pred_region
    _
  $region9: #{downsample_forward.5} parent=0 // pred_fallthru
    _
  // Predicated region
  $region10: #{downsample_forward.5} parent=0 // pred_check
    _
  $region11: #{downsample_forward.5} parent=0 // pred_check_branch
    %13 = sbr.rel (0) target = $region13
  $region12: #{downsample_forward.5} parent=0 // pred_region
    _
  $region13: #{downsample_forward.5} parent=0 // pred_fallthru
    _
  %v14 = vld [vmem:[%s0] sm:$0xf]
  %v15 = vld [vmem:[%s0 + $0x4] sm:$0xf]
  %v16 = vld [vmem:[%s0 + $0x8] sm:$0xf]
  %v17 = vld [vmem:[%s0 + $0xc] sm:$0xf]
  %v18 = vld [vmem:[%s0 + $0x10] sm:$0xf]
  %v19 = vld [vmem:[%s0 + $0x14] sm:$0xf]
  %v20 = vld [vmem:[%s0 + $0x18] sm:$0xf]
  %v21 = vld [vmem:[%s0 + $0x1c] sm:$0xf]
  %v22 = vld [vmem:[%s0 + $0x20] sm:$0xf]
  %v23 = vld [vmem:[%s0 + $0x24] sm:$0xf]
  %v24 = vld [vmem:[%s0 + $0x28] sm:$0xf]
  %v25 = vld [vmem:[%s0 + $0x2c] sm:$0xf]
  %v26 = vld [vmem:[%s0 + $0x30] sm:$0xf]
  %v27 = vld [vmem:[%s0 + $0x34] sm:$0xf]
  %v28 = vld [vmem:[%s0 + $0x38] sm:$0xf]
  %v29 = vld [vmem:[%s0 + $0x3c] sm:$0xf]
  %v30 = vunpack.c.l.bf16 %v14
  %v31 = vunpack.c.l.bf16 %v15
  %v32 = vunpack.c.l.bf16 %v16
  %v33 = vunpack.c.l.bf16 %v17
  %v34 = vunpack.c.l.bf16 %v18
  %v35 = vunpack.c.l.bf16 %v19
  %v36 = vunpack.c.l.bf16 %v20
  %v37 = vunpack.c.l.bf16 %v21
  %v38 = vunpack.c.l.bf16 %v22
  %v39 = vunpack.c.l.bf16 %v23
  %v40 = vunpack.c.l.bf16 %v24
  %v41 = vunpack.c.l.bf16 %v25
  %v42 = vunpack.c.l.bf16 %v26
  %v43 = vunpack.c.l.bf16 %v27
  %v44 = vunpack.c.l.bf16 %v28
  %v45 = vunpack.c.l.bf16 %v29
  %v46 = vld [vmem:[%s1] sm:$0x1]
  %v48 = vperm.slane %v46, 0
  %v50 = vmul.f32 %v30, %v48
  %v51 = vmul.f32 %v31, %v48
  %v52 = vmul.f32 %v32, %v48
  %v53 = vmul.f32 %v33, %v48
  %v54 = vmul.f32 %v34, %v48
  %v55 = vmul.f32 %v35, %v48
  %v56 = vmul.f32 %v36, %v48
  %v57 = vmul.f32 %v37, %v48
  %v58 = vmul.f32 %v38, %v48
  %v59 = vmul.f32 %v39, %v48
  %v60 = vmul.f32 %v40, %v48
  %v61 = vmul.f32 %v41, %v48
  %v62 = vmul.f32 %v42, %v48
  %v63 = vmul.f32 %v43, %v48
  %v64 = vmul.f32 %v44, %v48
  %v65 = vmul.f32 %v45, %v48
  %v66 = vld [vmem:[%s2] sm:$0x1]
  %v68 = vperm.slane %v66, 0
  %v70 = vadd.f32 %v50, %v68
  %v71 = vadd.f32 %v51, %v68
  %v72 = vadd.f32 %v52, %v68
  %v73 = vadd.f32 %v53, %v68
  %v74 = vadd.f32 %v54, %v68
  %v75 = vadd.f32 %v55, %v68
  %v76 = vadd.f32 %v56, %v68
  %v77 = vadd.f32 %v57, %v68
  %v78 = vadd.f32 %v58, %v68
  %v79 = vadd.f32 %v59, %v68
  %v80 = vadd.f32 %v60, %v68
  %v81 = vadd.f32 %v61, %v68
  %v82 = vadd.f32 %v62, %v68
  %v83 = vadd.f32 %v63, %v68
  %v84 = vadd.f32 %v64, %v68
  %v85 = vadd.f32 %v65, %v68
  %vm86 = vcmp.ge.f32.partialorder %v70, 0.0
  %vm87 = vcmp.ge.f32.partialorder %v71, 0.0
  %vm88 = vcmp.ge.f32.partialorder %v72, 0.0
  %vm89 = vcmp.ge.f32.partialorder %v73, 0.0
  %vm90 = vcmp.ge.f32.partialorder %v74, 0.0
  %vm91 = vcmp.ge.f32.partialorder %v75, 0.0
  %vm92 = vcmp.ge.f32.partialorder %v76, 0.0
  %vm93 = vcmp.ge.f32.partialorder %v77, 0.0
  %vm94 = vcmp.ge.f32.partialorder %v78, 0.0
  %vm95 = vcmp.ge.f32.partialorder %v79, 0.0
  %vm96 = vcmp.ge.f32.partialorder %v80, 0.0
  %vm97 = vcmp.ge.f32.partialorder %v81, 0.0
  %vm98 = vcmp.ge.f32.partialorder %v82, 0.0
  %vm99 = vcmp.ge.f32.partialorder %v83, 0.0
  %vm100 = vcmp.ge.f32.partialorder %v84, 0.0
  %vm101 = vcmp.ge.f32.partialorder %v85, 0.0
  %v102 = vmul.f32 %v70, 0.01
  %v103 = vmul.f32 %v71, 0.01
  %v104 = vmul.f32 %v72, 0.01
  %v105 = vmul.f32 %v73, 0.01
  %v106 = vmul.f32 %v74, 0.01
  %v107 = vmul.f32 %v75, 0.01
  %v108 = vmul.f32 %v76, 0.01
  %v109 = vmul.f32 %v77, 0.01
  %v110 = vmul.f32 %v78, 0.01
  %v111 = vmul.f32 %v79, 0.01
  %v112 = vmul.f32 %v80, 0.01
  %v113 = vmul.f32 %v81, 0.01
  %v114 = vmul.f32 %v82, 0.01
  %v115 = vmul.f32 %v83, 0.01
  %v116 = vmul.f32 %v84, 0.01
  %v117 = vmul.f32 %v85, 0.01
  %v118 = vsel %vm86, %v70, %v102
  %v119 = vsel %vm87, %v71, %v103
  %v120 = vsel %vm88, %v72, %v104
  %v121 = vsel %vm89, %v73, %v105
  %v122 = vsel %vm90, %v74, %v106
  %v123 = vsel %vm91, %v75, %v107
  %v124 = vsel %vm92, %v76, %v108
  %v125 = vsel %vm93, %v77, %v109
  %v126 = vsel %vm94, %v78, %v110
  %v127 = vsel %vm95, %v79, %v111
  %v128 = vsel %vm96, %v80, %v112
  %v129 = vsel %vm97, %v81, %v113
  %v130 = vsel %vm98, %v82, %v114
  %v131 = vsel %vm99, %v83, %v115
  %v132 = vsel %vm100, %v84, %v116
  %v133 = vsel %vm101, %v85, %v117
  %v134 = vpack.c.bf16 %v118, %v118
  %v135 = vpack.c.bf16 %v119, %v119
  %v136 = vpack.c.bf16 %v120, %v120
  %v137 = vpack.c.bf16 %v121, %v121
  %v138 = vpack.c.bf16 %v122, %v122
  %v139 = vpack.c.bf16 %v123, %v123
  %v140 = vpack.c.bf16 %v124, %v124
  %v141 = vpack.c.bf16 %v125, %v125
  %v142 = vpack.c.bf16 %v126, %v126
  %v143 = vpack.c.bf16 %v127, %v127
  %v144 = vpack.c.bf16 %v128, %v128
  %v145 = vpack.c.bf16 %v129, %v129
  %v146 = vpack.c.bf16 %v130, %v130
  %v147 = vpack.c.bf16 %v131, %v131
  %v148 = vpack.c.bf16 %v132, %v132
  %v149 = vpack.c.bf16 %v133, %v133
  %vm150 = vcmask 60416
  %151 = vst.msk [vmem:[%s3] sm:$0xf] %vm150, %v134
  %152 = vst.msk [vmem:[%s3 + $0x4] sm:$0xf] %vm150, %v135
  %153 = vst.msk [vmem:[%s3 + $0x8] sm:$0xf] %vm150, %v136
  %154 = vst.msk [vmem:[%s3 + $0xc] sm:$0xf] %vm150, %v137
  %155 = vst.msk [vmem:[%s3 + $0x10] sm:$0xf] %vm150, %v138
  %156 = vst.msk [vmem:[%s3 + $0x14] sm:$0xf] %vm150, %v139
  %157 = vst.msk [vmem:[%s3 + $0x18] sm:$0xf] %vm150, %v140
  %158 = vst.msk [vmem:[%s3 + $0x1c] sm:$0xf] %vm150, %v141
  %159 = vst.msk [vmem:[%s3 + $0x20] sm:$0xf] %vm150, %v142
  %160 = vst.msk [vmem:[%s3 + $0x24] sm:$0xf] %vm150, %v143
  %161 = vst.msk [vmem:[%s3 + $0x28] sm:$0xf] %vm150, %v144
  %162 = vst.msk [vmem:[%s3 + $0x2c] sm:$0xf] %vm150, %v145
  %163 = vst.msk [vmem:[%s3 + $0x30] sm:$0xf] %vm150, %v146
  %164 = vst.msk [vmem:[%s3 + $0x34] sm:$0xf] %vm150, %v147
  %165 = vst.msk [vmem:[%s3 + $0x38] sm:$0xf] %vm150, %v148
  %166 = vst.msk [vmem:[%s3 + $0x3c] sm:$0xf] %vm150, %v149
  // Predicated region
  $region14: #{downsample_forward.5} parent=0 // pred_check
    _
  $region15: #{downsample_forward.5} parent=0 // pred_check_branch
    %168 = sbr.rel (0) target = $region17
  $region16: #{downsample_forward.5} parent=0 // pred_region
    _
  $region17: #{downsample_forward.5} parent=0 // pred_fallthru
    _
  // Predicated region
  $region18: #{downsample_forward.5} parent=0 // pred_check
    _
  $region19: #{downsample_forward.5} parent=0 // pred_check_branch
    %170 = sbr.rel (0) target = $region21
  $region20: #{downsample_forward.5} parent=0 // pred_region
    _
  $region21: #{downsample_forward.5} parent=0 // pred_fallthru
    _

// kernel: downsample_forward.4
$region0: #{downsample_forward.4}
  #allocation0 [shape = 'u32[]', space=smem, size = 0x4, offset = 0x4, fixed_abs, tag = 'smem constant byte address 0x4 - core index']
  #allocation1 [shape = 'u32[72,128]{1,0:T(1,128)}', space=vmem, size = 0x9000, scoped, tag = 'internal scratch']
  #allocation2 [shape = 'f32[18,18,4]{2,1,0:T(8,128)}', space=vmem, size = 0x36000, scoped, tag = 'scratch operand']
  %s0 = inlined_call_operand.vmem [shape: bf16[2,16,16,4], index: 0, kind: input, shape index: {}]
  %s1 = inlined_call_operand.vmem [shape: f32[1,4], index: 1, kind: input, shape index: {}]
  %s2 = inlined_call_operand.vmem [shape: f32[1,4], index: 2, kind: input, shape index: {}]
  %s3 = inlined_call_operand.vmem [shape: bf16[9,4,8], index: 3, kind: input, shape index: {}]
  %s4 = inlined_call_operand.vmem [shape: f32[1,8], index: 4, kind: input, shape index: {}]
  %s5 = inlined_call_operand.vmem [shape: bf16[2,8,8,8], index: 5, kind: output, shape index: {0}]
  %s6 = inlined_call_operand.vmem [shape: f32[2,1,8], index: 6, kind: output, shape index: {1}]
  %s7 = inlined_call_operand.vmem [shape: f32[2,1,8], index: 7, kind: output, shape index: {2}]
  %8 = xla_tuple %s5, %s6, %s7
  %s9 = sld [smem:[#allocation0]]
  $region69: #{downsample_forward.4} parent=0
    _
  %s11 = ssub.s32 1, %s9
  %s12 = scalar_select 0, %s11, %s9
  loop: start=0, step=1, limit=4
  $region2: #{downsample_forward.4} parent=0 // loop_pre_header
    _
  $region3: #{downsample_forward.4} parent=0 // loop_header
    %s14 = sphi 0, %s18
    %p15 = scmp.ge.s32.totalorder %s14, 4
    %s24 = sphi 0, %s26
    %s27 = sphi 0, %s24
    %s28 = sphi 0, %s27
    %s44 = sphi 0, %s28
    %s48 = sphi 0, %s48
    %s50 = sphi 0, %s48
    %s51 = sphi 0, %s50
    %s65 = sphi 0, %s51
    %s69 = sphi 0, %s69
    %s71 = sphi 0, %s69
    %s72 = sphi 0, %s71
    %s86 = sphi 0, %s72
    %s90 = sphi 0, %s90
    %s92 = sphi 0, %s90
    %s93 = sphi 0, %s92
    %s107 = sphi 0, %s93
    %s111 = sphi 0, %s111
    %s113 = sphi 0, %s111
    %s114 = sphi 0, %s113
    %s128 = sphi 0, %s114
    %s134 = sphi 0, %s136
    %s137 = sphi 0, %s134
    %s138 = sphi 0, %s137
    %s154 = sphi 0, %s138
    %s160 = sphi 0, %s162
    %s163 = sphi 0, %s160
    %s164 = sphi 0, %s163
    %s180 = sphi 0, %s164
    %s186 = sphi 0, %s188
    %s189 = sphi 0, %s186
    %s190 = sphi 0, %s189
    %s206 = sphi 0, %s190
  $region4: #{downsample_forward.4} parent=0 // loop_header_branch
    %17 = sbr.rel (%p15) target = $region8
  $region5: #{downsample_forward.4} parent=0 // loop_body
    %s19 = ssub.s32 %s14, 1
    %s20 = ssub.s32 %s14, 2
    %s21 = sadd.s32 %s14, 1
    %s22 = ssub.s32 %s14, %s21
    %p23 = scmp.eq.s32.totalorder %s22, 0
    %s25 = sadd.s32 %s24, 1
    %s26 = scalar_select %p23, %s24, %s25
    %p29 = pneg %p23
    %p30 = scmp.eq.s32.totalorder %s14, 1
    %p31 = por %p29, %p30
    %p32 = scmp.ne.s32.totalorder %s24, %s27
    %p33 = scmp.eq.s32.totalorder %s14, 0
    %p34 = por %p32, %p33
    %p35 = scmp.ne.s32.totalorder %s24, %s27
    %p36 = scmp.eq.s32.totalorder %s19, 1
    %p37 = por %p35, %p36
    %p38 = scmp.ne.s32.totalorder %s27, %s28
    %p39 = scmp.eq.s32.totalorder %s19, 0
    %p40 = por %p38, %p39
    %p41 = scmp.ne.s32.totalorder %s27, %s28
    %p42 = scmp.eq.s32.totalorder %s20, 1
    %p43 = por %p41, %p42
    %p45 = scmp.ne.s32.totalorder %s28, %s44
    %p46 = scmp.eq.s32.totalorder %s20, 0
    %p47 = por %p45, %p46
    %s49 = sadd.s32 %s48, 1
    %p52 = scmp.eq.s32.totalorder %s14, 1
    %p53 = scmp.ne.s32.totalorder %s48, %s50
    %p54 = scmp.eq.s32.totalorder %s14, 0
    %p55 = por %p53, %p54
    %p56 = scmp.ne.s32.totalorder %s48, %s50
    %p57 = scmp.eq.s32.totalorder %s19, 1
    %p58 = por %p56, %p57
    %p59 = scmp.ne.s32.totalorder %s50, %s51
    %p60 = scmp.eq.s32.totalorder %s19, 0
    %p61 = por %p59, %p60
    %p62 = scmp.ne.s32.totalorder %s50, %s51
    %p63 = scmp.eq.s32.totalorder %s20, 1
    %p64 = por %p62, %p63
    %p66 = scmp.ne.s32.totalorder %s51, %s65
    %p67 = scmp.eq.s32.totalorder %s20, 0
    %p68 = por %p66, %p67
    %s70 = sadd.s32 %s69, 1
    %p73 = scmp.eq.s32.totalorder %s14, 1
    %p74 = scmp.ne.s32.totalorder %s69, %s71
    %p75 = scmp.eq.s32.totalorder %s14, 0
    %p76 = por %p74, %p75
    %p77 = scmp.ne.s32.totalorder %s69, %s71
    %p78 = scmp.eq.s32.totalorder %s19, 1
    %p79 = por %p77, %p78
    %p80 = scmp.ne.s32.totalorder %s71, %s72
    %p81 = scmp.eq.s32.totalorder %s19, 0
    %p82 = por %p80, %p81
    %p83 = scmp.ne.s32.totalorder %s71, %s72
    %p84 = scmp.eq.s32.totalorder %s20, 1
    %p85 = por %p83, %p84
    %p87 = scmp.ne.s32.totalorder %s72, %s86
    %p88 = scmp.eq.s32.totalorder %s20, 0
    %p89 = por %p87, %p88
    %s91 = sadd.s32 %s90, 1
    %p94 = scmp.eq.s32.totalorder %s14, 1
    %p95 = scmp.ne.s32.totalorder %s90, %s92
    %p96 = scmp.eq.s32.totalorder %s14, 0
    %p97 = por %p95, %p96
    %p98 = scmp.ne.s32.totalorder %s90, %s92
    %p99 = scmp.eq.s32.totalorder %s19, 1
    %p100 = por %p98, %p99
    %p101 = scmp.ne.s32.totalorder %s92, %s93
    %p102 = scmp.eq.s32.totalorder %s19, 0
    %p103 = por %p101, %p102
    %p104 = scmp.ne.s32.totalorder %s92, %s93
    %p105 = scmp.eq.s32.totalorder %s20, 1
    %p106 = por %p104, %p105
    %p108 = scmp.ne.s32.totalorder %s93, %s107
    %p109 = scmp.eq.s32.totalorder %s20, 0
    %p110 = por %p108, %p109
    %s112 = sadd.s32 %s111, 1
    %p115 = scmp.eq.s32.totalorder %s14, 1
    %p116 = scmp.ne.s32.totalorder %s111, %s113
    %p117 = scmp.eq.s32.totalorder %s14, 0
    %p118 = por %p116, %p117
    %p119 = scmp.ne.s32.totalorder %s111, %s113
    %p120 = scmp.eq.s32.totalorder %s19, 1
    %p121 = por %p119, %p120
    %p122 = scmp.ne.s32.totalorder %s113, %s114
    %p123 = scmp.eq.s32.totalorder %s19, 0
    %p124 = por %p122, %p123
    %p125 = scmp.ne.s32.totalorder %s113, %s114
    %p126 = scmp.eq.s32.totalorder %s20, 1
    %p127 = por %p125, %p126
    %p129 = scmp.ne.s32.totalorder %s114, %s128
    %p130 = scmp.eq.s32.totalorder %s20, 0
    %p131 = por %p129, %p130
    %s132 = ssub.s32 %s14, %s21
    %p133 = scmp.eq.s32.totalorder %s132, 0
    %s135 = sadd.s32 %s134, 1
    %s136 = scalar_select %p133, %s134, %s135
    %p139 = pneg %p133
    %p140 = scmp.eq.s32.totalorder %s14, 1
    %p141 = por %p139, %p140
    %p142 = scmp.ne.s32.totalorder %s134, %s137
    %p143 = scmp.eq.s32.totalorder %s14, 0
    %p144 = por %p142, %p143
    %p145 = scmp.ne.s32.totalorder %s134, %s137
    %p146 = scmp.eq.s32.totalorder %s19, 1
    %p147 = por %p145, %p146
    %p148 = scmp.ne.s32.totalorder %s137, %s138
    %p149 = scmp.eq.s32.totalorder %s19, 0
    %p150 = por %p148, %p149
    %p151 = scmp.ne.s32.totalorder %s137, %s138
    %p152 = scmp.eq.s32.totalorder %s20, 1
    %p153 = por %p151, %p152
    %p155 = scmp.ne.s32.totalorder %s138, %s154
    %p156 = scmp.eq.s32.totalorder %s20, 0
    %p157 = por %p155, %p156
    %s158 = ssub.s32 %s14, %s21
    %p159 = scmp.eq.s32.totalorder %s158, 0
    %s161 = sadd.s32 %s160, 1
    %s162 = scalar_select %p159, %s160, %s161
    %p165 = pneg %p159
    %p166 = scmp.eq.s32.totalorder %s14, 1
    %p167 = por %p165, %p166
    %p168 = scmp.ne.s32.totalorder %s160, %s163
    %p169 = scmp.eq.s32.totalorder %s14, 0
    %p170 = por %p168, %p169
    %p171 = scmp.ne.s32.totalorder %s160, %s163
    %p172 = scmp.eq.s32.totalorder %s19, 1
    %p173 = por %p171, %p172
    %p174 = scmp.ne.s32.totalorder %s163, %s164
    %p175 = scmp.eq.s32.totalorder %s19, 0
    %p176 = por %p174, %p175
    %p177 = scmp.ne.s32.totalorder %s163, %s164
    %p178 = scmp.eq.s32.totalorder %s20, 1
    %p179 = por %p177, %p178
    %p181 = scmp.ne.s32.totalorder %s164, %s180
    %p182 = scmp.eq.s32.totalorder %s20, 0
    %p183 = por %p181, %p182
    %s184 = ssub.s32 %s14, %s21
    %p185 = scmp.eq.s32.totalorder %s184, 0
    %s187 = sadd.s32 %s186, 1
    %s188 = scalar_select %p185, %s186, %s187
    %p191 = pneg %p185
    %p192 = scmp.eq.s32.totalorder %s14, 1
    %p193 = por %p191, %p192
    %p194 = scmp.ne.s32.totalorder %s186, %s189
    %p195 = scmp.eq.s32.totalorder %s14, 0
    %p196 = por %p194, %p195
    %p197 = scmp.ne.s32.totalorder %s186, %s189
    %p198 = scmp.eq.s32.totalorder %s19, 1
    %p199 = por %p197, %p198
    %p200 = scmp.ne.s32.totalorder %s189, %s190
    %p201 = scmp.eq.s32.totalorder %s19, 0
    %p202 = por %p200, %p201
    %p203 = scmp.ne.s32.totalorder %s189, %s190
    %p204 = scmp.eq.s32.totalorder %s20, 1
    %p205 = por %p203, %p204
    %p207 = scmp.ne.s32.totalorder %s190, %s206
    %p208 = scmp.eq.s32.totalorder %s20, 0
    %p209 = por %p207, %p208
    %p210 = scmp.le.s32.totalorder 1, %s14
    %p211 = scmp.lt.s32.totalorder %s14, 3
    %p212 = pnand %p210, %p211
    %p213 = pneg %p212
    // Predicated region
    $region9: #{downsample_forward.4} parent=5 // pred_check
      _
    $region10: #{downsample_forward.4} parent=5 // pred_check_branch
      %215 = sbr.rel (%p212) target = $region12
    $region11: #{downsample_forward.4} parent=5 // pred_region
      %s216 = ssub.s32 %s14, 1
      // Predicated region
      $region13: #{downsample_forward.4} parent=11 // pred_check
        %p217 = pneg %p61
      $region14: #{downsample_forward.4} parent=11 // pred_check_branch
        %219 = sbr.rel (%p217) target = $region16
      $region15: #{downsample_forward.4} parent=11 // pred_region
        _
      $region16: #{downsample_forward.4} parent=11 // pred_fallthru
        _
      // Predicated region
      $region17: #{downsample_forward.4} parent=11 // pred_check
        %p220 = pneg %p82
      $region18: #{downsample_forward.4} parent=11 // pred_check_branch
        %222 = sbr.rel (%p220) target = $region20
      $region19: #{downsample_forward.4} parent=11 // pred_region
        _
      $region20: #{downsample_forward.4} parent=11 // pred_fallthru
        _
      // Predicated region
      $region21: #{downsample_forward.4} parent=11 // pred_check
        %p223 = pneg %p103
      $region22: #{downsample_forward.4} parent=11 // pred_check_branch
        %225 = sbr.rel (%p223) target = $region24
      $region23: #{downsample_forward.4} parent=11 // pred_region
        _
      $region24: #{downsample_forward.4} parent=11 // pred_fallthru
        _
      // Predicated region
      $region25: #{downsample_forward.4} parent=11 // pred_check
        %p226 = pneg %p124
      $region26: #{downsample_forward.4} parent=11 // pred_check_branch
        %228 = sbr.rel (%p226) target = $region28
      $region27: #{downsample_forward.4} parent=11 // pred_region
        _
      $region28: #{downsample_forward.4} parent=11 // pred_fallthru
        _
    $region12: #{downsample_forward.4} parent=5 // pred_fallthru
      _
    %p229 = scmp.lt.s32.totalorder %s14, 2
    // Predicated region
    $region29: #{downsample_forward.4} parent=5 // pred_check
      %p230 = pneg %p229
    $region30: #{downsample_forward.4} parent=5 // pred_check_branch
      %232 = sbr.rel (%p230) target = $region32
    $region31: #{downsample_forward.4} parent=5 // pred_region
      // Predicated region
      $region33: #{downsample_forward.4} parent=31 // pred_check
        %p233 = pneg %p34
      $region34: #{downsample_forward.4} parent=31 // pred_check_branch
        %235 = sbr.rel (%p233) target = $region36
      $region35: #{downsample_forward.4} parent=31 // pred_region
        %p236 = scmp.lt.s32.totalorder %s14, 1
        %s237 = scalar_select %p236, %s14, 1
        %s238 = smul.addr %s237, 32
        %s239 = smul.addr %s238, 4
        %s240 = scalar_lea.vmem %s0, %s239
      $region36: #{downsample_forward.4} parent=31 // pred_fallthru
        _
    $region32: #{downsample_forward.4} parent=5 // pred_fallthru
      _
    %p241 = scmp.le.s32.totalorder 1, %s14
    %p242 = scmp.lt.s32.totalorder %s14, 3
    %p243 = pnand %p241, %p242
    %p244 = pneg %p243
    // Predicated region
    $region37: #{downsample_forward.4} parent=5 // pred_check
      _
    $region38: #{downsample_forward.4} parent=5 // pred_check_branch
      %246 = sbr.rel (%p243) target = $region40
    $region39: #{downsample_forward.4} parent=5 // pred_region
      %s247 = ssub.s32 %s14, 1
      %p248 = scmp.lt.s32.totalorder %s19, 1
      %s249 = scalar_select %p248, %s19, 1
      %s250 = smul.addr %s249, 32
      %s251 = smul.addr %s250, 4
      %s252 = scalar_lea.vmem %s0, %s251
      %p253 = pneg %p40
      %p254 = pneg %p37
      %p255 = pneg %p61
      %p256 = pneg %p58
      %p257 = pneg %p82
      %p258 = pneg %p79
      %p259 = pneg %p103
      %p260 = pneg %p100
      %p261 = pneg %p124
      %p262 = pneg %p121
      %p263 = pneg %p150
      %p264 = pneg %p147
      %p265 = scmp.lt.s32.totalorder %s19, 1
      %s266 = scalar_select %p265, %s19, 1
      %s267 = smul.addr %s266, 8
      %s268 = smul.addr %s267, 4
      %s269 = scalar_lea.vmem %s5, %s268
      %p270 = pneg %p176
      %p271 = pneg %p173
      %p272 = scmp.lt.s32.totalorder %s19, 1
      %s273 = scalar_select %p272, %s19, 1
      %s274 = scalar_lea.vmem %s6, %s273
      %p275 = pneg %p202
      %p276 = pneg %p199
      %p277 = scmp.lt.s32.totalorder %s19, 1
      %s278 = scalar_select %p277, %s19, 1
      %s279 = scalar_lea.vmem %s7, %s278
      %p280 = scmp.lt.s32.totalorder %s19, 1
      %s281 = scalar_select %p280, %s19, 1
      %s282 = smul.addr %s281, 32
      %s283 = smul.addr %s282, 4
      %s284 = scalar_lea.vmem %s0, %s283
      %p285 = scmp.lt.s32.totalorder %s19, 1
      %s286 = scalar_select %p285, %s19, 1
      %s287 = smul.addr %s286, 8
      %s288 = smul.addr %s287, 4
      %s289 = scalar_lea.vmem %s5, %s288
      %p290 = scmp.lt.s32.totalorder %s19, 1
      %s291 = scalar_select %p290, %s19, 1
      %s292 = scalar_lea.vmem %s6, %s291
      %p293 = scmp.lt.s32.totalorder %s19, 1
      %s294 = scalar_select %p293, %s19, 1
      %s295 = scalar_lea.vmem %s7, %s294
      %vm297 = vcmask 31744
      %298 = vst.msk [vmem:[#allocation2] sm:$0xff] %vm297, 0.0
      %299 = vst.msk [vmem:[#allocation2 + $0x8] sm:$0xff] %vm297, 0.0
      %vm300 = vcmask 25600
      %301 = vst.msk [vmem:[#allocation2 + $0x10] sm:$0x3] %vm300, 0.0
      %s302 = scalar_lea.vmem [#allocation2], 408
      %303 = vst.msk [vmem:[%s302] sm:$0xff] %vm297, 0.0
      %304 = vst.msk [vmem:[%s302 + $0x8] sm:$0xff] %vm297, 0.0
      %305 = vst.msk [vmem:[%s302 + $0x10] sm:$0x3] %vm300, 0.0
      %vm306 = vcmask 24576
      %307 = vst.msk [vmem:[#allocation2] sm:$0x1] %vm306, 0.0
      %308 = vst.msk [vmem:[#allocation2 + $0x18] sm:$0x1] %vm306, 0.0
      %309 = vst.msk [vmem:[#allocation2 + $0x30] sm:$0x1] %vm306, 0.0
      %310 = vst.msk [vmem:[#allocation2 + $0x48] sm:$0x1] %vm306, 0.0
      %311 = vst.msk [vmem:[#allocation2 + $0x60] sm:$0x1] %vm306, 0.0
      %312 = vst.msk [vmem:[#allocation2 + $0x78] sm:$0x1] %vm306, 0.0
      %313 = vst.msk [vmem:[#allocation2 + $0x90] sm:$0x1] %vm306, 0.0
      %314 = vst.msk [vmem:[#allocation2 + $0xa8] sm:$0x1] %vm306, 0.0
      %315 = vst.msk [vmem:[#allocation2 + $0xc0] sm:$0x1] %vm306, 0.0
      %316 = vst.msk [vmem:[#allocation2 + $0xd8] sm:$0x1] %vm306, 0.0
      %317 = vst.msk [vmem:[#allocation2 + $0xf0] sm:$0x1] %vm306, 0.0
      %318 = vst.msk [vmem:[#allocation2 + $0x108] sm:$0x1] %vm306, 0.0
      %319 = vst.msk [vmem:[#allocation2 + $0x120] sm:$0x1] %vm306, 0.0
      %320 = vst.msk [vmem:[#allocation2 + $0x138] sm:$0x1] %vm306, 0.0
      %321 = vst.msk [vmem:[#allocation2 + $0x150] sm:$0x1] %vm306, 0.0
      %322 = vst.msk [vmem:[#allocation2 + $0x168] sm:$0x1] %vm306, 0.0
      %323 = vst.msk [vmem:[#allocation2 + $0x180] sm:$0x1] %vm306, 0.0
      %324 = vst.msk [vmem:[#allocation2 + $0x198] sm:$0x1] %vm306, 0.0
      %325 = vst.msk [vmem:[#allocation2 + $0x11] sm:$0x1] %vm306, 0.0
      %326 = vst.msk [vmem:[#allocation2 + $0x29] sm:$0x1] %vm306, 0.0
      %327 = vst.msk [vmem:[#allocation2 + $0x41] sm:$0x1] %vm306, 0.0
      %328 = vst.msk [vmem:[#allocation2 + $0x59] sm:$0x1] %vm306, 0.0
      %329 = vst.msk [vmem:[#allocation2 + $0x71] sm:$0x1] %vm306, 0.0
      %330 = vst.msk [vmem:[#allocation2 + $0x89] sm:$0x1] %vm306, 0.0
      %331 = vst.msk [vmem:[#allocation2 + $0xa1] sm:$0x1] %vm306, 0.0
      %332 = vst.msk [vmem:[#allocation2 + $0xb9] sm:$0x1] %vm306, 0.0
      %333 = vst.msk [vmem:[#allocation2 + $0xd1] sm:$0x1] %vm306, 0.0
      %334 = vst.msk [vmem:[#allocation2 + $0xe9] sm:$0x1] %vm306, 0.0
      %335 = vst.msk [vmem:[#allocation2 + $0x101] sm:$0x1] %vm306, 0.0
      %336 = vst.msk [vmem:[#allocation2 + $0x119] sm:$0x1] %vm306, 0.0
      %337 = vst.msk [vmem:[#allocation2 + $0x131] sm:$0x1] %vm306, 0.0
      %338 = vst.msk [vmem:[#allocation2 + $0x149] sm:$0x1] %vm306, 0.0
      %339 = vst.msk [vmem:[#allocation2 + $0x161] sm:$0x1] %vm306, 0.0
      %340 = vst.msk [vmem:[#allocation2 + $0x179] sm:$0x1] %vm306, 0.0
      %341 = vst.msk [vmem:[#allocation2 + $0x191] sm:$0x1] %vm306, 0.0
      %342 = vst.msk [vmem:[#allocation2 + $0x1a9] sm:$0x1] %vm306, 0.0
      %v343 = vld [vmem:[%s284] sm:$0xf]
      %v344 = vld [vmem:[%s284 + $0x4] sm:$0xf]
      %v345 = vld [vmem:[%s284 + $0x8] sm:$0xf]
      %v346 = vld [vmem:[%s284 + $0xc] sm:$0xf]
      %v347 = vld [vmem:[%s284 + $0x10] sm:$0xf]
      %v348 = vld [vmem:[%s284 + $0x14] sm:$0xf]
      %v349 = vld [vmem:[%s284 + $0x18] sm:$0xf]
      %v350 = vld [vmem:[%s284 + $0x1c] sm:$0xf]
      %v351 = vld [vmem:[%s284 + $0x20] sm:$0xf]
      %v352 = vld [vmem:[%s284 + $0x24] sm:$0xf]
      %v353 = vld [vmem:[%s284 + $0x28] sm:$0xf]
      %v354 = vld [vmem:[%s284 + $0x2c] sm:$0xf]
      %v355 = vld [vmem:[%s284 + $0x30] sm:$0xf]
      %v356 = vld [vmem:[%s284 + $0x34] sm:$0xf]
      %v357 = vld [vmem:[%s284 + $0x38] sm:$0xf]
      %v358 = vld [vmem:[%s284 + $0x3c] sm:$0xf]
      %v359 = vld [vmem:[%s284 + $0x40] sm:$0xf]
      %v360 = vld [vmem:[%s284 + $0x44] sm:$0xf]
      %v361 = vld [vmem:[%s284 + $0x48] sm:$0xf]
      %v362 = vld [vmem:[%s284 + $0x4c] sm:$0xf]
      %v363 = vld [vmem:[%s284 + $0x50] sm:$0xf]
      %v364 = vld [vmem:[%s284 + $0x54] sm:$0xf]
      %v365 = vld [vmem:[%s284 + $0x58] sm:$0xf]
      %v366 = vld [vmem:[%s284 + $0x5c] sm:$0xf]
      %v367 = vld [vmem:[%s284 + $0x60] sm:$0xf]
      %v368 = vld [vmem:[%s284 + $0x64] sm:$0xf]
      %v369 = vld [vmem:[%s284 + $0x68] sm:$0xf]
      %v370 = vld [vmem:[%s284 + $0x6c] sm:$0xf]
      %v371 = vld [vmem:[%s284 + $0x70] sm:$0xf]
      %v372 = vld [vmem:[%s284 + $0x74] sm:$0xf]
      %v373 = vld [vmem:[%s284 + $0x78] sm:$0xf]
      %v374 = vld [vmem:[%s284 + $0x7c] sm:$0xf]
      %v375 = vunpack.c.l.bf16 %v343
      %v376 = vunpack.c.l.bf16 %v344
      %v377 = vunpack.c.l.bf16 %v345
      %v378 = vunpack.c.l.bf16 %v346
      %v379 = vunpack.c.l.bf16 %v347
      %v380 = vunpack.c.l.bf16 %v348
      %v381 = vunpack.c.l.bf16 %v349
      %v382 = vunpack.c.l.bf16 %v350
      %v383 = vunpack.c.l.bf16 %v351
      %v384 = vunpack.c.l.bf16 %v352
      %v385 = vunpack.c.l.bf16 %v353
      %v386 = vunpack.c.l.bf16 %v354
      %v387 = vunpack.c.l.bf16 %v355
      %v388 = vunpack.c.l.bf16 %v356
      %v389 = vunpack.c.l.bf16 %v357
      %v390 = vunpack.c.l.bf16 %v358
      %v391 = vunpack.c.l.bf16 %v359
      %v392 = vunpack.c.l.bf16 %v360
      %v393 = vunpack.c.l.bf16 %v361
      %v394 = vunpack.c.l.bf16 %v362
      %v395 = vunpack.c.l.bf16 %v363
      %v396 = vunpack.c.l.bf16 %v364
      %v397 = vunpack.c.l.bf16 %v365
      %v398 = vunpack.c.l.bf16 %v366
      %v399 = vunpack.c.l.bf16 %v367
      %v400 = vunpack.c.l.bf16 %v368
      %v401 = vunpack.c.l.bf16 %v369
      %v402 = vunpack.c.l.bf16 %v370
      %v403 = vunpack.c.l.bf16 %v371
      %v404 = vunpack.c.l.bf16 %v372
      %v405 = vunpack.c.l.bf16 %v373
      %v406 = vunpack.c.l.bf16 %v374
      %v407 = vld [vmem:[%s1] sm:$0x1]
      %v409 = vperm.slane %v407, 0
      %v411 = vmul.f32 %v375, %v409
      %v412 = vmul.f32 %v376, %v409
      %v413 = vmul.f32 %v377, %v409
      %v414 = vmul.f32 %v378, %v409
      %v415 = vmul.f32 %v379, %v409
      %v416 = vmul.f32 %v380, %v409
      %v417 = vmul.f32 %v381, %v409
      %v418 = vmul.f32 %v382, %v409
      %v419 = vmul.f32 %v383, %v409
      %v420 = vmul.f32 %v384, %v409
      %v421 = vmul.f32 %v385, %v409
      %v422 = vmul.f32 %v386, %v409
      %v423 = vmul.f32 %v387, %v409
      %v424 = vmul.f32 %v388, %v409
      %v425 = vmul.f32 %v389, %v409
      %v426 = vmul.f32 %v390, %v409
      %v427 = vmul.f32 %v391, %v409
      %v428 = vmul.f32 %v392, %v409
      %v429 = vmul.f32 %v393, %v409
      %v430 = vmul.f32 %v394, %v409
      %v431 = vmul.f32 %v395, %v409
      %v432 = vmul.f32 %v396, %v409
      %v433 = vmul.f32 %v397, %v409
      %v434 = vmul.f32 %v398, %v409
      %v435 = vmul.f32 %v399, %v409
      %v436 = vmul.f32 %v400, %v409
      %v437 = vmul.f32 %v401, %v409
      %v438 = vmul.f32 %v402, %v409
      %v439 = vmul.f32 %v403, %v409
      %v440 = vmul.f32 %v404, %v409
      %v441 = vmul.f32 %v405, %v409
      %v442 = vmul.f32 %v406, %v409
      %v443 = vld [vmem:[%s2] sm:$0x1]
      %v445 = vperm.slane %v443, 0
      %v447 = vadd.f32 %v411, %v445
      %v448 = vadd.f32 %v412, %v445
      %v449 = vadd.f32 %v413, %v445
      %v450 = vadd.f32 %v414, %v445
      %v451 = vadd.f32 %v415, %v445
      %v452 = vadd.f32 %v416, %v445
      %v453 = vadd.f32 %v417, %v445
      %v454 = vadd.f32 %v418, %v445
      %v455 = vadd.f32 %v419, %v445
      %v456 = vadd.f32 %v420, %v445
      %v457 = vadd.f32 %v421, %v445
      %v458 = vadd.f32 %v422, %v445
      %v459 = vadd.f32 %v423, %v445
      %v460 = vadd.f32 %v424, %v445
      %v461 = vadd.f32 %v425, %v445
      %v462 = vadd.f32 %v426, %v445
      %v463 = vadd.f32 %v427, %v445
      %v464 = vadd.f32 %v428, %v445
      %v465 = vadd.f32 %v429, %v445
      %v466 = vadd.f32 %v430, %v445
      %v467 = vadd.f32 %v431, %v445
      %v468 = vadd.f32 %v432, %v445
      %v469 = vadd.f32 %v433, %v445
      %v470 = vadd.f32 %v434, %v445
      %v471 = vadd.f32 %v435, %v445
      %v472 = vadd.f32 %v436, %v445
      %v473 = vadd.f32 %v437, %v445
      %v474 = vadd.f32 %v438, %v445
      %v475 = vadd.f32 %v439, %v445
      %v476 = vadd.f32 %v440, %v445
      %v477 = vadd.f32 %v441, %v445
      %v478 = vadd.f32 %v442, %v445
      %s479 = scalar_lea.vmem [#allocation2], 24
      %480 = vst.msk [vmem:[%s479 + $0x1] sm:$0xff] %vm297, %v447
      %481 = vst.msk [vmem:[%s479 + $0x9] sm:$0xff] %vm297, %v448
      %482 = vst.msk [vmem:[%s479 + $0x19] sm:$0xff] %vm297, %v449
      %483 = vst.msk [vmem:[%s479 + $0x21] sm:$0xff] %vm297, %v450
      %484 = vst.msk [vmem:[%s479 + $0x31] sm:$0xff] %vm297, %v451
      %485 = vst.msk [vmem:[%s479 + $0x39] sm:$0xff] %vm297, %v452
      %486 = vst.msk [vmem:[%s479 + $0x49] sm:$0xff] %vm297, %v453
      %487 = vst.msk [vmem:[%s479 + $0x51] sm:$0xff] %vm297, %v454
      %488 = vst.msk [vmem:[%s479 + $0x61] sm:$0xff] %vm297, %v455
      %489 = vst.msk [vmem:[%s479 + $0x69] sm:$0xff] %vm297, %v456
      %490 = vst.msk [vmem:[%s479 + $0x79] sm:$0xff] %vm297, %v457
      %491 = vst.msk [vmem:[%s479 + $0x81] sm:$0xff] %vm297, %v458
      %492 = vst.msk [vmem:[%s479 + $0x91] sm:$0xff] %vm297, %v459
      %493 = vst.msk [vmem:[%s479 + $0x99] sm:$0xff] %vm297, %v460
      %494 = vst.msk [vmem:[%s479 + $0xa9] sm:$0xff] %vm297, %v461
      %495 = vst.msk [vmem:[%s479 + $0xb1] sm:$0xff] %vm297, %v462
      %496 = vst.msk [vmem:[%s479 + $0xc1] sm:$0xff] %vm297, %v463
      %497 = vst.msk [vmem:[%s479 + $0xc9] sm:$0xff] %vm297, %v464
      %498 = vst.msk [vmem:[%s479 + $0xd9] sm:$0xff] %vm297, %v465
      %499 = vst.msk [vmem:[%s479 + $0xe1] sm:$0xff] %vm297, %v466
      %500 = vst.msk [vmem:[%s479 + $0xf1] sm:$0xff] %vm297, %v467
      %501 = vst.msk [vmem:[%s479 + $0xf9] sm:$0xff] %vm297, %v468
      %502 = vst.msk [vmem:[%s479 + $0x109] sm:$0xff] %vm297, %v469
      %503 = vst.msk [vmem:[%s479 + $0x111] sm:$0xff] %vm297, %v470
      %504 = vst.msk [vmem:[%s479 + $0x121] sm:$0xff] %vm297, %v471
      %505 = vst.msk [vmem:[%s479 + $0x129] sm:$0xff] %vm297, %v472
      %506 = vst.msk [vmem:[%s479 + $0x139] sm:$0xff] %vm297, %v473
      %507 = vst.msk [vmem:[%s479 + $0x141] sm:$0xff] %vm297, %v474
      %508 = vst.msk [vmem:[%s479 + $0x151] sm:$0xff] %vm297, %v475
      %509 = vst.msk [vmem:[%s479 + $0x159] sm:$0xff] %vm297, %v476
      %510 = vst.msk [vmem:[%s479 + $0x169] sm:$0xff] %vm297, %v477
      %511 = vst.msk [vmem:[%s479 + $0x171] sm:$0xff] %vm297, %v478
      %v512 = vld [vmem:[#allocation2] ss:$2 sm:$0xff]
      %s513 = scalar_lea.vmem [#allocation2], 48
      %v514 = vld [vmem:[%s513] ss:$2 sm:$0xff]
      %s515 = scalar_lea.vmem [#allocation2], 96
      %v516 = vld [vmem:[%s515] ss:$2 sm:$0xff]
      %s517 = scalar_lea.vmem [#allocation2], 144
      %v518 = vld [vmem:[%s517] ss:$2 sm:$0xff]
      %s519 = scalar_lea.vmem [#allocation2], 192
      %v520 = vld [vmem:[%s519] ss:$2 sm:$0xff]
      %s521 = scalar_lea.vmem [#allocation2], 240
      %v522 = vld [vmem:[%s521] ss:$2 sm:$0xff]
      %s523 = scalar_lea.vmem [#allocation2], 288
      %v524 = vld [vmem:[%s523] ss:$2 sm:$0xff]
      %s525 = scalar_lea.vmem [#allocation2], 336
      %v526 = vld [vmem:[%s525] ss:$2 sm:$0xff]
      %v527 = vpack.c.bf16 %v514, %v512
      %v528 = vpack.c.bf16 %v518, %v516
      %v529 = vpack.c.bf16 %v522, %v520
      %v530 = vpack.c.bf16 %v526, %v524
      %v531 = vld [vmem:[%s3] sm:$0x3]
      %s532 = scalar_lea.vmem [#allocation2], 1
      %v533 = vld [vmem:[%s532] ss:$2 sm:$0xff]
      %s534 = scalar_lea.vmem [#allocation2], 49
      %v535 = vld [vmem:[%s534] ss:$2 sm:$0xff]
      %s536 = scalar_lea.vmem [#allocation2], 97
      %v537 = vld [vmem:[%s536] ss:$2 sm:$0xff]
      %s538 = scalar_lea.vmem [#allocation2], 145
      %v539 = vld [vmem:[%s538] ss:$2 sm:$0xff]
      %s540 = scalar_lea.vmem [#allocation2], 193
      %v541 = vld [vmem:[%s540] ss:$2 sm:$0xff]
      %s542 = scalar_lea.vmem [#allocation2], 241
      %v543 = vld [vmem:[%s542] ss:$2 sm:$0xff]
      %s544 = scalar_lea.vmem [#allocation2], 289
      %v545 = vld [vmem:[%s544] ss:$2 sm:$0xff]
      %s546 = scalar_lea.vmem [#allocation2], 337
      %v547 = vld [vmem:[%s546] ss:$2 sm:$0xff]
      %v548 = vpack.c.bf16 %v535, %v533
      %v549 = vpack.c.bf16 %v539, %v537
      %v550 = vpack.c.bf16 %v543, %v541
      %v551 = vpack.c.bf16 %v547, %v545
      %s552 = scalar_lea.vmem %s3, 2
      %v553 = vld [vmem:[%s552] sm:$0x3]
      %v555 = vsel %vm297, %v548, 0
      %v558 = vsel %vm297, %v549, 0
      %v561 = vsel %vm297, %v550, 0
      %v564 = vsel %vm297, %v551, 0
      %vm566 = vcmask 1041408
      %v568 = vsel %vm566, %v553, 0
      %570 = vmatpush.bf16.msra.mxu0 0
      %571 = vmatpush.bf16.msra.mxu0 0
      %572 = vmatpush.bf16.msra.mxu0 0
      %573 = vmatpush.bf16.msra.mxu0 0
      %574 = vmatpush.bf16.msra.mxu0 0
      %575 = vmatpush.bf16.msra.mxu0 0
      %576 = vmatpush.bf16.msra.mxu0 0
      %577 = vmatpush.bf16.msra.mxu0 %v568
      %578 = vmatmul.bf16.gmra.mxu0 %v555
      %v579 = vpop.f32.mrf.mxu0
      %v580 = vadd.f32 0.0, %v579
      %v581 = vpop.f32.mrf.mxu0
      %v582 = vadd.f32 0.0, %v581
      %583 = vmatmul.bf16.gmra.mxu0 %v558
      %v584 = vpop.f32.mrf.mxu0
      %v585 = vadd.f32 0.0, %v584
      %v586 = vpop.f32.mrf.mxu0
      %v587 = vadd.f32 0.0, %v586
      %588 = vmatmul.bf16.gmra.mxu0 %v561
      %v589 = vpop.f32.mrf.mxu0
      %v590 = vadd.f32 0.0, %v589
      %v591 = vpop.f32.mrf.mxu0
      %v592 = vadd.f32 0.0, %v591
      %593 = vmatmul.bf16.gmra.mxu0 %v564
      %v594 = vpop.f32.mrf.mxu0
      %v595 = vadd.f32 0.0, %v594
      %v596 = vpop.f32.mrf.mxu0
      %v597 = vadd.f32 0.0, %v596
      %598 = vdwg.mxu0
      %v600 = vsel %vm297, %v527, 0
      %v603 = vsel %vm297, %v528, 0
      %v606 = vsel %vm297, %v529, 0
      %v609 = vsel %vm297, %v530, 0
      %v612 = vsel %vm566, %v531, 0
      %614 = vmatpush.bf16.msra.mxu0 0
      %615 = vmatpush.bf16.msra.mxu0 0
      %616 = vmatpush.bf16.msra.mxu0 0
      %617 = vmatpush.bf16.msra.mxu0 0
      %618 = vmatpush.bf16.msra.mxu0 0
      %619 = vmatpush.bf16.msra.mxu0 0
      %620 = vmatpush.bf16.msra.mxu0 0
      %621 = vmatpush.bf16.msra.mxu0 %v612
      %622 = vmatmul.bf16.gmra.mxu0 %v600
      %v623 = vpop.f32.mrf.mxu0
      %v624 = vadd.f32 %v580, %v623
      %v625 = vpop.f32.mrf.mxu0
      %v626 = vadd.f32 %v582, %v625
      %627 = vmatmul.bf16.gmra.mxu0 %v603
      %v628 = vpop.f32.mrf.mxu0
      %v629 = vadd.f32 %v585, %v628
      %v630 = vpop.f32.mrf.mxu0
      %v631 = vadd.f32 %v587, %v630
      %632 = vmatmul.bf16.gmra.mxu0 %v606
      %v633 = vpop.f32.mrf.mxu0
      %v634 = vadd.f32 %v590, %v633
      %v635 = vpop.f32.mrf.mxu0
      %v636 = vadd.f32 %v592, %v635
      %637 = vmatmul.bf16.gmra.mxu0 %v609
      %v638 = vpop.f32.mrf.mxu0
      %v639 = vadd.f32 %v595, %v638
      %v640 = vpop.f32.mrf.mxu0
      %v641 = vadd.f32 %v597, %v640
      %642 = vdwg.mxu0
      %s643 = scalar_lea.vmem [#allocation2], 2
      %v644 = vld [vmem:[%s643] ss:$2 sm:$0xff]
      %s645 = scalar_lea.vmem [#allocation2], 50
      %v646 = vld [vmem:[%s645] ss:$2 sm:$0xff]
      %s647 = scalar_lea.vmem [#allocation2], 98
      %v648 = vld [vmem:[%s647] ss:$2 sm:$0xff]
      %s649 = scalar_lea.vmem [#allocation2], 146
      %v650 = vld [vmem:[%s649] ss:$2 sm:$0xff]
      %s651 = scalar_lea.vmem [#allocation2], 194
      %v652 = vld [vmem:[%s651] ss:$2 sm:$0xff]
      %s653 = scalar_lea.vmem [#allocation2], 242
      %v654 = vld [vmem:[%s653] ss:$2 sm:$0xff]
      %s655 = scalar_lea.vmem [#allocation2], 290
      %v656 = vld [vmem:[%s655] ss:$2 sm:$0xff]
      %s657 = scalar_lea.vmem [#allocation2], 338
      %v658 = vld [vmem:[%s657] ss:$2 sm:$0xff]
      %v659 = vpack.c.bf16 %v646, %v644
      %v660 = vpack.c.bf16 %v650, %v648
      %v661 = vpack.c.bf16 %v654, %v652
      %v662 = vpack.c.bf16 %v658, %v656
      %s663 = scalar_lea.vmem %s3, 4
      %v664 = vld [vmem:[%s663] sm:$0x3]
      %v666 = vsel %vm297, %v659, 0
      %v669 = vsel %vm297, %v660, 0
      %v672 = vsel %vm297, %v661, 0
      %v675 = vsel %vm297, %v662, 0
      %v678 = vsel %vm566, %v664, 0
      %680 = vmatpush.bf16.msra.mxu0 0
      %681 = vmatpush.bf16.msra.mxu0 0
      %682 = vmatpush.bf16.msra.mxu0 0
      %683 = vmatpush.bf16.msra.mxu0 0
      %684 = vmatpush.bf16.msra.mxu0 0
      %685 = vmatpush.bf16.msra.mxu0 0
      %686 = vmatpush.bf16.msra.mxu0 0
      %687 = vmatpush.bf16.msra.mxu0 %v678
      %688 = vmatmul.bf16.gmra.mxu0 %v666
      %v689 = vpop.f32.mrf.mxu0
      %v690 = vadd.f32 0.0, %v689
      %v691 = vpop.f32.mrf.mxu0
      %v692 = vadd.f32 0.0, %v691
      %693 = vmatmul.bf16.gmra.mxu0 %v669
      %v694 = vpop.f32.mrf.mxu0
      %v695 = vadd.f32 0.0, %v694
      %v696 = vpop.f32.mrf.mxu0
      %v697 = vadd.f32 0.0, %v696
      %698 = vmatmul.bf16.gmra.mxu0 %v672
      %v699 = vpop.f32.mrf.mxu0
      %v700 = vadd.f32 0.0, %v699
      %v701 = vpop.f32.mrf.mxu0
      %v702 = vadd.f32 0.0, %v701
      %703 = vmatmul.bf16.gmra.mxu0 %v675
      %v704 = vpop.f32.mrf.mxu0
      %v705 = vadd.f32 0.0, %v704
      %v706 = vpop.f32.mrf.mxu0
      %v707 = vadd.f32 0.0, %v706
      %708 = vdwg.mxu0
      %v709 = vadd.f32 %v624, %v690
      %v710 = vadd.f32 %v626, %v692
      %v711 = vadd.f32 %v629, %v695
      %v712 = vadd.f32 %v631, %v697
      %v713 = vadd.f32 %v634, %v700
      %v714 = vadd.f32 %v636, %v702
      %v715 = vadd.f32 %v639, %v705
      %v716 = vadd.f32 %v641, %v707
      %v717 = vld [vmem:[%s479] ss:$2 sm:$0xff]
      %s718 = scalar_lea.vmem %s479, 48 [#allocation2]
      %v719 = vld [vmem:[%s718] ss:$2 sm:$0xff]
      %s720 = scalar_lea.vmem %s479, 96 [#allocation2]
      %v721 = vld [vmem:[%s720] ss:$2 sm:$0xff]
      %s722 = scalar_lea.vmem %s479, 144 [#allocation2]
      %v723 = vld [vmem:[%s722] ss:$2 sm:$0xff]
      %s724 = scalar_lea.vmem %s479, 192 [#allocation2]
      %v725 = vld [vmem:[%s724] ss:$2 sm:$0xff]
      %s726 = scalar_lea.vmem %s479, 240 [#allocation2]
      %v727 = vld [vmem:[%s726] ss:$2 sm:$0xff]
      %s728 = scalar_lea.vmem %s479, 288 [#allocation2]
      %v729 = vld [vmem:[%s728] ss:$2 sm:$0xff]
      %s730 = scalar_lea.vmem %s479, 336 [#allocation2]
      %v731 = vld [vmem:[%s730] ss:$2 sm:$0xff]
      %v732 = vpack.c.bf16 %v719, %v717
      %v733 = vpack.c.bf16 %v723, %v721
      %v734 = vpack.c.bf16 %v727, %v725
      %v735 = vpack.c.bf16 %v731, %v729
      %s736 = scalar_lea.vmem %s3, 6
      %v737 = vld [vmem:[%s736] sm:$0x3]
      %v739 = vsel %vm297, %v732, 0
      %v742 = vsel %vm297, %v733, 0
      %v745 = vsel %vm297, %v734, 0
      %v748 = vsel %vm297, %v735, 0
      %v751 = vsel %vm566, %v737, 0
      %753 = vmatpush.bf16.msra.mxu0 0
      %754 = vmatpush.bf16.msra.mxu0 0
      %755 = vmatpush.bf16.msra.mxu0 0
      %756 = vmatpush.bf16.msra.mxu0 0
      %757 = vmatpush.bf16.msra.mxu0 0
      %758 = vmatpush.bf16.msra.mxu0 0
      %759 = vmatpush.bf16.msra.mxu0 0
      %760 = vmatpush.bf16.msra.mxu0 %v751
      %761 = vmatmul.bf16.gmra.mxu0 %v739
      %v762 = vpop.f32.mrf.mxu0
      %v763 = vadd.f32 0.0, %v762
      %v764 = vpop.f32.mrf.mxu0
      %v765 = vadd.f32 0.0, %v764
      %766 = vmatmul.bf16.gmra.mxu0 %v742
      %v767 = vpop.f32.mrf.mxu0
      %v768 = vadd.f32 0.0, %v767
      %v769 = vpop.f32.mrf.mxu0
      %v770 = vadd.f32 0.0, %v769
      %771 = vmatmul.bf16.gmra.mxu0 %v745
      %v772 = vpop.f32.mrf.mxu0
      %v773 = vadd.f32 0.0, %v772
      %v774 = vpop.f32.mrf.mxu0
      %v775 = vadd.f32 0.0, %v774
      %776 = vmatmul.bf16.gmra.mxu0 %v748
      %v777 = vpop.f32.mrf.mxu0
      %v778 = vadd.f32 0.0, %v777
      %v779 = vpop.f32.mrf.mxu0
      %v780 = vadd.f32 0.0, %v779
      %781 = vdwg.mxu0
      %v782 = vadd.f32 %v709, %v763
      %v783 = vadd.f32 %v710, %v765
      %v784 = vadd.f32 %v711, %v768
      %v785 = vadd.f32 %v712, %v770
      %v786 = vadd.f32 %v713, %v773
      %v787 = vadd.f32 %v714, %v775
      %v788 = vadd.f32 %v715, %v778
      %v789 = vadd.f32 %v716, %v780
      %s790 = scalar_lea.vmem %s479, 1 [#allocation2]
      %v791 = vld [vmem:[%s790] ss:$2 sm:$0xff]
      %s792 = scalar_lea.vmem %s479, 49 [#allocation2]
      %v793 = vld [vmem:[%s792] ss:$2 sm:$0xff]
      %s794 = scalar_lea.vmem %s479, 97 [#allocation2]
      %v795 = vld [vmem:[%s794] ss:$2 sm:$0xff]
      %s796 = scalar_lea.vmem %s479, 145 [#allocation2]
      %v797 = vld [vmem:[%s796] ss:$2 sm:$0xff]
      %s798 = scalar_lea.vmem %s479, 193 [#allocation2]
      %v799 = vld [vmem:[%s798] ss:$2 sm:$0xff]
      %s800 = scalar_lea.vmem %s479, 241 [#allocation2]
      %v801 = vld [vmem:[%s800] ss:$2 sm:$0xff]
      %s802 = scalar_lea.vmem %s479, 289 [#allocation2]
      %v803 = vld [vmem:[%s802] ss:$2 sm:$0xff]
      %s804 = scalar_lea.vmem %s479, 337 [#allocation2]
      %v805 = vld [vmem:[%s804] ss:$2 sm:$0xff]
      %v806 = vpack.c.bf16 %v793, %v791
      %v807 = vpack.c.bf16 %v797, %v795
      %v808 = vpack.c.bf16 %v801, %v799
      %v809 = vpack.c.bf16 %v805, %v803
      %s810 = scalar_lea.vmem %s3, 8
      %v811 = vld [vmem:[%s810] sm:$0x3]
      %v813 = vsel %vm297, %v806, 0
      %v816 = vsel %vm297, %v807, 0
      %v819 = vsel %vm297, %v808, 0
      %v822 = vsel %vm297, %v809, 0
      %v825 = vsel %vm566, %v811, 0
      %827 = vmatpush.bf16.msra.mxu0 0
      %828 = vmatpush.bf16.msra.mxu0 0
      %829 = vmatpush.bf16.msra.mxu0 0
      %830 = vmatpush.bf16.msra.mxu0 0
      %831 = vmatpush.bf16.msra.mxu0 0
      %832 = vmatpush.bf16.msra.mxu0 0
      %833 = vmatpush.bf16.msra.mxu0 0
      %834 = vmatpush.bf16.msra.mxu0 %v825
      %835 = vmatmul.bf16.gmra.mxu0 %v813
      %v836 = vpop.f32.mrf.mxu0
      %v837 = vadd.f32 0.0, %v836
      %v838 = vpop.f32.mrf.mxu0
      %v839 = vadd.f32 0.0, %v838
      %840 = vmatmul.bf16.gmra.mxu0 %v816
      %v841 = vpop.f32.mrf.mxu0
      %v842 = vadd.f32 0.0, %v841
      %v843 = vpop.f32.mrf.mxu0
      %v844 = vadd.f32 0.0, %v843
      %845 = vmatmul.bf16.gmra.mxu0 %v819
      %v846 = vpop.f32.mrf.mxu0
      %v847 = vadd.f32 0.0, %v846
      %v848 = vpop.f32.mrf.mxu0
      %v849 = vadd.f32 0.0, %v848
      %850 = vmatmul.bf16.gmra.mxu0 %v822
      %v851 = vpop.f32.mrf.mxu0
      %v852 = vadd.f32 0.0, %v851
      %v853 = vpop.f32.mrf.mxu0
      %v854 = vadd.f32 0.0, %v853
      %855 = vdwg.mxu0
      %v856 = vadd.f32 %v782, %v837
      %v857 = vadd.f32 %v783, %v839
      %v858 = vadd.f32 %v784, %v842
      %v859 = vadd.f32 %v785, %v844
      %v860 = vadd.f32 %v786, %v847
      %v861 = vadd.f32 %v787, %v849
      %v862 = vadd.f32 %v788, %v852
      %v863 = vadd.f32 %v789, %v854
      %s864 = scalar_lea.vmem %s479, 2 [#allocation2]
      %v865 = vld [vmem:[%s864] ss:$2 sm:$0xff]
      %s866 = scalar_lea.vmem %s479, 50 [#allocation2]
      %v867 = vld [vmem:[%s866] ss:$2 sm:$0xff]
      %s868 = scalar_lea.vmem %s479, 98 [#allocation2]
      %v869 = vld [vmem:[%s868] ss:$2 sm:$0xff]
      %s870 = scalar_lea.vmem %s479, 146 [#allocation2]
      %v871 = vld [vmem:[%s870] ss:$2 sm:$0xff]
      %s872 = scalar_lea.vmem %s479, 194 [#allocation2]
      %v873 = vld [vmem:[%s872] ss:$2 sm:$0xff]
      %s874 = scalar_lea.vmem %s479, 242 [#allocation2]
      %v875 = vld [vmem:[%s874] ss:$2 sm:$0xff]
      %s876 = scalar_lea.vmem %s479, 290 [#allocation2]
      %v877 = vld [vmem:[%s876] ss:$2 sm:$0xff]
      %s878 = scalar_lea.vmem %s479, 338 [#allocation2]
      %v879 = vld [vmem:[%s878] ss:$2 sm:$0xff]
      %v880 = vpack.c.bf16 %v867, %v865
      %v881 = vpack.c.bf16 %v871, %v869
      %v882 = vpack.c.bf16 %v875, %v873
      %v883 = vpack.c.bf16 %v879, %v877
      %s884 = scalar_lea.vmem %s3, 10
      %v885 = vld [vmem:[%s884] sm:$0x3]
      %v887 = vsel %vm297, %v880, 0
      %v890 = vsel %vm297, %v881, 0
      %v893 = vsel %vm297, %v882, 0
      %v896 = vsel %vm297, %v883, 0
      %v899 = vsel %vm566, %v885, 0
      %901 = vmatpush.bf16.msra.mxu0 0
      %902 = vmatpush.bf16.msra.mxu0 0
      %903 = vmatpush.bf16.msra.mxu0 0
      %904 = vmatpush.bf16.msra.mxu0 0
      %905 = vmatpush.bf16.msra.mxu0 0
      %906 = vmatpush.bf16.msra.mxu0 0
      %907 = vmatpush.bf16.msra.mxu0 0
      %908 = vmatpush.bf16.msra.mxu0 %v899
      %909 = vmatmul.bf16.gmra.mxu0 %v887
      %v910 = vpop.f32.mrf.mxu0
      %v911 = vadd.f32 0.0, %v910
      %v912 = vpop.f32.mrf.mxu0
      %v913 = vadd.f32 0.0, %v912
      %914 = vmatmul.bf16.gmra.mxu0 %v890
      %v915 = vpop.f32.mrf.mxu0
      %v916 = vadd.f32 0.0, %v915
      %v917 = vpop.f32.mrf.mxu0
      %v918 = vadd.f32 0.0, %v917
      %919 = vmatmul.bf16.gmra.mxu0 %v893
      %v920 = vpop.f32.mrf.mxu0
      %v921 = vadd.f32 0.0, %v920
      %v922 = vpop.f32.mrf.mxu0
      %v923 = vadd.f32 0.0, %v922
      %924 = vmatmul.bf16.gmra.mxu0 %v896
      %v925 = vpop.f32.mrf.mxu0
      %v926 = vadd.f32 0.0, %v925
      %v927 = vpop.f32.mrf.mxu0
      %v928 = vadd.f32 0.0, %v927
      %929 = vdwg.mxu0
      %v930 = vadd.f32 %v856, %v911
      %v931 = vadd.f32 %v857, %v913
      %v932 = vadd.f32 %v858, %v916
      %v933 = vadd.f32 %v859, %v918
      %v934 = vadd.f32 %v860, %v921
      %v935 = vadd.f32 %v861, %v923
      %v936 = vadd.f32 %v862, %v926
      %v937 = vadd.f32 %v863, %v928
      %s938 = scalar_lea.vmem [#allocation2], 48
      %v939 = vld [vmem:[%s938] ss:$2 sm:$0xff]
      %s940 = scalar_lea.vmem %s938, 48 [#allocation2]
      %v941 = vld [vmem:[%s940] ss:$2 sm:$0xff]
      %s942 = scalar_lea.vmem %s938, 96 [#allocation2]
      %v943 = vld [vmem:[%s942] ss:$2 sm:$0xff]
      %s944 = scalar_lea.vmem %s938, 144 [#allocation2]
      %v945 = vld [vmem:[%s944] ss:$2 sm:$0xff]
      %s946 = scalar_lea.vmem %s938, 192 [#allocation2]
      %v947 = vld [vmem:[%s946] ss:$2 sm:$0xff]
      %s948 = scalar_lea.vmem %s938, 240 [#allocation2]
      %v949 = vld [vmem:[%s948] ss:$2 sm:$0xff]
      %s950 = scalar_lea.vmem %s938, 288 [#allocation2]
      %v951 = vld [vmem:[%s950] ss:$2 sm:$0xff]
      %s952 = scalar_lea.vmem %s938, 336 [#allocation2]
      %v953 = vld [vmem:[%s952] ss:$2 sm:$0xff]
      %v954 = vpack.c.bf16 %v941, %v939
      %v955 = vpack.c.bf16 %v945, %v943
      %v956 = vpack.c.bf16 %v949, %v947
      %v957 = vpack.c.bf16 %v953, %v951
      %s958 = scalar_lea.vmem %s3, 12
      %v959 = vld [vmem:[%s958] sm:$0x3]
      %v961 = vsel %vm297, %v954, 0
      %v964 = vsel %vm297, %v955, 0
      %v967 = vsel %vm297, %v956, 0
      %v970 = vsel %vm297, %v957, 0
      %v973 = vsel %vm566, %v959, 0
      %975 = vmatpush.bf16.msra.mxu0 0
      %976 = vmatpush.bf16.msra.mxu0 0
      %977 = vmatpush.bf16.msra.mxu0 0
      %978 = vmatpush.bf16.msra.mxu0 0
      %979 = vmatpush.bf16.msra.mxu0 0
      %980 = vmatpush.bf16.msra.mxu0 0
      %981 = vmatpush.bf16.msra.mxu0 0
      %982 = vmatpush.bf16.msra.mxu0 %v973
      %983 = vmatmul.bf16.gmra.mxu0 %v961
      %v984 = vpop.f32.mrf.mxu0
      %v985 = vadd.f32 0.0, %v984
      %v986 = vpop.f32.mrf.mxu0
      %v987 = vadd.f32 0.0, %v986
      %988 = vmatmul.bf16.gmra.mxu0 %v964
      %v989 = vpop.f32.mrf.mxu0
      %v990 = vadd.f32 0.0, %v989
      %v991 = vpop.f32.mrf.mxu0
      %v992 = vadd.f32 0.0, %v991
      %993 = vmatmul.bf16.gmra.mxu0 %v967
      %v994 = vpop.f32.mrf.mxu0
      %v995 = vadd.f32 0.0, %v994
      %v996 = vpop.f32.mrf.mxu0
      %v997 = vadd.f32 0.0, %v996
      %998 = vmatmul.bf16.gmra.mxu0 %v970
      %v999 = vpop.f32.mrf.mxu0
      %v1000 = vadd.f32 0.0, %v999
      %v1001 = vpop.f32.mrf.mxu0
      %v1002 = vadd.f32 0.0, %v1001
      %1003 = vdwg.mxu0
      %v1004 = vadd.f32 %v930, %v985
      %v1005 = vadd.f32 %v931, %v987
      %v1006 = vadd.f32 %v932, %v990
      %v1007 = vadd.f32 %v933, %v992
      %v1008 = vadd.f32 %v934, %v995
      %v1009 = vadd.f32 %v935, %v997
      %v1010 = vadd.f32 %v936, %v1000
      %v1011 = vadd.f32 %v937, %v1002
      %s1012 = scalar_lea.vmem %s938, 1 [#allocation2]
      %v1013 = vld [vmem:[%s1012] ss:$2 sm:$0xff]
      %s1014 = scalar_lea.vmem %s938, 49 [#allocation2]
      %v1015 = vld [vmem:[%s1014] ss:$2 sm:$0xff]
      %s1016 = scalar_lea.vmem %s938, 97 [#allocation2]
      %v1017 = vld [vmem:[%s1016] ss:$2 sm:$0xff]
      %s1018 = scalar_lea.vmem %s938, 145 [#allocation2]
      %v1019 = vld [vmem:[%s1018] ss:$2 sm:$0xff]
      %s1020 = scalar_lea.vmem %s938, 193 [#allocation2]
      %v1021 = vld [vmem:[%s1020] ss:$2 sm:$0xff]
      %s1022 = scalar_lea.vmem %s938, 241 [#allocation2]
      %v1023 = vld [vmem:[%s1022] ss:$2 sm:$0xff]
      %s1024 = scalar_lea.vmem %s938, 289 [#allocation2]
      %v1025 = vld [vmem:[%s1024] ss:$2 sm:$0xff]
      %s1026 = scalar_lea.vmem %s938, 337 [#allocation2]
      %v1027 = vld [vmem:[%s1026] ss:$2 sm:$0xff]
      %v1028 = vpack.c.bf16 %v1015, %v1013
      %v1029 = vpack.c.bf16 %v1019, %v1017
      %v1030 = vpack.c.bf16 %v1023, %v1021
      %v1031 = vpack.c.bf16 %v1027, %v1025
      %s1032 = scalar_lea.vmem %s3, 14
      %v1033 = vld [vmem:[%s1032] sm:$0x3]
      %v1035 = vsel %vm297, %v1028, 0
      %v1038 = vsel %vm297, %v1029, 0
      %v1041 = vsel %vm297, %v1030, 0
      %v1044 = vsel %vm297, %v1031, 0
      %v1047 = vsel %vm566, %v1033, 0
      %1049 = vmatpush.bf16.msra.mxu0 0
      %1050 = vmatpush.bf16.msra.mxu0 0
      %1051 = vmatpush.bf16.msra.mxu0 0
      %1052 = vmatpush.bf16.msra.mxu0 0
      %1053 = vmatpush.bf16.msra.mxu0 0
      %1054 = vmatpush.bf16.msra.mxu0 0
      %1055 = vmatpush.bf16.msra.mxu0 0
      %1056 = vmatpush.bf16.msra.mxu0 %v1047
      %1057 = vmatmul.bf16.gmra.mxu0 %v1035
      %v1058 = vpop.f32.mrf.mxu0
      %v1059 = vadd.f32 0.0, %v1058
      %v1060 = vpop.f32.mrf.mxu0
      %v1061 = vadd.f32 0.0, %v1060
      %1062 = vmatmul.bf16.gmra.mxu0 %v1038
      %v1063 = vpop.f32.mrf.mxu0
      %v1064 = vadd.f32 0.0, %v1063
      %v1065 = vpop.f32.mrf.mxu0
      %v1066 = vadd.f32 0.0, %v1065
      %1067 = vmatmul.bf16.gmra.mxu0 %v1041
      %v1068 = vpop.f32.mrf.mxu0
      %v1069 = vadd.f32 0.0, %v1068
      %v1070 = vpop.f32.mrf.mxu0
      %v1071 = vadd.f32 0.0, %v1070
      %1072 = vmatmul.bf16.gmra.mxu0 %v1044
      %v1073 = vpop.f32.mrf.mxu0
      %v1074 = vadd.f32 0.0, %v1073
      %v1075 = vpop.f32.mrf.mxu0
      %v1076 = vadd.f32 0.0, %v1075
      %1077 = vdwg.mxu0
      %v1078 = vadd.f32 %v1004, %v1059
      %v1079 = vadd.f32 %v1005, %v1061
      %v1080 = vadd.f32 %v1006, %v1064
      %v1081 = vadd.f32 %v1007, %v1066
      %v1082 = vadd.f32 %v1008, %v1069
      %v1083 = vadd.f32 %v1009, %v1071
      %v1084 = vadd.f32 %v1010, %v1074
      %v1085 = vadd.f32 %v1011, %v1076
      %s1086 = scalar_lea.vmem %s938, 2 [#allocation2]
      %v1087 = vld [vmem:[%s1086] ss:$2 sm:$0xff]
      %s1088 = scalar_lea.vmem %s938, 50 [#allocation2]
      %v1089 = vld [vmem:[%s1088] ss:$2 sm:$0xff]
      %s1090 = scalar_lea.vmem %s938, 98 [#allocation2]
      %v1091 = vld [vmem:[%s1090] ss:$2 sm:$0xff]
      %s1092 = scalar_lea.vmem %s938, 146 [#allocation2]
      %v1093 = vld [vmem:[%s1092] ss:$2 sm:$0xff]
      %s1094 = scalar_lea.vmem %s938, 194 [#allocation2]
      %v1095 = vld [vmem:[%s1094] ss:$2 sm:$0xff]
      %s1096 = scalar_lea.vmem %s938, 242 [#allocation2]
      %v1097 = vld [vmem:[%s1096] ss:$2 sm:$0xff]
      %s1098 = scalar_lea.vmem %s938, 290 [#allocation2]
      %v1099 = vld [vmem:[%s1098] ss:$2 sm:$0xff]
      %s1100 = scalar_lea.vmem %s938, 338 [#allocation2]
      %v1101 = vld [vmem:[%s1100] ss:$2 sm:$0xff]
      %v1102 = vpack.c.bf16 %v1089, %v1087
      %v1103 = vpack.c.bf16 %v1093, %v1091
      %v1104 = vpack.c.bf16 %v1097, %v1095
      %v1105 = vpack.c.bf16 %v1101, %v1099
      %s1106 = scalar_lea.vmem %s3, 16
      %v1107 = vld [vmem:[%s1106] sm:$0x3]
      %v1109 = vsel %vm297, %v1102, 0
      %v1112 = vsel %vm297, %v1103, 0
      %v1115 = vsel %vm297, %v1104, 0
      %v1118 = vsel %vm297, %v1105, 0
      %v1121 = vsel %vm566, %v1107, 0
      %1123 = vmatpush.bf16.msra.mxu0 0
      %1124 = vmatpush.bf16.msra.mxu0 0
      %1125 = vmatpush.bf16.msra.mxu0 0
      %1126 = vmatpush.bf16.msra.mxu0 0
      %1127 = vmatpush.bf16.msra.mxu0 0
      %1128 = vmatpush.bf16.msra.mxu0 0
      %1129 = vmatpush.bf16.msra.mxu0 0
      %1130 = vmatpush.bf16.msra.mxu0 %v1121
      %1131 = vmatmul.bf16.gmra.mxu0 %v1109
      %v1132 = vpop.f32.mrf.mxu0
      %v1133 = vadd.f32 0.0, %v1132
      %v1134 = vpop.f32.mrf.mxu0
      %v1135 = vadd.f32 0.0, %v1134
      %1136 = vmatmul.bf16.gmra.mxu0 %v1112
      %v1137 = vpop.f32.mrf.mxu0
      %v1138 = vadd.f32 0.0, %v1137
      %v1139 = vpop.f32.mrf.mxu0
      %v1140 = vadd.f32 0.0, %v1139
      %1141 = vmatmul.bf16.gmra.mxu0 %v1115
      %v1142 = vpop.f32.mrf.mxu0
      %v1143 = vadd.f32 0.0, %v1142
      %v1144 = vpop.f32.mrf.mxu0
      %v1145 = vadd.f32 0.0, %v1144
      %1146 = vmatmul.bf16.gmra.mxu0 %v1118
      %v1147 = vpop.f32.mrf.mxu0
      %v1148 = vadd.f32 0.0, %v1147
      %v1149 = vpop.f32.mrf.mxu0
      %v1150 = vadd.f32 0.0, %v1149
      %1151 = vdwg.mxu0
      %v1152 = vadd.f32 %v1078, %v1133
      %v1153 = vadd.f32 %v1079, %v1135
      %v1154 = vadd.f32 %v1080, %v1138
      %v1155 = vadd.f32 %v1081, %v1140
      %v1156 = vadd.f32 %v1082, %v1143
      %v1157 = vadd.f32 %v1083, %v1145
      %v1158 = vadd.f32 %v1084, %v1148
      %v1159 = vadd.f32 %v1085, %v1150
      %v1160 = vld [vmem:[%s4] sm:$0x1]
      %v1162 = vperm.slane %v1160, 0
      %v1164 = vadd.f32 %v1152, %v1162
      %v1165 = vadd.f32 %v1153, %v1162
      %v1166 = vadd.f32 %v1154, %v1162
      %v1167 = vadd.f32 %v1155, %v1162
      %v1168 = vadd.f32 %v1156, %v1162
      %v1169 = vadd.f32 %v1157, %v1162
      %v1170 = vadd.f32 %v1158, %v1162
      %v1171 = vadd.f32 %v1159, %v1162
      %v1172 = vpack.c.bf16 %v1164, %v1164
      %v1173 = vpack.c.bf16 %v1165, %v1165
      %v1174 = vpack.c.bf16 %v1166, %v1166
      %v1175 = vpack.c.bf16 %v1167, %v1167
      %v1176 = vpack.c.bf16 %v1168, %v1168
      %v1177 = vpack.c.bf16 %v1169, %v1169
      %v1178 = vpack.c.bf16 %v1170, %v1170
      %v1179 = vpack.c.bf16 %v1171, %v1171
      %vm1180 = vcmask 60416
      %1181 = vst.msk [vmem:[%s289] sm:$0xf] %vm1180, %v1172
      %1182 = vst.msk [vmem:[%s289 + $0x4] sm:$0xf] %vm1180, %v1173
      %1183 = vst.msk [vmem:[%s289 + $0x8] sm:$0xf] %vm1180, %v1174
      %1184 = vst.msk [vmem:[%s289 + $0xc] sm:$0xf] %vm1180, %v1175
      %1185 = vst.msk [vmem:[%s289 + $0x10] sm:$0xf] %vm1180, %v1176
      %1186 = vst.msk [vmem:[%s289 + $0x14] sm:$0xf] %vm1180, %v1177
      %1187 = vst.msk [vmem:[%s289 + $0x18] sm:$0xf] %vm1180, %v1178
      %1188 = vst.msk [vmem:[%s289 + $0x1c] sm:$0xf] %vm1180, %v1179
      %vm1189 = vcmask 64512
      %v1190 = vsel %vm1189, %v1164, 0.0
      %v1191 = vsel %vm1189, %v1165, 0.0
      %v1192 = vadd.f32 %v1190, %v1191
      %v1193 = vsel %vm1189, %v1166, 0.0
      %v1194 = vadd.f32 %v1192, %v1193
      %v1195 = vsel %vm1189, %v1167, 0.0
      %v1196 = vadd.f32 %v1194, %v1195
      %v1197 = vsel %vm1189, %v1168, 0.0
      %v1198 = vadd.f32 %v1196, %v1197
      %v1199 = vsel %vm1189, %v1169, 0.0
      %v1200 = vadd.f32 %v1198, %v1199
      %v1201 = vsel %vm1189, %v1170, 0.0
      %v1202 = vadd.f32 %v1200, %v1201
      %v1203 = vsel %vm1189, %v1171, 0.0
      %v1204 = vadd.f32 %v1202, %v1203
      %v1205 = vrot.slane %v1204, 4
      %v1206 = vadd.f32 %v1204, %v1205
      %v1207 = vrot.slane %v1206, 2
      %v1208 = vadd.f32 %v1206, %v1207
      %v1209 = vrot.slane %v1208, 1
      %v1210 = vadd.f32 %v1208, %v1209
      %vm1211 = vcmask 57344
      %1212 = vst.msk [vmem:[%s292] sm:$0x1] %vm1211, %v1210
      %v1213 = vmul.f32 %v1164, %v1164
      %v1214 = vmul.f32 %v1165, %v1165
      %v1215 = vmul.f32 %v1166, %v1166
      %v1216 = vmul.f32 %v1167, %v1167
      %v1217 = vmul.f32 %v1168, %v1168
      %v1218 = vmul.f32 %v1169, %v1169
      %v1219 = vmul.f32 %v1170, %v1170
      %v1220 = vmul.f32 %v1171, %v1171
      %v1221 = vsel %vm1189, %v1213, 0.0
      %v1222 = vsel %vm1189, %v1214, 0.0
      %v1223 = vadd.f32 %v1221, %v1222
      %v1224 = vsel %vm1189, %v1215, 0.0
      %v1225 = vadd.f32 %v1223, %v1224
      %v1226 = vsel %vm1189, %v1216, 0.0
      %v1227 = vadd.f32 %v1225, %v1226
      %v1228 = vsel %vm1189, %v1217, 0.0
      %v1229 = vadd.f32 %v1227, %v1228
      %v1230 = vsel %vm1189, %v1218, 0.0
      %v1231 = vadd.f32 %v1229, %v1230
      %v1232 = vsel %vm1189, %v1219, 0.0
      %v1233 = vadd.f32 %v1231, %v1232
      %v1234 = vsel %vm1189, %v1220, 0.0
      %v1235 = vadd.f32 %v1233, %v1234
      %v1236 = vrot.slane %v1235, 4
      %v1237 = vadd.f32 %v1235, %v1236
      %v1238 = vrot.slane %v1237, 2
      %v1239 = vadd.f32 %v1237, %v1238
      %v1240 = vrot.slane %v1239, 1
      %v1241 = vadd.f32 %v1239, %v1240
      %1242 = vst.msk [vmem:[%s295] sm:$0x1] %vm1211, %v1241
      %p1243 = scmp.lt.s32.totalorder %s19, 1
      %s1244 = scalar_select %p1243, %s19, 1
      %s1245 = smul.addr %s1244, 8
      %s1246 = smul.addr %s1245, 4
      %s1247 = scalar_lea.vmem %s5, %s1246
      %p1248 = scmp.lt.s32.totalorder %s19, 1
      %s1249 = scalar_select %p1248, %s19, 1
      %s1250 = scalar_lea.vmem %s6, %s1249
      %p1251 = scmp.lt.s32.totalorder %s19, 1
      %s1252 = scalar_select %p1251, %s19, 1
      %s1253 = scalar_lea.vmem %s7, %s1252
      // Predicated region
      $region41: #{downsample_forward.4} parent=39 // pred_check
        %p1254 = pneg %p147
      $region42: #{downsample_forward.4} parent=39 // pred_check_branch
        %1256 = sbr.rel (%p1254) target = $region44
      $region43: #{downsample_forward.4} parent=39 // pred_region
        _
      $region44: #{downsample_forward.4} parent=39 // pred_fallthru
        _
      // Predicated region
      $region45: #{downsample_forward.4} parent=39 // pred_check
        %p1257 = pneg %p173
      $region46: #{downsample_forward.4} parent=39 // pred_check_branch
        %1259 = sbr.rel (%p1257) target = $region48
      $region47: #{downsample_forward.4} parent=39 // pred_region
        _
      $region48: #{downsample_forward.4} parent=39 // pred_fallthru
        _
      // Predicated region
      $region49: #{downsample_forward.4} parent=39 // pred_check
        %p1260 = pneg %p199
      $region50: #{downsample_forward.4} parent=39 // pred_check_branch
        %1262 = sbr.rel (%p1260) target = $region52
      $region51: #{downsample_forward.4} parent=39 // pred_region
        _
      $region52: #{downsample_forward.4} parent=39 // pred_fallthru
        _
    $region40: #{downsample_forward.4} parent=5 // pred_fallthru
      _
    %p1263 = scmp.le.s32.totalorder 2, %s14
    // Predicated region
    $region53: #{downsample_forward.4} parent=5 // pred_check
      %p1264 = pneg %p1263
    $region54: #{downsample_forward.4} parent=5 // pred_check_branch
      %1266 = sbr.rel (%p1264) target = $region56
    $region55: #{downsample_forward.4} parent=5 // pred_region
      %s1267 = ssub.s32 %s14, 2
      // Predicated region
      $region57: #{downsample_forward.4} parent=55 // pred_check
        %p1268 = pneg %p153
      $region58: #{downsample_forward.4} parent=55 // pred_check_branch
        %1270 = sbr.rel (%p1268) target = $region60
      $region59: #{downsample_forward.4} parent=55 // pred_region
        %p1271 = scmp.lt.s32.totalorder %s20, 1
        %s1272 = scalar_select %p1271, %s20, 1
        %s1273 = smul.addr %s1272, 8
        %s1274 = smul.addr %s1273, 4
        %s1275 = scalar_lea.vmem %s5, %s1274
      $region60: #{downsample_forward.4} parent=55 // pred_fallthru
        _
      // Predicated region
      $region61: #{downsample_forward.4} parent=55 // pred_check
        %p1276 = pneg %p179
      $region62: #{downsample_forward.4} parent=55 // pred_check_branch
        %1278 = sbr.rel (%p1276) target = $region64
      $region63: #{downsample_forward.4} parent=55 // pred_region
        %p1279 = scmp.lt.s32.totalorder %s20, 1
        %s1280 = scalar_select %p1279, %s20, 1
        %s1281 = scalar_lea.vmem %s6, %s1280
      $region64: #{downsample_forward.4} parent=55 // pred_fallthru
        _
      // Predicated region
      $region65: #{downsample_forward.4} parent=55 // pred_check
        %p1282 = pneg %p205
      $region66: #{downsample_forward.4} parent=55 // pred_check_branch
        %1284 = sbr.rel (%p1282) target = $region68
      $region67: #{downsample_forward.4} parent=55 // pred_region
        %p1285 = scmp.lt.s32.totalorder %s20, 1
        %s1286 = scalar_select %p1285, %s20, 1
        %s1287 = scalar_lea.vmem %s7, %s1286
      $region68: #{downsample_forward.4} parent=55 // pred_fallthru
        _
    $region56: #{downsample_forward.4} parent=5 // pred_fallthru
      _
  $region6: #{downsample_forward.4} parent=0 // loop_footer
    %s18 = sadd.s32 1, %s14
  $region7: #{downsample_forward.4} parent=0 // loop_footer_branch
    %13 = sbr.rel target = $region3
  $region8: #{downsample_forward.4} parent=0 // loop_exit
    _

// kernel: downsample_forward.3
$region0: #{downsample_forward.3}
  #allocation0 [shape = 'u32[]', space=smem, size = 0x4, offset = 0x4, fixed_abs, tag = 'smem constant byte address 0x4 - core index']
  #allocation1 [shape = 'u32[72,128]{1,0:T(1,128)}', space=vmem, size = 0x9000, scoped, tag = 'internal scratch']
  #allocation2 [shape = 'f32[18,18,4]{2,1,0:T(8,128)}', space=vmem, size = 0x36000, scoped, tag = 'scratch operand']
  %s0 = inlined_call_operand.vmem [shape: f32[2,16,16,4], index: 0, kind: input, shape index: {}]
  %s1 = inlined_call_operand.vmem [shape: bf16[9,4,4], index: 1, kind: input, shape index: {}]
  %s2 = inlined_call_operand.vmem [shape: f32[1,4], index: 2, kind: input, shape index: {}]
  %s3 = inlined_call_operand.vmem [shape: bf16[2,16,16,4], index: 3, kind: output, shape index: {0}]
  %s4 = inlined_call_operand.vmem [shape: f32[2,1,4], index: 4, kind: output, shape index: {1}]
  %s5 = inlined_call_operand.vmem [shape: f32[2,1,4], index: 5, kind: output, shape index: {2}]
  %6 = xla_tuple %s3, %s4, %s5
  %s7 = sld [smem:[#allocation0]]
  $region61: #{downsample_forward.3} parent=0
    _
  %s9 = ssub.s32 1, %s7
  %s10 = scalar_select 0, %s9, %s7
  loop: start=0, step=1, limit=4
  $region2: #{downsample_forward.3} parent=0 // loop_pre_header
    _
  $region3: #{downsample_forward.3} parent=0 // loop_header
    %s12 = sphi 0, %s16
    %p13 = scmp.ge.s32.totalorder %s12, 4
    %s22 = sphi 0, %s24
    %s25 = sphi 0, %s22
    %s26 = sphi 0, %s25
    %s42 = sphi 0, %s26
    %s46 = sphi 0, %s46
    %s48 = sphi 0, %s46
    %s49 = sphi 0, %s48
    %s63 = sphi 0, %s49
    %s67 = sphi 0, %s67
    %s69 = sphi 0, %s67
    %s70 = sphi 0, %s69
    %s84 = sphi 0, %s70
    %s90 = sphi 0, %s92
    %s93 = sphi 0, %s90
    %s94 = sphi 0, %s93
    %s110 = sphi 0, %s94
    %s116 = sphi 0, %s118
    %s119 = sphi 0, %s116
    %s120 = sphi 0, %s119
    %s136 = sphi 0, %s120
    %s142 = sphi 0, %s144
    %s145 = sphi 0, %s142
    %s146 = sphi 0, %s145
    %s162 = sphi 0, %s146
  $region4: #{downsample_forward.3} parent=0 // loop_header_branch
    %15 = sbr.rel (%p13) target = $region8
  $region5: #{downsample_forward.3} parent=0 // loop_body
    %s17 = ssub.s32 %s12, 1
    %s18 = ssub.s32 %s12, 2
    %s19 = sadd.s32 %s12, 1
    %s20 = ssub.s32 %s12, %s19
    %p21 = scmp.eq.s32.totalorder %s20, 0
    %s23 = sadd.s32 %s22, 1
    %s24 = scalar_select %p21, %s22, %s23
    %p27 = pneg %p21
    %p28 = scmp.eq.s32.totalorder %s12, 1
    %p29 = por %p27, %p28
    %p30 = scmp.ne.s32.totalorder %s22, %s25
    %p31 = scmp.eq.s32.totalorder %s12, 0
    %p32 = por %p30, %p31
    %p33 = scmp.ne.s32.totalorder %s22, %s25
    %p34 = scmp.eq.s32.totalorder %s17, 1
    %p35 = por %p33, %p34
    %p36 = scmp.ne.s32.totalorder %s25, %s26
    %p37 = scmp.eq.s32.totalorder %s17, 0
    %p38 = por %p36, %p37
    %p39 = scmp.ne.s32.totalorder %s25, %s26
    %p40 = scmp.eq.s32.totalorder %s18, 1
    %p41 = por %p39, %p40
    %p43 = scmp.ne.s32.totalorder %s26, %s42
    %p44 = scmp.eq.s32.totalorder %s18, 0
    %p45 = por %p43, %p44
    %s47 = sadd.s32 %s46, 1
    %p50 = scmp.eq.s32.totalorder %s12, 1
    %p51 = scmp.ne.s32.totalorder %s46, %s48
    %p52 = scmp.eq.s32.totalorder %s12, 0
    %p53 = por %p51, %p52
    %p54 = scmp.ne.s32.totalorder %s46, %s48
    %p55 = scmp.eq.s32.totalorder %s17, 1
    %p56 = por %p54, %p55
    %p57 = scmp.ne.s32.totalorder %s48, %s49
    %p58 = scmp.eq.s32.totalorder %s17, 0
    %p59 = por %p57, %p58
    %p60 = scmp.ne.s32.totalorder %s48, %s49
    %p61 = scmp.eq.s32.totalorder %s18, 1
    %p62 = por %p60, %p61
    %p64 = scmp.ne.s32.totalorder %s49, %s63
    %p65 = scmp.eq.s32.totalorder %s18, 0
    %p66 = por %p64, %p65
    %s68 = sadd.s32 %s67, 1
    %p71 = scmp.eq.s32.totalorder %s12, 1
    %p72 = scmp.ne.s32.totalorder %s67, %s69
    %p73 = scmp.eq.s32.totalorder %s12, 0
    %p74 = por %p72, %p73
    %p75 = scmp.ne.s32.totalorder %s67, %s69
    %p76 = scmp.eq.s32.totalorder %s17, 1
    %p77 = por %p75, %p76
    %p78 = scmp.ne.s32.totalorder %s69, %s70
    %p79 = scmp.eq.s32.totalorder %s17, 0
    %p80 = por %p78, %p79
    %p81 = scmp.ne.s32.totalorder %s69, %s70
    %p82 = scmp.eq.s32.totalorder %s18, 1
    %p83 = por %p81, %p82
    %p85 = scmp.ne.s32.totalorder %s70, %s84
    %p86 = scmp.eq.s32.totalorder %s18, 0
    %p87 = por %p85, %p86
    %s88 = ssub.s32 %s12, %s19
    %p89 = scmp.eq.s32.totalorder %s88, 0
    %s91 = sadd.s32 %s90, 1
    %s92 = scalar_select %p89, %s90, %s91
    %p95 = pneg %p89
    %p96 = scmp.eq.s32.totalorder %s12, 1
    %p97 = por %p95, %p96
    %p98 = scmp.ne.s32.totalorder %s90, %s93
    %p99 = scmp.eq.s32.totalorder %s12, 0
    %p100 = por %p98, %p99
    %p101 = scmp.ne.s32.totalorder %s90, %s93
    %p102 = scmp.eq.s32.totalorder %s17, 1
    %p103 = por %p101, %p102
    %p104 = scmp.ne.s32.totalorder %s93, %s94
    %p105 = scmp.eq.s32.totalorder %s17, 0
    %p106 = por %p104, %p105
    %p107 = scmp.ne.s32.totalorder %s93, %s94
    %p108 = scmp.eq.s32.totalorder %s18, 1
    %p109 = por %p107, %p108
    %p111 = scmp.ne.s32.totalorder %s94, %s110
    %p112 = scmp.eq.s32.totalorder %s18, 0
    %p113 = por %p111, %p112
    %s114 = ssub.s32 %s12, %s19
    %p115 = scmp.eq.s32.totalorder %s114, 0
    %s117 = sadd.s32 %s116, 1
    %s118 = scalar_select %p115, %s116, %s117
    %p121 = pneg %p115
    %p122 = scmp.eq.s32.totalorder %s12, 1
    %p123 = por %p121, %p122
    %p124 = scmp.ne.s32.totalorder %s116, %s119
    %p125 = scmp.eq.s32.totalorder %s12, 0
    %p126 = por %p124, %p125
    %p127 = scmp.ne.s32.totalorder %s116, %s119
    %p128 = scmp.eq.s32.totalorder %s17, 1
    %p129 = por %p127, %p128
    %p130 = scmp.ne.s32.totalorder %s119, %s120
    %p131 = scmp.eq.s32.totalorder %s17, 0
    %p132 = por %p130, %p131
    %p133 = scmp.ne.s32.totalorder %s119, %s120
    %p134 = scmp.eq.s32.totalorder %s18, 1
    %p135 = por %p133, %p134
    %p137 = scmp.ne.s32.totalorder %s120, %s136
    %p138 = scmp.eq.s32.totalorder %s18, 0
    %p139 = por %p137, %p138
    %s140 = ssub.s32 %s12, %s19
    %p141 = scmp.eq.s32.totalorder %s140, 0
    %s143 = sadd.s32 %s142, 1
    %s144 = scalar_select %p141, %s142, %s143
    %p147 = pneg %p141
    %p148 = scmp.eq.s32.totalorder %s12, 1
    %p149 = por %p147, %p148
    %p150 = scmp.ne.s32.totalorder %s142, %s145
    %p151 = scmp.eq.s32.totalorder %s12, 0
    %p152 = por %p150, %p151
    %p153 = scmp.ne.s32.totalorder %s142, %s145
    %p154 = scmp.eq.s32.totalorder %s17, 1
    %p155 = por %p153, %p154
    %p156 = scmp.ne.s32.totalorder %s145, %s146
    %p157 = scmp.eq.s32.totalorder %s17, 0
    %p158 = por %p156, %p157
    %p159 = scmp.ne.s32.totalorder %s145, %s146
    %p160 = scmp.eq.s32.totalorder %s18, 1
    %p161 = por %p159, %p160
    %p163 = scmp.ne.s32.totalorder %s146, %s162
    %p164 = scmp.eq.s32.totalorder %s18, 0
    %p165 = por %p163, %p164
    %p166 = scmp.le.s32.totalorder 1, %s12
    %p167 = scmp.lt.s32.totalorder %s12, 3
    %p168 = pnand %p166, %p167
    %p169 = pneg %p168
    // Predicated region
    $region9: #{downsample_forward.3} parent=5 // pred_check
      _
    $region10: #{downsample_forward.3} parent=5 // pred_check_branch
      %171 = sbr.rel (%p168) target = $region12
    $region11: #{downsample_forward.3} parent=5 // pred_region
      %s172 = ssub.s32 %s12, 1
      // Predicated region
      $region13: #{downsample_forward.3} parent=11 // pred_check
        %p173 = pneg %p59
      $region14: #{downsample_forward.3} parent=11 // pred_check_branch
        %175 = sbr.rel (%p173) target = $region16
      $region15: #{downsample_forward.3} parent=11 // pred_region
        _
      $region16: #{downsample_forward.3} parent=11 // pred_fallthru
        _
      // Predicated region
      $region17: #{downsample_forward.3} parent=11 // pred_check
        %p176 = pneg %p80
      $region18: #{downsample_forward.3} parent=11 // pred_check_branch
        %178 = sbr.rel (%p176) target = $region20
      $region19: #{downsample_forward.3} parent=11 // pred_region
        _
      $region20: #{downsample_forward.3} parent=11 // pred_fallthru
        _
    $region12: #{downsample_forward.3} parent=5 // pred_fallthru
      _
    %p179 = scmp.lt.s32.totalorder %s12, 2
    // Predicated region
    $region21: #{downsample_forward.3} parent=5 // pred_check
      %p180 = pneg %p179
    $region22: #{downsample_forward.3} parent=5 // pred_check_branch
      %182 = sbr.rel (%p180) target = $region24
    $region23: #{downsample_forward.3} parent=5 // pred_region
      // Predicated region
      $region25: #{downsample_forward.3} parent=23 // pred_check
        %p183 = pneg %p32
      $region26: #{downsample_forward.3} parent=23 // pred_check_branch
        %185 = sbr.rel (%p183) target = $region28
      $region27: #{downsample_forward.3} parent=23 // pred_region
        %p186 = scmp.lt.s32.totalorder %s12, 1
        %s187 = scalar_select %p186, %s12, 1
        %s188 = smul.addr %s187, 32
        %s189 = smul.addr %s188, 8
        %s190 = scalar_lea.vmem %s0, %s189
      $region28: #{downsample_forward.3} parent=23 // pred_fallthru
        _
    $region24: #{downsample_forward.3} parent=5 // pred_fallthru
      _
    %p191 = scmp.le.s32.totalorder 1, %s12
    %p192 = scmp.lt.s32.totalorder %s12, 3
    %p193 = pnand %p191, %p192
    %p194 = pneg %p193
    // Predicated region
    $region29: #{downsample_forward.3} parent=5 // pred_check
      _
    $region30: #{downsample_forward.3} parent=5 // pred_check_branch
      %196 = sbr.rel (%p193) target = $region32
    $region31: #{downsample_forward.3} parent=5 // pred_region
      %s197 = ssub.s32 %s12, 1
      %p198 = scmp.lt.s32.totalorder %s17, 1
      %s199 = scalar_select %p198, %s17, 1
      %s200 = smul.addr %s199, 32
      %s201 = smul.addr %s200, 8
      %s202 = scalar_lea.vmem %s0, %s201
      %p203 = pneg %p38
      %p204 = pneg %p35
      %p205 = pneg %p59
      %p206 = pneg %p56
      %p207 = pneg %p80
      %p208 = pneg %p77
      %p209 = pneg %p106
      %p210 = pneg %p103
      %p211 = scmp.lt.s32.totalorder %s17, 1
      %s212 = scalar_select %p211, %s17, 1
      %s213 = smul.addr %s212, 32
      %s214 = smul.addr %s213, 4
      %s215 = scalar_lea.vmem %s3, %s214
      %p216 = pneg %p132
      %p217 = pneg %p129
      %p218 = scmp.lt.s32.totalorder %s17, 1
      %s219 = scalar_select %p218, %s17, 1
      %s220 = scalar_lea.vmem %s4, %s219
      %p221 = pneg %p158
      %p222 = pneg %p155
      %p223 = scmp.lt.s32.totalorder %s17, 1
      %s224 = scalar_select %p223, %s17, 1
      %s225 = scalar_lea.vmem %s5, %s224
      %p226 = scmp.lt.s32.totalorder %s17, 1
      %s227 = scalar_select %p226, %s17, 1
      %s228 = smul.addr %s227, 32
      %s229 = smul.addr %s228, 8
      %s230 = scalar_lea.vmem %s0, %s229
      %p231 = scmp.lt.s32.totalorder %s17, 1
      %s232 = scalar_select %p231, %s17, 1
      %s233 = smul.addr %s232, 32
      %s234 = smul.addr %s233, 4
      %s235 = scalar_lea.vmem %s3, %s234
      %p236 = scmp.lt.s32.totalorder %s17, 1
      %s237 = scalar_select %p236, %s17, 1
      %s238 = scalar_lea.vmem %s4, %s237
      %p239 = scmp.lt.s32.totalorder %s17, 1
      %s240 = scalar_select %p239, %s17, 1
      %s241 = scalar_lea.vmem %s5, %s240
      %vm243 = vcmask 31744
      %244 = vst.msk [vmem:[#allocation2] sm:$0xff] %vm243, 0.0
      %245 = vst.msk [vmem:[#allocation2 + $0x8] sm:$0xff] %vm243, 0.0
      %vm246 = vcmask 25600
      %247 = vst.msk [vmem:[#allocation2 + $0x10] sm:$0x3] %vm246, 0.0
      %s248 = scalar_lea.vmem [#allocation2], 408
      %249 = vst.msk [vmem:[%s248] sm:$0xff] %vm243, 0.0
      %250 = vst.msk [vmem:[%s248 + $0x8] sm:$0xff] %vm243, 0.0
      %251 = vst.msk [vmem:[%s248 + $0x10] sm:$0x3] %vm246, 0.0
      %vm252 = vcmask 24576
      %253 = vst.msk [vmem:[#allocation2] sm:$0x1] %vm252, 0.0
      %254 = vst.msk [vmem:[#allocation2 + $0x18] sm:$0x1] %vm252, 0.0
      %255 = vst.msk [vmem:[#allocation2 + $0x30] sm:$0x1] %vm252, 0.0
      %256 = vst.msk [vmem:[#allocation2 + $0x48] sm:$0x1] %vm252, 0.0
      %257 = vst.msk [vmem:[#allocation2 + $0x60] sm:$0x1] %vm252, 0.0
      %258 = vst.msk [vmem:[#allocation2 + $0x78] sm:$0x1] %vm252, 0.0
      %259 = vst.msk [vmem:[#allocation2 + $0x90] sm:$0x1] %vm252, 0.0
      %260 = vst.msk [vmem:[#allocation2 + $0xa8] sm:$0x1] %vm252, 0.0
      %261 = vst.msk [vmem:[#allocation2 + $0xc0] sm:$0x1] %vm252, 0.0
      %262 = vst.msk [vmem:[#allocation2 + $0xd8] sm:$0x1] %vm252, 0.0
      %263 = vst.msk [vmem:[#allocation2 + $0xf0] sm:$0x1] %vm252, 0.0
      %264 = vst.msk [vmem:[#allocation2 + $0x108] sm:$0x1] %vm252, 0.0
      %265 = vst.msk [vmem:[#allocation2 + $0x120] sm:$0x1] %vm252, 0.0
      %266 = vst.msk [vmem:[#allocation2 + $0x138] sm:$0x1] %vm252, 0.0
      %267 = vst.msk [vmem:[#allocation2 + $0x150] sm:$0x1] %vm252, 0.0
      %268 = vst.msk [vmem:[#allocation2 + $0x168] sm:$0x1] %vm252, 0.0
      %269 = vst.msk [vmem:[#allocation2 + $0x180] sm:$0x1] %vm252, 0.0
      %270 = vst.msk [vmem:[#allocation2 + $0x198] sm:$0x1] %vm252, 0.0
      %271 = vst.msk [vmem:[#allocation2 + $0x11] sm:$0x1] %vm252, 0.0
      %272 = vst.msk [vmem:[#allocation2 + $0x29] sm:$0x1] %vm252, 0.0
      %273 = vst.msk [vmem:[#allocation2 + $0x41] sm:$0x1] %vm252, 0.0
      %274 = vst.msk [vmem:[#allocation2 + $0x59] sm:$0x1] %vm252, 0.0
      %275 = vst.msk [vmem:[#allocation2 + $0x71] sm:$0x1] %vm252, 0.0
      %276 = vst.msk [vmem:[#allocation2 + $0x89] sm:$0x1] %vm252, 0.0
      %277 = vst.msk [vmem:[#allocation2 + $0xa1] sm:$0x1] %vm252, 0.0
      %278 = vst.msk [vmem:[#allocation2 + $0xb9] sm:$0x1] %vm252, 0.0
      %279 = vst.msk [vmem:[#allocation2 + $0xd1] sm:$0x1] %vm252, 0.0
      %280 = vst.msk [vmem:[#allocation2 + $0xe9] sm:$0x1] %vm252, 0.0
      %281 = vst.msk [vmem:[#allocation2 + $0x101] sm:$0x1] %vm252, 0.0
      %282 = vst.msk [vmem:[#allocation2 + $0x119] sm:$0x1] %vm252, 0.0
      %283 = vst.msk [vmem:[#allocation2 + $0x131] sm:$0x1] %vm252, 0.0
      %284 = vst.msk [vmem:[#allocation2 + $0x149] sm:$0x1] %vm252, 0.0
      %285 = vst.msk [vmem:[#allocation2 + $0x161] sm:$0x1] %vm252, 0.0
      %286 = vst.msk [vmem:[#allocation2 + $0x179] sm:$0x1] %vm252, 0.0
      %287 = vst.msk [vmem:[#allocation2 + $0x191] sm:$0x1] %vm252, 0.0
      %288 = vst.msk [vmem:[#allocation2 + $0x1a9] sm:$0x1] %vm252, 0.0
      %v289 = vld [vmem:[%s230] sm:$0xff]
      %v290 = vld [vmem:[%s230 + $0x8] sm:$0xff]
      %v291 = vld [vmem:[%s230 + $0x10] sm:$0xff]
      %v292 = vld [vmem:[%s230 + $0x18] sm:$0xff]
      %v293 = vld [vmem:[%s230 + $0x20] sm:$0xff]
      %v294 = vld [vmem:[%s230 + $0x28] sm:$0xff]
      %v295 = vld [vmem:[%s230 + $0x30] sm:$0xff]
      %v296 = vld [vmem:[%s230 + $0x38] sm:$0xff]
      %v297 = vld [vmem:[%s230 + $0x40] sm:$0xff]
      %v298 = vld [vmem:[%s230 + $0x48] sm:$0xff]
      %v299 = vld [vmem:[%s230 + $0x50] sm:$0xff]
      %v300 = vld [vmem:[%s230 + $0x58] sm:$0xff]
      %v301 = vld [vmem:[%s230 + $0x60] sm:$0xff]
      %v302 = vld [vmem:[%s230 + $0x68] sm:$0xff]
      %v303 = vld [vmem:[%s230 + $0x70] sm:$0xff]
      %v304 = vld [vmem:[%s230 + $0x78] sm:$0xff]
      %v305 = vld [vmem:[%s230 + $0x80] sm:$0xff]
      %v306 = vld [vmem:[%s230 + $0x88] sm:$0xff]
      %v307 = vld [vmem:[%s230 + $0x90] sm:$0xff]
      %v308 = vld [vmem:[%s230 + $0x98] sm:$0xff]
      %v309 = vld [vmem:[%s230 + $0xa0] sm:$0xff]
      %v310 = vld [vmem:[%s230 + $0xa8] sm:$0xff]
      %v311 = vld [vmem:[%s230 + $0xb0] sm:$0xff]
      %v312 = vld [vmem:[%s230 + $0xb8] sm:$0xff]
      %v313 = vld [vmem:[%s230 + $0xc0] sm:$0xff]
      %v314 = vld [vmem:[%s230 + $0xc8] sm:$0xff]
      %v315 = vld [vmem:[%s230 + $0xd0] sm:$0xff]
      %v316 = vld [vmem:[%s230 + $0xd8] sm:$0xff]
      %v317 = vld [vmem:[%s230 + $0xe0] sm:$0xff]
      %v318 = vld [vmem:[%s230 + $0xe8] sm:$0xff]
      %v319 = vld [vmem:[%s230 + $0xf0] sm:$0xff]
      %v320 = vld [vmem:[%s230 + $0xf8] sm:$0xff]
      %s321 = scalar_lea.vmem [#allocation2], 24
      %322 = vst.msk [vmem:[%s321 + $0x1] sm:$0xff] %vm243, %v289
      %323 = vst.msk [vmem:[%s321 + $0x9] sm:$0xff] %vm243, %v290
      %324 = vst.msk [vmem:[%s321 + $0x19] sm:$0xff] %vm243, %v291
      %325 = vst.msk [vmem:[%s321 + $0x21] sm:$0xff] %vm243, %v292
      %326 = vst.msk [vmem:[%s321 + $0x31] sm:$0xff] %vm243, %v293
      %327 = vst.msk [vmem:[%s321 + $0x39] sm:$0xff] %vm243, %v294
      %328 = vst.msk [vmem:[%s321 + $0x49] sm:$0xff] %vm243, %v295
      %329 = vst.msk [vmem:[%s321 + $0x51] sm:$0xff] %vm243, %v296
      %330 = vst.msk [vmem:[%s321 + $0x61] sm:$0xff] %vm243, %v297
      %331 = vst.msk [vmem:[%s321 + $0x69] sm:$0xff] %vm243, %v298
      %332 = vst.msk [vmem:[%s321 + $0x79] sm:$0xff] %vm243, %v299
      %333 = vst.msk [vmem:[%s321 + $0x81] sm:$0xff] %vm243, %v300
      %334 = vst.msk [vmem:[%s321 + $0x91] sm:$0xff] %vm243, %v301
      %335 = vst.msk [vmem:[%s321 + $0x99] sm:$0xff] %vm243, %v302
      %336 = vst.msk [vmem:[%s321 + $0xa9] sm:$0xff] %vm243, %v303
      %337 = vst.msk [vmem:[%s321 + $0xb1] sm:$0xff] %vm243, %v304
      %338 = vst.msk [vmem:[%s321 + $0xc1] sm:$0xff] %vm243, %v305
      %339 = vst.msk [vmem:[%s321 + $0xc9] sm:$0xff] %vm243, %v306
      %340 = vst.msk [vmem:[%s321 + $0xd9] sm:$0xff] %vm243, %v307
      %341 = vst.msk [vmem:[%s321 + $0xe1] sm:$0xff] %vm243, %v308
      %342 = vst.msk [vmem:[%s321 + $0xf1] sm:$0xff] %vm243, %v309
      %343 = vst.msk [vmem:[%s321 + $0xf9] sm:$0xff] %vm243, %v310
      %344 = vst.msk [vmem:[%s321 + $0x109] sm:$0xff] %vm243, %v311
      %345 = vst.msk [vmem:[%s321 + $0x111] sm:$0xff] %vm243, %v312
      %346 = vst.msk [vmem:[%s321 + $0x121] sm:$0xff] %vm243, %v313
      %347 = vst.msk [vmem:[%s321 + $0x129] sm:$0xff] %vm243, %v314
      %348 = vst.msk [vmem:[%s321 + $0x139] sm:$0xff] %vm243, %v315
      %349 = vst.msk [vmem:[%s321 + $0x141] sm:$0xff] %vm243, %v316
      %350 = vst.msk [vmem:[%s321 + $0x151] sm:$0xff] %vm243, %v317
      %351 = vst.msk [vmem:[%s321 + $0x159] sm:$0xff] %vm243, %v318
      %352 = vst.msk [vmem:[%s321 + $0x169] sm:$0xff] %vm243, %v319
      %353 = vst.msk [vmem:[%s321 + $0x171] sm:$0xff] %vm243, %v320
      %v354 = vld [vmem:[#allocation2] sm:$0xff]
      %v355 = vld [vmem:[#allocation2 + $0x8] sm:$0xff]
      %v356 = vld [vmem:[#allocation2 + $0x18] sm:$0xff]
      %v357 = vld [vmem:[#allocation2 + $0x20] sm:$0xff]
      %v358 = vld [vmem:[#allocation2 + $0x30] sm:$0xff]
      %v359 = vld [vmem:[#allocation2 + $0x38] sm:$0xff]
      %v360 = vld [vmem:[#allocation2 + $0x48] sm:$0xff]
      %v361 = vld [vmem:[#allocation2 + $0x50] sm:$0xff]
      %v362 = vld [vmem:[#allocation2 + $0x60] sm:$0xff]
      %v363 = vld [vmem:[#allocation2 + $0x68] sm:$0xff]
      %v364 = vld [vmem:[#allocation2 + $0x78] sm:$0xff]
      %v365 = vld [vmem:[#allocation2 + $0x80] sm:$0xff]
      %v366 = vld [vmem:[#allocation2 + $0x90] sm:$0xff]
      %v367 = vld [vmem:[#allocation2 + $0x98] sm:$0xff]
      %v368 = vld [vmem:[#allocation2 + $0xa8] sm:$0xff]
      %v369 = vld [vmem:[#allocation2 + $0xb0] sm:$0xff]
      %v370 = vld [vmem:[#allocation2 + $0xc0] sm:$0xff]
      %v371 = vld [vmem:[#allocation2 + $0xc8] sm:$0xff]
      %v372 = vld [vmem:[#allocation2 + $0xd8] sm:$0xff]
      %v373 = vld [vmem:[#allocation2 + $0xe0] sm:$0xff]
      %v374 = vld [vmem:[#allocation2 + $0xf0] sm:$0xff]
      %v375 = vld [vmem:[#allocation2 + $0xf8] sm:$0xff]
      %v376 = vld [vmem:[#allocation2 + $0x108] sm:$0xff]
      %v377 = vld [vmem:[#allocation2 + $0x110] sm:$0xff]
      %v378 = vld [vmem:[#allocation2 + $0x120] sm:$0xff]
      %v379 = vld [vmem:[#allocation2 + $0x128] sm:$0xff]
      %v380 = vld [vmem:[#allocation2 + $0x138] sm:$0xff]
      %v381 = vld [vmem:[#allocation2 + $0x140] sm:$0xff]
      %v382 = vld [vmem:[#allocation2 + $0x150] sm:$0xff]
      %v383 = vld [vmem:[#allocation2 + $0x158] sm:$0xff]
      %v384 = vld [vmem:[#allocation2 + $0x168] sm:$0xff]
      %v385 = vld [vmem:[#allocation2 + $0x170] sm:$0xff]
      %v386 = vpack.c.bf16 %v355, %v354
      %v387 = vpack.c.bf16 %v357, %v356
      %v388 = vpack.c.bf16 %v359, %v358
      %v389 = vpack.c.bf16 %v361, %v360
      %v390 = vpack.c.bf16 %v363, %v362
      %v391 = vpack.c.bf16 %v365, %v364
      %v392 = vpack.c.bf16 %v367, %v366
      %v393 = vpack.c.bf16 %v369, %v368
      %v394 = vpack.c.bf16 %v371, %v370
      %v395 = vpack.c.bf16 %v373, %v372
      %v396 = vpack.c.bf16 %v375, %v374
      %v397 = vpack.c.bf16 %v377, %v376
      %v398 = vpack.c.bf16 %v379, %v378
      %v399 = vpack.c.bf16 %v381, %v380
      %v400 = vpack.c.bf16 %v383, %v382
      %v401 = vpack.c.bf16 %v385, %v384
      %v402 = vld [vmem:[%s1] sm:$0x3]
      %v403 = vld [vmem:[#allocation2 + $0x1] sm:$0xff]
      %v404 = vld [vmem:[#allocation2 + $0x9] sm:$0xff]
      %v405 = vld [vmem:[#allocation2 + $0x19] sm:$0xff]
      %v406 = vld [vmem:[#allocation2 + $0x21] sm:$0xff]
      %v407 = vld [vmem:[#allocation2 + $0x31] sm:$0xff]
      %v408 = vld [vmem:[#allocation2 + $0x39] sm:$0xff]
      %v409 = vld [vmem:[#allocation2 + $0x49] sm:$0xff]
      %v410 = vld [vmem:[#allocation2 + $0x51] sm:$0xff]
      %v411 = vld [vmem:[#allocation2 + $0x61] sm:$0xff]
      %v412 = vld [vmem:[#allocation2 + $0x69] sm:$0xff]
      %v413 = vld [vmem:[#allocation2 + $0x79] sm:$0xff]
      %v414 = vld [vmem:[#allocation2 + $0x81] sm:$0xff]
      %v415 = vld [vmem:[#allocation2 + $0x91] sm:$0xff]
      %v416 = vld [vmem:[#allocation2 + $0x99] sm:$0xff]
      %v417 = vld [vmem:[#allocation2 + $0xa9] sm:$0xff]
      %v418 = vld [vmem:[#allocation2 + $0xb1] sm:$0xff]
      %v419 = vld [vmem:[#allocation2 + $0xc1] sm:$0xff]
      %v420 = vld [vmem:[#allocation2 + $0xc9] sm:$0xff]
      %v421 = vld [vmem:[#allocation2 + $0xd9] sm:$0xff]
      %v422 = vld [vmem:[#allocation2 + $0xe1] sm:$0xff]
      %v423 = vld [vmem:[#allocation2 + $0xf1] sm:$0xff]
      %v424 = vld [vmem:[#allocation2 + $0xf9] sm:$0xff]
      %v425 = vld [vmem:[#allocation2 + $0x109] sm:$0xff]
      %v426 = vld [vmem:[#allocation2 + $0x111] sm:$0xff]
      %v427 = vld [vmem:[#allocation2 + $0x121] sm:$0xff]
      %v428 = vld [vmem:[#allocation2 + $0x129] sm:$0xff]
      %v429 = vld [vmem:[#allocation2 + $0x139] sm:$0xff]
      %v430 = vld [vmem:[#allocation2 + $0x141] sm:$0xff]
      %v431 = vld [vmem:[#allocation2 + $0x151] sm:$0xff]
      %v432 = vld [vmem:[#allocation2 + $0x159] sm:$0xff]
      %v433 = vld [vmem:[#allocation2 + $0x169] sm:$0xff]
      %v434 = vld [vmem:[#allocation2 + $0x171] sm:$0xff]
      %v435 = vpack.c.bf16 %v404, %v403
      %v436 = vpack.c.bf16 %v406, %v405
      %v437 = vpack.c.bf16 %v408, %v407
      %v438 = vpack.c.bf16 %v410, %v409
      %v439 = vpack.c.bf16 %v412, %v411
      %v440 = vpack.c.bf16 %v414, %v413
      %v441 = vpack.c.bf16 %v416, %v415
      %v442 = vpack.c.bf16 %v418, %v417
      %v443 = vpack.c.bf16 %v420, %v419
      %v444 = vpack.c.bf16 %v422, %v421
      %v445 = vpack.c.bf16 %v424, %v423
      %v446 = vpack.c.bf16 %v426, %v425
      %v447 = vpack.c.bf16 %v428, %v427
      %v448 = vpack.c.bf16 %v430, %v429
      %v449 = vpack.c.bf16 %v432, %v431
      %v450 = vpack.c.bf16 %v434, %v433
      %s451 = scalar_lea.vmem %s1, 2
      %v452 = vld [vmem:[%s451] sm:$0x3]
      %v454 = vsel %vm243, %v435, 0
      %v457 = vsel %vm243, %v436, 0
      %v460 = vsel %vm243, %v437, 0
      %v463 = vsel %vm243, %v438, 0
      %v466 = vsel %vm243, %v439, 0
      %v469 = vsel %vm243, %v440, 0
      %v472 = vsel %vm243, %v441, 0
      %v475 = vsel %vm243, %v442, 0
      %v478 = vsel %vm243, %v443, 0
      %v481 = vsel %vm243, %v444, 0
      %v484 = vsel %vm243, %v445, 0
      %v487 = vsel %vm243, %v446, 0
      %v490 = vsel %vm243, %v447, 0
      %v493 = vsel %vm243, %v448, 0
      %v496 = vsel %vm243, %v449, 0
      %v499 = vsel %vm243, %v450, 0
      %vm501 = vcmask 1041408
      %v503 = vsel %vm501, %v452, 0
      %505 = vmatpush.bf16.msra.mxu0 0
      %506 = vmatpush.bf16.msra.mxu0 0
      %507 = vmatpush.bf16.msra.mxu0 0
      %508 = vmatpush.bf16.msra.mxu0 0
      %509 = vmatpush.bf16.msra.mxu0 0
      %510 = vmatpush.bf16.msra.mxu0 0
      %511 = vmatpush.bf16.msra.mxu0 0
      %512 = vmatpush.bf16.msra.mxu0 %v503
      %513 = vmatmul.bf16.gmra.mxu0 %v454
      %v514 = vpop.f32.mrf.mxu0
      %v515 = vadd.f32 0.0, %v514
      %v516 = vpop.f32.mrf.mxu0
      %v517 = vadd.f32 0.0, %v516
      %518 = vmatmul.bf16.gmra.mxu0 %v457
      %v519 = vpop.f32.mrf.mxu0
      %v520 = vadd.f32 0.0, %v519
      %v521 = vpop.f32.mrf.mxu0
      %v522 = vadd.f32 0.0, %v521
      %523 = vmatmul.bf16.gmra.mxu0 %v460
      %v524 = vpop.f32.mrf.mxu0
      %v525 = vadd.f32 0.0, %v524
      %v526 = vpop.f32.mrf.mxu0
      %v527 = vadd.f32 0.0, %v526
      %528 = vmatmul.bf16.gmra.mxu0 %v463
      %v529 = vpop.f32.mrf.mxu0
      %v530 = vadd.f32 0.0, %v529
      %v531 = vpop.f32.mrf.mxu0
      %v532 = vadd.f32 0.0, %v531
      %533 = vmatmul.bf16.gmra.mxu0 %v466
      %v534 = vpop.f32.mrf.mxu0
      %v535 = vadd.f32 0.0, %v534
      %v536 = vpop.f32.mrf.mxu0
      %v537 = vadd.f32 0.0, %v536
      %538 = vmatmul.bf16.gmra.mxu0 %v469
      %v539 = vpop.f32.mrf.mxu0
      %v540 = vadd.f32 0.0, %v539
      %v541 = vpop.f32.mrf.mxu0
      %v542 = vadd.f32 0.0, %v541
      %543 = vmatmul.bf16.gmra.mxu0 %v472
      %v544 = vpop.f32.mrf.mxu0
      %v545 = vadd.f32 0.0, %v544
      %v546 = vpop.f32.mrf.mxu0
      %v547 = vadd.f32 0.0, %v546
      %548 = vmatmul.bf16.gmra.mxu0 %v475
      %v549 = vpop.f32.mrf.mxu0
      %v550 = vadd.f32 0.0, %v549
      %v551 = vpop.f32.mrf.mxu0
      %v552 = vadd.f32 0.0, %v551
      %553 = vmatmul.bf16.gmra.mxu0 %v478
      %v554 = vpop.f32.mrf.mxu0
      %v555 = vadd.f32 0.0, %v554
      %v556 = vpop.f32.mrf.mxu0
      %v557 = vadd.f32 0.0, %v556
      %558 = vmatmul.bf16.gmra.mxu0 %v481
      %v559 = vpop.f32.mrf.mxu0
      %v560 = vadd.f32 0.0, %v559
      %v561 = vpop.f32.mrf.mxu0
      %v562 = vadd.f32 0.0, %v561
      %563 = vmatmul.bf16.gmra.mxu0 %v484
      %v564 = vpop.f32.mrf.mxu0
      %v565 = vadd.f32 0.0, %v564
      %v566 = vpop.f32.mrf.mxu0
      %v567 = vadd.f32 0.0, %v566
      %568 = vmatmul.bf16.gmra.mxu0 %v487
      %v569 = vpop.f32.mrf.mxu0
      %v570 = vadd.f32 0.0, %v569
      %v571 = vpop.f32.mrf.mxu0
      %v572 = vadd.f32 0.0, %v571
      %573 = vmatmul.bf16.gmra.mxu0 %v490
      %v574 = vpop.f32.mrf.mxu0
      %v575 = vadd.f32 0.0, %v574
      %v576 = vpop.f32.mrf.mxu0
      %v577 = vadd.f32 0.0, %v576
      %578 = vmatmul.bf16.gmra.mxu0 %v493
      %v579 = vpop.f32.mrf.mxu0
      %v580 = vadd.f32 0.0, %v579
      %v581 = vpop.f32.mrf.mxu0
      %v582 = vadd.f32 0.0, %v581
      %583 = vmatmul.bf16.gmra.mxu0 %v496
      %v584 = vpop.f32.mrf.mxu0
      %v585 = vadd.f32 0.0, %v584
      %v586 = vpop.f32.mrf.mxu0
      %v587 = vadd.f32 0.0, %v586
      %588 = vmatmul.bf16.gmra.mxu0 %v499
      %v589 = vpop.f32.mrf.mxu0
      %v590 = vadd.f32 0.0, %v589
      %v591 = vpop.f32.mrf.mxu0
      %v592 = vadd.f32 0.0, %v591
      %593 = vdwg.mxu0
      %v595 = vsel %vm243, %v386, 0
      %v598 = vsel %vm243, %v387, 0
      %v601 = vsel %vm243, %v388, 0
      %v604 = vsel %vm243, %v389, 0
      %v607 = vsel %vm243, %v390, 0
      %v610 = vsel %vm243, %v391, 0
      %v613 = vsel %vm243, %v392, 0
      %v616 = vsel %vm243, %v393, 0
      %v619 = vsel %vm243, %v394, 0
      %v622 = vsel %vm243, %v395, 0
      %v625 = vsel %vm243, %v396, 0
      %v628 = vsel %vm243, %v397, 0
      %v631 = vsel %vm243, %v398, 0
      %v634 = vsel %vm243, %v399, 0
      %v637 = vsel %vm243, %v400, 0
      %v640 = vsel %vm243, %v401, 0
      %v643 = vsel %vm501, %v402, 0
      %645 = vmatpush.bf16.msra.mxu0 0
      %646 = vmatpush.bf16.msra.mxu0 0
      %647 = vmatpush.bf16.msra.mxu0 0
      %648 = vmatpush.bf16.msra.mxu0 0
      %649 = vmatpush.bf16.msra.mxu0 0
      %650 = vmatpush.bf16.msra.mxu0 0
      %651 = vmatpush.bf16.msra.mxu0 0
      %652 = vmatpush.bf16.msra.mxu0 %v643
      %653 = vmatmul.bf16.gmra.mxu0 %v595
      %v654 = vpop.f32.mrf.mxu0
      %v655 = vadd.f32 %v515, %v654
      %v656 = vpop.f32.mrf.mxu0
      %v657 = vadd.f32 %v517, %v656
      %658 = vmatmul.bf16.gmra.mxu0 %v598
      %v659 = vpop.f32.mrf.mxu0
      %v660 = vadd.f32 %v520, %v659
      %v661 = vpop.f32.mrf.mxu0
      %v662 = vadd.f32 %v522, %v661
      %663 = vmatmul.bf16.gmra.mxu0 %v601
      %v664 = vpop.f32.mrf.mxu0
      %v665 = vadd.f32 %v525, %v664
      %v666 = vpop.f32.mrf.mxu0
      %v667 = vadd.f32 %v527, %v666
      %668 = vmatmul.bf16.gmra.mxu0 %v604
      %v669 = vpop.f32.mrf.mxu0
      %v670 = vadd.f32 %v530, %v669
      %v671 = vpop.f32.mrf.mxu0
      %v672 = vadd.f32 %v532, %v671
      %673 = vmatmul.bf16.gmra.mxu0 %v607
      %v674 = vpop.f32.mrf.mxu0
      %v675 = vadd.f32 %v535, %v674
      %v676 = vpop.f32.mrf.mxu0
      %v677 = vadd.f32 %v537, %v676
      %678 = vmatmul.bf16.gmra.mxu0 %v610
      %v679 = vpop.f32.mrf.mxu0
      %v680 = vadd.f32 %v540, %v679
      %v681 = vpop.f32.mrf.mxu0
      %v682 = vadd.f32 %v542, %v681
      %683 = vmatmul.bf16.gmra.mxu0 %v613
      %v684 = vpop.f32.mrf.mxu0
      %v685 = vadd.f32 %v545, %v684
      %v686 = vpop.f32.mrf.mxu0
      %v687 = vadd.f32 %v547, %v686
      %688 = vmatmul.bf16.gmra.mxu0 %v616
      %v689 = vpop.f32.mrf.mxu0
      %v690 = vadd.f32 %v550, %v689
      %v691 = vpop.f32.mrf.mxu0
      %v692 = vadd.f32 %v552, %v691
      %693 = vmatmul.bf16.gmra.mxu0 %v619
      %v694 = vpop.f32.mrf.mxu0
      %v695 = vadd.f32 %v555, %v694
      %v696 = vpop.f32.mrf.mxu0
      %v697 = vadd.f32 %v557, %v696
      %698 = vmatmul.bf16.gmra.mxu0 %v622
      %v699 = vpop.f32.mrf.mxu0
      %v700 = vadd.f32 %v560, %v699
      %v701 = vpop.f32.mrf.mxu0
      %v702 = vadd.f32 %v562, %v701
      %703 = vmatmul.bf16.gmra.mxu0 %v625
      %v704 = vpop.f32.mrf.mxu0
      %v705 = vadd.f32 %v565, %v704
      %v706 = vpop.f32.mrf.mxu0
      %v707 = vadd.f32 %v567, %v706
      %708 = vmatmul.bf16.gmra.mxu0 %v628
      %v709 = vpop.f32.mrf.mxu0
      %v710 = vadd.f32 %v570, %v709
      %v711 = vpop.f32.mrf.mxu0
      %v712 = vadd.f32 %v572, %v711
      %713 = vmatmul.bf16.gmra.mxu0 %v631
      %v714 = vpop.f32.mrf.mxu0
      %v715 = vadd.f32 %v575, %v714
      %v716 = vpop.f32.mrf.mxu0
      %v717 = vadd.f32 %v577, %v716
      %718 = vmatmul.bf16.gmra.mxu0 %v634
      %v719 = vpop.f32.mrf.mxu0
      %v720 = vadd.f32 %v580, %v719
      %v721 = vpop.f32.mrf.mxu0
      %v722 = vadd.f32 %v582, %v721
      %723 = vmatmul.bf16.gmra.mxu0 %v637
      %v724 = vpop.f32.mrf.mxu0
      %v725 = vadd.f32 %v585, %v724
      %v726 = vpop.f32.mrf.mxu0
      %v727 = vadd.f32 %v587, %v726
      %728 = vmatmul.bf16.gmra.mxu0 %v640
      %v729 = vpop.f32.mrf.mxu0
      %v730 = vadd.f32 %v590, %v729
      %v731 = vpop.f32.mrf.mxu0
      %v732 = vadd.f32 %v592, %v731
      %733 = vdwg.mxu0
      %v734 = vld [vmem:[#allocation2 + $0x2] sm:$0xff]
      %v735 = vld [vmem:[#allocation2 + $0xa] sm:$0xff]
      %v736 = vld [vmem:[#allocation2 + $0x1a] sm:$0xff]
      %v737 = vld [vmem:[#allocation2 + $0x22] sm:$0xff]
      %v738 = vld [vmem:[#allocation2 + $0x32] sm:$0xff]
      %v739 = vld [vmem:[#allocation2 + $0x3a] sm:$0xff]
      %v740 = vld [vmem:[#allocation2 + $0x4a] sm:$0xff]
      %v741 = vld [vmem:[#allocation2 + $0x52] sm:$0xff]
      %v742 = vld [vmem:[#allocation2 + $0x62] sm:$0xff]
      %v743 = vld [vmem:[#allocation2 + $0x6a] sm:$0xff]
      %v744 = vld [vmem:[#allocation2 + $0x7a] sm:$0xff]
      %v745 = vld [vmem:[#allocation2 + $0x82] sm:$0xff]
      %v746 = vld [vmem:[#allocation2 + $0x92] sm:$0xff]
      %v747 = vld [vmem:[#allocation2 + $0x9a] sm:$0xff]
      %v748 = vld [vmem:[#allocation2 + $0xaa] sm:$0xff]
      %v749 = vld [vmem:[#allocation2 + $0xb2] sm:$0xff]
      %v750 = vld [vmem:[#allocation2 + $0xc2] sm:$0xff]
      %v751 = vld [vmem:[#allocation2 + $0xca] sm:$0xff]
      %v752 = vld [vmem:[#allocation2 + $0xda] sm:$0xff]
      %v753 = vld [vmem:[#allocation2 + $0xe2] sm:$0xff]
      %v754 = vld [vmem:[#allocation2 + $0xf2] sm:$0xff]
      %v755 = vld [vmem:[#allocation2 + $0xfa] sm:$0xff]
      %v756 = vld [vmem:[#allocation2 + $0x10a] sm:$0xff]
      %v757 = vld [vmem:[#allocation2 + $0x112] sm:$0xff]
      %v758 = vld [vmem:[#allocation2 + $0x122] sm:$0xff]
      %v759 = vld [vmem:[#allocation2 + $0x12a] sm:$0xff]
      %v760 = vld [vmem:[#allocation2 + $0x13a] sm:$0xff]
      %v761 = vld [vmem:[#allocation2 + $0x142] sm:$0xff]
      %v762 = vld [vmem:[#allocation2 + $0x152] sm:$0xff]
      %v763 = vld [vmem:[#allocation2 + $0x15a] sm:$0xff]
      %v764 = vld [vmem:[#allocation2 + $0x16a] sm:$0xff]
      %v765 = vld [vmem:[#allocation2 + $0x172] sm:$0xff]
      %v766 = vpack.c.bf16 %v735, %v734
      %v767 = vpack.c.bf16 %v737, %v736
      %v768 = vpack.c.bf16 %v739, %v738
      %v769 = vpack.c.bf16 %v741, %v740
      %v770 = vpack.c.bf16 %v743, %v742
      %v771 = vpack.c.bf16 %v745, %v744
      %v772 = vpack.c.bf16 %v747, %v746
      %v773 = vpack.c.bf16 %v749, %v748
      %v774 = vpack.c.bf16 %v751, %v750
      %v775 = vpack.c.bf16 %v753, %v752
      %v776 = vpack.c.bf16 %v755, %v754
      %v777 = vpack.c.bf16 %v757, %v756
      %v778 = vpack.c.bf16 %v759, %v758
      %v779 = vpack.c.bf16 %v761, %v760
      %v780 = vpack.c.bf16 %v763, %v762
      %v781 = vpack.c.bf16 %v765, %v764
      %s782 = scalar_lea.vmem %s1, 4
      %v783 = vld [vmem:[%s782] sm:$0x3]
      %v785 = vsel %vm243, %v766, 0
      %v788 = vsel %vm243, %v767, 0
      %v791 = vsel %vm243, %v768, 0
      %v794 = vsel %vm243, %v769, 0
      %v797 = vsel %vm243, %v770, 0
      %v800 = vsel %vm243, %v771, 0
      %v803 = vsel %vm243, %v772, 0
      %v806 = vsel %vm243, %v773, 0
      %v809 = vsel %vm243, %v774, 0
      %v812 = vsel %vm243, %v775, 0
      %v815 = vsel %vm243, %v776, 0
      %v818 = vsel %vm243, %v777, 0
      %v821 = vsel %vm243, %v778, 0
      %v824 = vsel %vm243, %v779, 0
      %v827 = vsel %vm243, %v780, 0
      %v830 = vsel %vm243, %v781, 0
      %v833 = vsel %vm501, %v783, 0
      %835 = vmatpush.bf16.msra.mxu0 0
      %836 = vmatpush.bf16.msra.mxu0 0
      %837 = vmatpush.bf16.msra.mxu0 0
      %838 = vmatpush.bf16.msra.mxu0 0
      %839 = vmatpush.bf16.msra.mxu0 0
      %840 = vmatpush.bf16.msra.mxu0 0
      %841 = vmatpush.bf16.msra.mxu0 0
      %842 = vmatpush.bf16.msra.mxu0 %v833
      %843 = vmatmul.bf16.gmra.mxu0 %v785
      %v844 = vpop.f32.mrf.mxu0
      %v845 = vadd.f32 0.0, %v844
      %v846 = vpop.f32.mrf.mxu0
      %v847 = vadd.f32 0.0, %v846
      %848 = vmatmul.bf16.gmra.mxu0 %v788
      %v849 = vpop.f32.mrf.mxu0
      %v850 = vadd.f32 0.0, %v849
      %v851 = vpop.f32.mrf.mxu0
      %v852 = vadd.f32 0.0, %v851
      %853 = vmatmul.bf16.gmra.mxu0 %v791
      %v854 = vpop.f32.mrf.mxu0
      %v855 = vadd.f32 0.0, %v854
      %v856 = vpop.f32.mrf.mxu0
      %v857 = vadd.f32 0.0, %v856
      %858 = vmatmul.bf16.gmra.mxu0 %v794
      %v859 = vpop.f32.mrf.mxu0
      %v860 = vadd.f32 0.0, %v859
      %v861 = vpop.f32.mrf.mxu0
      %v862 = vadd.f32 0.0, %v861
      %863 = vmatmul.bf16.gmra.mxu0 %v797
      %v864 = vpop.f32.mrf.mxu0
      %v865 = vadd.f32 0.0, %v864
      %v866 = vpop.f32.mrf.mxu0
      %v867 = vadd.f32 0.0, %v866
      %868 = vmatmul.bf16.gmra.mxu0 %v800
      %v869 = vpop.f32.mrf.mxu0
      %v870 = vadd.f32 0.0, %v869
      %v871 = vpop.f32.mrf.mxu0
      %v872 = vadd.f32 0.0, %v871
      %873 = vmatmul.bf16.gmra.mxu0 %v803
      %v874 = vpop.f32.mrf.mxu0
      %v875 = vadd.f32 0.0, %v874
      %v876 = vpop.f32.mrf.mxu0
      %v877 = vadd.f32 0.0, %v876
      %878 = vmatmul.bf16.gmra.mxu0 %v806
      %v879 = vpop.f32.mrf.mxu0
      %v880 = vadd.f32 0.0, %v879
      %v881 = vpop.f32.mrf.mxu0
      %v882 = vadd.f32 0.0, %v881
      %883 = vmatmul.bf16.gmra.mxu0 %v809
      %v884 = vpop.f32.mrf.mxu0
      %v885 = vadd.f32 0.0, %v884
      %v886 = vpop.f32.mrf.mxu0
      %v887 = vadd.f32 0.0, %v886
      %888 = vmatmul.bf16.gmra.mxu0 %v812
      %v889 = vpop.f32.mrf.mxu0
      %v890 = vadd.f32 0.0, %v889
      %v891 = vpop.f32.mrf.mxu0
      %v892 = vadd.f32 0.0, %v891
      %893 = vmatmul.bf16.gmra.mxu0 %v815
      %v894 = vpop.f32.mrf.mxu0
      %v895 = vadd.f32 0.0, %v894
      %v896 = vpop.f32.mrf.mxu0
      %v897 = vadd.f32 0.0, %v896
      %898 = vmatmul.bf16.gmra.mxu0 %v818
      %v899 = vpop.f32.mrf.mxu0
      %v900 = vadd.f32 0.0, %v899
      %v901 = vpop.f32.mrf.mxu0
      %v902 = vadd.f32 0.0, %v901
      %903 = vmatmul.bf16.gmra.mxu0 %v821
      %v904 = vpop.f32.mrf.mxu0
      %v905 = vadd.f32 0.0, %v904
      %v906 = vpop.f32.mrf.mxu0
      %v907 = vadd.f32 0.0, %v906
      %908 = vmatmul.bf16.gmra.mxu0 %v824
      %v909 = vpop.f32.mrf.mxu0
      %v910 = vadd.f32 0.0, %v909
      %v911 = vpop.f32.mrf.mxu0
      %v912 = vadd.f32 0.0, %v911
      %913 = vmatmul.bf16.gmra.mxu0 %v827
      %v914 = vpop.f32.mrf.mxu0
      %v915 = vadd.f32 0.0, %v914
      %v916 = vpop.f32.mrf.mxu0
      %v917 = vadd.f32 0.0, %v916
      %918 = vmatmul.bf16.gmra.mxu0 %v830
      %v919 = vpop.f32.mrf.mxu0
      %v920 = vadd.f32 0.0, %v919
      %v921 = vpop.f32.mrf.mxu0
      %v922 = vadd.f32 0.0, %v921
      %923 = vdwg.mxu0
      %v924 = vadd.f32 %v655, %v845
      %v925 = vadd.f32 %v657, %v847
      %v926 = vadd.f32 %v660, %v850
      %v927 = vadd.f32 %v662, %v852
      %v928 = vadd.f32 %v665, %v855
      %v929 = vadd.f32 %v667, %v857
      %v930 = vadd.f32 %v670, %v860
      %v931 = vadd.f32 %v672, %v862
      %v932 = vadd.f32 %v675, %v865
      %v933 = vadd.f32 %v677, %v867
      %v934 = vadd.f32 %v680, %v870
      %v935 = vadd.f32 %v682, %v872
      %v936 = vadd.f32 %v685, %v875
      %v937 = vadd.f32 %v687, %v877
      %v938 = vadd.f32 %v690, %v880
      %v939 = vadd.f32 %v692, %v882
      %v940 = vadd.f32 %v695, %v885
      %v941 = vadd.f32 %v697, %v887
      %v942 = vadd.f32 %v700, %v890
      %v943 = vadd.f32 %v702, %v892
      %v944 = vadd.f32 %v705, %v895
      %v945 = vadd.f32 %v707, %v897
      %v946 = vadd.f32 %v710, %v900
      %v947 = vadd.f32 %v712, %v902
      %v948 = vadd.f32 %v715, %v905
      %v949 = vadd.f32 %v717, %v907
      %v950 = vadd.f32 %v720, %v910
      %v951 = vadd.f32 %v722, %v912
      %v952 = vadd.f32 %v725, %v915
      %v953 = vadd.f32 %v727, %v917
      %v954 = vadd.f32 %v730, %v920
      %v955 = vadd.f32 %v732, %v922
      %v956 = vld [vmem:[%s321] sm:$0xff]
      %v957 = vld [vmem:[%s321 + $0x8] sm:$0xff]
      %v958 = vld [vmem:[%s321 + $0x18] sm:$0xff]
      %v959 = vld [vmem:[%s321 + $0x20] sm:$0xff]
      %v960 = vld [vmem:[%s321 + $0x30] sm:$0xff]
      %v961 = vld [vmem:[%s321 + $0x38] sm:$0xff]
      %v962 = vld [vmem:[%s321 + $0x48] sm:$0xff]
      %v963 = vld [vmem:[%s321 + $0x50] sm:$0xff]
      %v964 = vld [vmem:[%s321 + $0x60] sm:$0xff]
      %v965 = vld [vmem:[%s321 + $0x68] sm:$0xff]
      %v966 = vld [vmem:[%s321 + $0x78] sm:$0xff]
      %v967 = vld [vmem:[%s321 + $0x80] sm:$0xff]
      %v968 = vld [vmem:[%s321 + $0x90] sm:$0xff]
      %v969 = vld [vmem:[%s321 + $0x98] sm:$0xff]
      %v970 = vld [vmem:[%s321 + $0xa8] sm:$0xff]
      %v971 = vld [vmem:[%s321 + $0xb0] sm:$0xff]
      %v972 = vld [vmem:[%s321 + $0xc0] sm:$0xff]
      %v973 = vld [vmem:[%s321 + $0xc8] sm:$0xff]
      %v974 = vld [vmem:[%s321 + $0xd8] sm:$0xff]
      %v975 = vld [vmem:[%s321 + $0xe0] sm:$0xff]
      %v976 = vld [vmem:[%s321 + $0xf0] sm:$0xff]
      %v977 = vld [vmem:[%s321 + $0xf8] sm:$0xff]
      %v978 = vld [vmem:[%s321 + $0x108] sm:$0xff]
      %v979 = vld [vmem:[%s321 + $0x110] sm:$0xff]
      %v980 = vld [vmem:[%s321 + $0x120] sm:$0xff]
      %v981 = vld [vmem:[%s321 + $0x128] sm:$0xff]
      %v982 = vld [vmem:[%s321 + $0x138] sm:$0xff]
      %v983 = vld [vmem:[%s321 + $0x140] sm:$0xff]
      %v984 = vld [vmem:[%s321 + $0x150] sm:$0xff]
      %v985 = vld [vmem:[%s321 + $0x158] sm:$0xff]
      %v986 = vld [vmem:[%s321 + $0x168] sm:$0xff]
      %v987 = vld [vmem:[%s321 + $0x170] sm:$0xff]
      %v988 = vpack.c.bf16 %v957, %v956
      %v989 = vpack.c.bf16 %v959, %v958
      %v990 = vpack.c.bf16 %v961, %v960
      %v991 = vpack.c.bf16 %v963, %v962
      %v992 = vpack.c.bf16 %v965, %v964
      %v993 = vpack.c.bf16 %v967, %v966
      %v994 = vpack.c.bf16 %v969, %v968
      %v995 = vpack.c.bf16 %v971, %v970
      %v996 = vpack.c.bf16 %v973, %v972
      %v997 = vpack.c.bf16 %v975, %v974
      %v998 = vpack.c.bf16 %v977, %v976
      %v999 = vpack.c.bf16 %v979, %v978
      %v1000 = vpack.c.bf16 %v981, %v980
      %v1001 = vpack.c.bf16 %v983, %v982
      %v1002 = vpack.c.bf16 %v985, %v984
      %v1003 = vpack.c.bf16 %v987, %v986
      %s1004 = scalar_lea.vmem %s1, 6
      %v1005 = vld [vmem:[%s1004] sm:$0x3]
      %v1007 = vsel %vm243, %v988, 0
      %v1010 = vsel %vm243, %v989, 0
      %v1013 = vsel %vm243, %v990, 0
      %v1016 = vsel %vm243, %v991, 0
      %v1019 = vsel %vm243, %v992, 0
      %v1022 = vsel %vm243, %v993, 0
      %v1025 = vsel %vm243, %v994, 0
      %v1028 = vsel %vm243, %v995, 0
      %v1031 = vsel %vm243, %v996, 0
      %v1034 = vsel %vm243, %v997, 0
      %v1037 = vsel %vm243, %v998, 0
      %v1040 = vsel %vm243, %v999, 0
      %v1043 = vsel %vm243, %v1000, 0
      %v1046 = vsel %vm243, %v1001, 0
      %v1049 = vsel %vm243, %v1002, 0
      %v1052 = vsel %vm243, %v1003, 0
      %v1055 = vsel %vm501, %v1005, 0
      %1057 = vmatpush.bf16.msra.mxu0 0
      %1058 = vmatpush.bf16.msra.mxu0 0
      %1059 = vmatpush.bf16.msra.mxu0 0
      %1060 = vmatpush.bf16.msra.mxu0 0
      %1061 = vmatpush.bf16.msra.mxu0 0
      %1062 = vmatpush.bf16.msra.mxu0 0
      %1063 = vmatpush.bf16.msra.mxu0 0
      %1064 = vmatpush.bf16.msra.mxu0 %v1055
      %1065 = vmatmul.bf16.gmra.mxu0 %v1007
      %v1066 = vpop.f32.mrf.mxu0
      %v1067 = vadd.f32 0.0, %v1066
      %v1068 = vpop.f32.mrf.mxu0
      %v1069 = vadd.f32 0.0, %v1068
      %1070 = vmatmul.bf16.gmra.mxu0 %v1010
      %v1071 = vpop.f32.mrf.mxu0
      %v1072 = vadd.f32 0.0, %v1071
      %v1073 = vpop.f32.mrf.mxu0
      %v1074 = vadd.f32 0.0, %v1073
      %1075 = vmatmul.bf16.gmra.mxu0 %v1013
      %v1076 = vpop.f32.mrf.mxu0
      %v1077 = vadd.f32 0.0, %v1076
      %v1078 = vpop.f32.mrf.mxu0
      %v1079 = vadd.f32 0.0, %v1078
      %1080 = vmatmul.bf16.gmra.mxu0 %v1016
      %v1081 = vpop.f32.mrf.mxu0
      %v1082 = vadd.f32 0.0, %v1081
      %v1083 = vpop.f32.mrf.mxu0
      %v1084 = vadd.f32 0.0, %v1083
      %1085 = vmatmul.bf16.gmra.mxu0 %v1019
      %v1086 = vpop.f32.mrf.mxu0
      %v1087 = vadd.f32 0.0, %v1086
      %v1088 = vpop.f32.mrf.mxu0
      %v1089 = vadd.f32 0.0, %v1088
      %1090 = vmatmul.bf16.gmra.mxu0 %v1022
      %v1091 = vpop.f32.mrf.mxu0
      %v1092 = vadd.f32 0.0, %v1091
      %v1093 = vpop.f32.mrf.mxu0
      %v1094 = vadd.f32 0.0, %v1093
      %1095 = vmatmul.bf16.gmra.mxu0 %v1025
      %v1096 = vpop.f32.mrf.mxu0
      %v1097 = vadd.f32 0.0, %v1096
      %v1098 = vpop.f32.mrf.mxu0
      %v1099 = vadd.f32 0.0, %v1098
      %1100 = vmatmul.bf16.gmra.mxu0 %v1028
      %v1101 = vpop.f32.mrf.mxu0
      %v1102 = vadd.f32 0.0, %v1101
      %v1103 = vpop.f32.mrf.mxu0
      %v1104 = vadd.f32 0.0, %v1103
      %1105 = vmatmul.bf16.gmra.mxu0 %v1031
      %v1106 = vpop.f32.mrf.mxu0
      %v1107 = vadd.f32 0.0, %v1106
      %v1108 = vpop.f32.mrf.mxu0
      %v1109 = vadd.f32 0.0, %v1108
      %1110 = vmatmul.bf16.gmra.mxu0 %v1034
      %v1111 = vpop.f32.mrf.mxu0
      %v1112 = vadd.f32 0.0, %v1111
      %v1113 = vpop.f32.mrf.mxu0
      %v1114 = vadd.f32 0.0, %v1113
      %1115 = vmatmul.bf16.gmra.mxu0 %v1037
      %v1116 = vpop.f32.mrf.mxu0
      %v1117 = vadd.f32 0.0, %v1116
      %v1118 = vpop.f32.mrf.mxu0
      %v1119 = vadd.f32 0.0, %v1118
      %1120 = vmatmul.bf16.gmra.mxu0 %v1040
      %v1121 = vpop.f32.mrf.mxu0
      %v1122 = vadd.f32 0.0, %v1121
      %v1123 = vpop.f32.mrf.mxu0
      %v1124 = vadd.f32 0.0, %v1123
      %1125 = vmatmul.bf16.gmra.mxu0 %v1043
      %v1126 = vpop.f32.mrf.mxu0
      %v1127 = vadd.f32 0.0, %v1126
      %v1128 = vpop.f32.mrf.mxu0
      %v1129 = vadd.f32 0.0, %v1128
      %1130 = vmatmul.bf16.gmra.mxu0 %v1046
      %v1131 = vpop.f32.mrf.mxu0
      %v1132 = vadd.f32 0.0, %v1131
      %v1133 = vpop.f32.mrf.mxu0
      %v1134 = vadd.f32 0.0, %v1133
      %1135 = vmatmul.bf16.gmra.mxu0 %v1049
      %v1136 = vpop.f32.mrf.mxu0
      %v1137 = vadd.f32 0.0, %v1136
      %v1138 = vpop.f32.mrf.mxu0
      %v1139 = vadd.f32 0.0, %v1138
      %1140 = vmatmul.bf16.gmra.mxu0 %v1052
      %v1141 = vpop.f32.mrf.mxu0
      %v1142 = vadd.f32 0.0, %v1141
      %v1143 = vpop.f32.mrf.mxu0
      %v1144 = vadd.f32 0.0, %v1143
      %1145 = vdwg.mxu0
      %v1146 = vadd.f32 %v924, %v1067
      %v1147 = vadd.f32 %v925, %v1069
      %v1148 = vadd.f32 %v926, %v1072
      %v1149 = vadd.f32 %v927, %v1074
      %v1150 = vadd.f32 %v928, %v1077
      %v1151 = vadd.f32 %v929, %v1079
      %v1152 = vadd.f32 %v930, %v1082
      %v1153 = vadd.f32 %v931, %v1084
      %v1154 = vadd.f32 %v932, %v1087
      %v1155 = vadd.f32 %v933, %v1089
      %v1156 = vadd.f32 %v934, %v1092
      %v1157 = vadd.f32 %v935, %v1094
      %v1158 = vadd.f32 %v936, %v1097
      %v1159 = vadd.f32 %v937, %v1099
      %v1160 = vadd.f32 %v938, %v1102
      %v1161 = vadd.f32 %v939, %v1104
      %v1162 = vadd.f32 %v940, %v1107
      %v1163 = vadd.f32 %v941, %v1109
      %v1164 = vadd.f32 %v942, %v1112
      %v1165 = vadd.f32 %v943, %v1114
      %v1166 = vadd.f32 %v944, %v1117
      %v1167 = vadd.f32 %v945, %v1119
      %v1168 = vadd.f32 %v946, %v1122
      %v1169 = vadd.f32 %v947, %v1124
      %v1170 = vadd.f32 %v948, %v1127
      %v1171 = vadd.f32 %v949, %v1129
      %v1172 = vadd.f32 %v950, %v1132
      %v1173 = vadd.f32 %v951, %v1134
      %v1174 = vadd.f32 %v952, %v1137
      %v1175 = vadd.f32 %v953, %v1139
      %v1176 = vadd.f32 %v954, %v1142
      %v1177 = vadd.f32 %v955, %v1144
      %v1178 = vld [vmem:[%s321 + $0x1] sm:$0xff]
      %v1179 = vld [vmem:[%s321 + $0x9] sm:$0xff]
      %v1180 = vld [vmem:[%s321 + $0x19] sm:$0xff]
      %v1181 = vld [vmem:[%s321 + $0x21] sm:$0xff]
      %v1182 = vld [vmem:[%s321 + $0x31] sm:$0xff]
      %v1183 = vld [vmem:[%s321 + $0x39] sm:$0xff]
      %v1184 = vld [vmem:[%s321 + $0x49] sm:$0xff]
      %v1185 = vld [vmem:[%s321 + $0x51] sm:$0xff]
      %v1186 = vld [vmem:[%s321 + $0x61] sm:$0xff]
      %v1187 = vld [vmem:[%s321 + $0x69] sm:$0xff]
      %v1188 = vld [vmem:[%s321 + $0x79] sm:$0xff]
      %v1189 = vld [vmem:[%s321 + $0x81] sm:$0xff]
      %v1190 = vld [vmem:[%s321 + $0x91] sm:$0xff]
      %v1191 = vld [vmem:[%s321 + $0x99] sm:$0xff]
      %v1192 = vld [vmem:[%s321 + $0xa9] sm:$0xff]
      %v1193 = vld [vmem:[%s321 + $0xb1] sm:$0xff]
      %v1194 = vld [vmem:[%s321 + $0xc1] sm:$0xff]
      %v1195 = vld [vmem:[%s321 + $0xc9] sm:$0xff]
      %v1196 = vld [vmem:[%s321 + $0xd9] sm:$0xff]
      %v1197 = vld [vmem:[%s321 + $0xe1] sm:$0xff]
      %v1198 = vld [vmem:[%s321 + $0xf1] sm:$0xff]
      %v1199 = vld [vmem:[%s321 + $0xf9] sm:$0xff]
      %v1200 = vld [vmem:[%s321 + $0x109] sm:$0xff]
      %v1201 = vld [vmem:[%s321 + $0x111] sm:$0xff]
      %v1202 = vld [vmem:[%s321 + $0x121] sm:$0xff]
      %v1203 = vld [vmem:[%s321 + $0x129] sm:$0xff]
      %v1204 = vld [vmem:[%s321 + $0x139] sm:$0xff]
      %v1205 = vld [vmem:[%s321 + $0x141] sm:$0xff]
      %v1206 = vld [vmem:[%s321 + $0x151] sm:$0xff]
      %v1207 = vld [vmem:[%s321 + $0x159] sm:$0xff]
      %v1208 = vld [vmem:[%s321 + $0x169] sm:$0xff]
      %v1209 = vld [vmem:[%s321 + $0x171] sm:$0xff]
      %v1210 = vpack.c.bf16 %v1179, %v1178
      %v1211 = vpack.c.bf16 %v1181, %v1180
      %v1212 = vpack.c.bf16 %v1183, %v1182
      %v1213 = vpack.c.bf16 %v1185, %v1184
      %v1214 = vpack.c.bf16 %v1187, %v1186
      %v1215 = vpack.c.bf16 %v1189, %v1188
      %v1216 = vpack.c.bf16 %v1191, %v1190
      %v1217 = vpack.c.bf16 %v1193, %v1192
      %v1218 = vpack.c.bf16 %v1195, %v1194
      %v1219 = vpack.c.bf16 %v1197, %v1196
      %v1220 = vpack.c.bf16 %v1199, %v1198
      %v1221 = vpack.c.bf16 %v1201, %v1200
      %v1222 = vpack.c.bf16 %v1203, %v1202
      %v1223 = vpack.c.bf16 %v1205, %v1204
      %v1224 = vpack.c.bf16 %v1207, %v1206
      %v1225 = vpack.c.bf16 %v1209, %v1208
      %s1226 = scalar_lea.vmem %s1, 8
      %v1227 = vld [vmem:[%s1226] sm:$0x3]
      %v1229 = vsel %vm243, %v1210, 0
      %v1232 = vsel %vm243, %v1211, 0
      %v1235 = vsel %vm243, %v1212, 0
      %v1238 = vsel %vm243, %v1213, 0
      %v1241 = vsel %vm243, %v1214, 0
      %v1244 = vsel %vm243, %v1215, 0
      %v1247 = vsel %vm243, %v1216, 0
      %v1250 = vsel %vm243, %v1217, 0
      %v1253 = vsel %vm243, %v1218, 0
      %v1256 = vsel %vm243, %v1219, 0
      %v1259 = vsel %vm243, %v1220, 0
      %v1262 = vsel %vm243, %v1221, 0
      %v1265 = vsel %vm243, %v1222, 0
      %v1268 = vsel %vm243, %v1223, 0
      %v1271 = vsel %vm243, %v1224, 0
      %v1274 = vsel %vm243, %v1225, 0
      %v1277 = vsel %vm501, %v1227, 0
      %1279 = vmatpush.bf16.msra.mxu0 0
      %1280 = vmatpush.bf16.msra.mxu0 0
      %1281 = vmatpush.bf16.msra.mxu0 0
      %1282 = vmatpush.bf16.msra.mxu0 0
      %1283 = vmatpush.bf16.msra.mxu0 0
      %1284 = vmatpush.bf16.msra.mxu0 0
      %1285 = vmatpush.bf16.msra.mxu0 0
      %1286 = vmatpush.bf16.msra.mxu0 %v1277
      %1287 = vmatmul.bf16.gmra.mxu0 %v1229
      %v1288 = vpop.f32.mrf.mxu0
      %v1289 = vadd.f32 0.0, %v1288
      %v1290 = vpop.f32.mrf.mxu0
      %v1291 = vadd.f32 0.0, %v1290
      %1292 = vmatmul.bf16.gmra.mxu0 %v1232
      %v1293 = vpop.f32.mrf.mxu0
      %v1294 = vadd.f32 0.0, %v1293
      %v1295 = vpop.f32.mrf.mxu0
      %v1296 = vadd.f32 0.0, %v1295
      %1297 = vmatmul.bf16.gmra.mxu0 %v1235
      %v1298 = vpop.f32.mrf.mxu0
      %v1299 = vadd.f32 0.0, %v1298
      %v1300 = vpop.f32.mrf.mxu0
      %v1301 = vadd.f32 0.0, %v1300
      %1302 = vmatmul.bf16.gmra.mxu0 %v1238
      %v1303 = vpop.f32.mrf.mxu0
      %v1304 = vadd.f32 0.0, %v1303
      %v1305 = vpop.f32.mrf.mxu0
      %v1306 = vadd.f32 0.0, %v1305
      %1307 = vmatmul.bf16.gmra.mxu0 %v1241
      %v1308 = vpop.f32.mrf.mxu0
      %v1309 = vadd.f32 0.0, %v1308
      %v1310 = vpop.f32.mrf.mxu0
      %v1311 = vadd.f32 0.0, %v1310
      %1312 = vmatmul.bf16.gmra.mxu0 %v1244
      %v1313 = vpop.f32.mrf.mxu0
      %v1314 = vadd.f32 0.0, %v1313
      %v1315 = vpop.f32.mrf.mxu0
      %v1316 = vadd.f32 0.0, %v1315
      %1317 = vmatmul.bf16.gmra.mxu0 %v1247
      %v1318 = vpop.f32.mrf.mxu0
      %v1319 = vadd.f32 0.0, %v1318
      %v1320 = vpop.f32.mrf.mxu0
      %v1321 = vadd.f32 0.0, %v1320
      %1322 = vmatmul.bf16.gmra.mxu0 %v1250
      %v1323 = vpop.f32.mrf.mxu0
      %v1324 = vadd.f32 0.0, %v1323
      %v1325 = vpop.f32.mrf.mxu0
      %v1326 = vadd.f32 0.0, %v1325
      %1327 = vmatmul.bf16.gmra.mxu0 %v1253
      %v1328 = vpop.f32.mrf.mxu0
      %v1329 = vadd.f32 0.0, %v1328
      %v1330 = vpop.f32.mrf.mxu0
      %v1331 = vadd.f32 0.0, %v1330
      %1332 = vmatmul.bf16.gmra.mxu0 %v1256
      %v1333 = vpop.f32.mrf.mxu0
      %v1334 = vadd.f32 0.0, %v1333
      %v1335 = vpop.f32.mrf.mxu0
      %v1336 = vadd.f32 0.0, %v1335
      %1337 = vmatmul.bf16.gmra.mxu0 %v1259
      %v1338 = vpop.f32.mrf.mxu0
      %v1339 = vadd.f32 0.0, %v1338
      %v1340 = vpop.f32.mrf.mxu0
      %v1341 = vadd.f32 0.0, %v1340
      %1342 = vmatmul.bf16.gmra.mxu0 %v1262
      %v1343 = vpop.f32.mrf.mxu0
      %v1344 = vadd.f32 0.0, %v1343
      %v1345 = vpop.f32.mrf.mxu0
      %v1346 = vadd.f32 0.0, %v1345
      %1347 = vmatmul.bf16.gmra.mxu0 %v1265
      %v1348 = vpop.f32.mrf.mxu0
      %v1349 = vadd.f32 0.0, %v1348
      %v1350 = vpop.f32.mrf.mxu0
      %v1351 = vadd.f32 0.0, %v1350
      %1352 = vmatmul.bf16.gmra.mxu0 %v1268
      %v1353 = vpop.f32.mrf.mxu0
      %v1354 = vadd.f32 0.0, %v1353
      %v1355 = vpop.f32.mrf.mxu0
      %v1356 = vadd.f32 0.0, %v1355
      %1357 = vmatmul.bf16.gmra.mxu0 %v1271
      %v1358 = vpop.f32.mrf.mxu0
      %v1359 = vadd.f32 0.0, %v1358
      %v1360 = vpop.f32.mrf.mxu0
      %v1361 = vadd.f32 0.0, %v1360
      %1362 = vmatmul.bf16.gmra.mxu0 %v1274
      %v1363 = vpop.f32.mrf.mxu0
      %v1364 = vadd.f32 0.0, %v1363
      %v1365 = vpop.f32.mrf.mxu0
      %v1366 = vadd.f32 0.0, %v1365
      %1367 = vdwg.mxu0
      %v1368 = vadd.f32 %v1146, %v1289
      %v1369 = vadd.f32 %v1147, %v1291
      %v1370 = vadd.f32 %v1148, %v1294
      %v1371 = vadd.f32 %v1149, %v1296
      %v1372 = vadd.f32 %v1150, %v1299
      %v1373 = vadd.f32 %v1151, %v1301
      %v1374 = vadd.f32 %v1152, %v1304
      %v1375 = vadd.f32 %v1153, %v1306
      %v1376 = vadd.f32 %v1154, %v1309
      %v1377 = vadd.f32 %v1155, %v1311
      %v1378 = vadd.f32 %v1156, %v1314
      %v1379 = vadd.f32 %v1157, %v1316
      %v1380 = vadd.f32 %v1158, %v1319
      %v1381 = vadd.f32 %v1159, %v1321
      %v1382 = vadd.f32 %v1160, %v1324
      %v1383 = vadd.f32 %v1161, %v1326
      %v1384 = vadd.f32 %v1162, %v1329
      %v1385 = vadd.f32 %v1163, %v1331
      %v1386 = vadd.f32 %v1164, %v1334
      %v1387 = vadd.f32 %v1165, %v1336
      %v1388 = vadd.f32 %v1166, %v1339
      %v1389 = vadd.f32 %v1167, %v1341
      %v1390 = vadd.f32 %v1168, %v1344
      %v1391 = vadd.f32 %v1169, %v1346
      %v1392 = vadd.f32 %v1170, %v1349
      %v1393 = vadd.f32 %v1171, %v1351
      %v1394 = vadd.f32 %v1172, %v1354
      %v1395 = vadd.f32 %v1173, %v1356
      %v1396 = vadd.f32 %v1174, %v1359
      %v1397 = vadd.f32 %v1175, %v1361
      %v1398 = vadd.f32 %v1176, %v1364
      %v1399 = vadd.f32 %v1177, %v1366
      %v1400 = vld [vmem:[%s321 + $0x2] sm:$0xff]
      %v1401 = vld [vmem:[%s321 + $0xa] sm:$0xff]
      %v1402 = vld [vmem:[%s321 + $0x1a] sm:$0xff]
      %v1403 = vld [vmem:[%s321 + $0x22] sm:$0xff]
      %v1404 = vld [vmem:[%s321 + $0x32] sm:$0xff]
      %v1405 = vld [vmem:[%s321 + $0x3a] sm:$0xff]
      %v1406 = vld [vmem:[%s321 + $0x4a] sm:$0xff]
      %v1407 = vld [vmem:[%s321 + $0x52] sm:$0xff]
      %v1408 = vld [vmem:[%s321 + $0x62] sm:$0xff]
      %v1409 = vld [vmem:[%s321 + $0x6a] sm:$0xff]
      %v1410 = vld [vmem:[%s321 + $0x7a] sm:$0xff]
      %v1411 = vld [vmem:[%s321 + $0x82] sm:$0xff]
      %v1412 = vld [vmem:[%s321 + $0x92] sm:$0xff]
      %v1413 = vld [vmem:[%s321 + $0x9a] sm:$0xff]
      %v1414 = vld [vmem:[%s321 + $0xaa] sm:$0xff]
      %v1415 = vld [vmem:[%s321 + $0xb2] sm:$0xff]
      %v1416 = vld [vmem:[%s321 + $0xc2] sm:$0xff]
      %v1417 = vld [vmem:[%s321 + $0xca] sm:$0xff]
      %v1418 = vld [vmem:[%s321 + $0xda] sm:$0xff]
      %v1419 = vld [vmem:[%s321 + $0xe2] sm:$0xff]
      %v1420 = vld [vmem:[%s321 + $0xf2] sm:$0xff]
      %v1421 = vld [vmem:[%s321 + $0xfa] sm:$0xff]
      %v1422 = vld [vmem:[%s321 + $0x10a] sm:$0xff]
      %v1423 = vld [vmem:[%s321 + $0x112] sm:$0xff]
      %v1424 = vld [vmem:[%s321 + $0x122] sm:$0xff]
      %v1425 = vld [vmem:[%s321 + $0x12a] sm:$0xff]
      %v1426 = vld [vmem:[%s321 + $0x13a] sm:$0xff]
      %v1427 = vld [vmem:[%s321 + $0x142] sm:$0xff]
      %v1428 = vld [vmem:[%s321 + $0x152] sm:$0xff]
      %v1429 = vld [vmem:[%s321 + $0x15a] sm:$0xff]
      %v1430 = vld [vmem:[%s321 + $0x16a] sm:$0xff]
      %v1431 = vld [vmem:[%s321 + $0x172] sm:$0xff]
      %v1432 = vpack.c.bf16 %v1401, %v1400
      %v1433 = vpack.c.bf16 %v1403, %v1402
      %v1434 = vpack.c.bf16 %v1405, %v1404
      %v1435 = vpack.c.bf16 %v1407, %v1406
      %v1436 = vpack.c.bf16 %v1409, %v1408
      %v1437 = vpack.c.bf16 %v1411, %v1410
      %v1438 = vpack.c.bf16 %v1413, %v1412
      %v1439 = vpack.c.bf16 %v1415, %v1414
      %v1440 = vpack.c.bf16 %v1417, %v1416
      %v1441 = vpack.c.bf16 %v1419, %v1418
      %v1442 = vpack.c.bf16 %v1421, %v1420
      %v1443 = vpack.c.bf16 %v1423, %v1422
      %v1444 = vpack.c.bf16 %v1425, %v1424
      %v1445 = vpack.c.bf16 %v1427, %v1426
      %v1446 = vpack.c.bf16 %v1429, %v1428
      %v1447 = vpack.c.bf16 %v1431, %v1430
      %s1448 = scalar_lea.vmem %s1, 10
      %v1449 = vld [vmem:[%s1448] sm:$0x3]
      %v1451 = vsel %vm243, %v1432, 0
      %v1454 = vsel %vm243, %v1433, 0
      %v1457 = vsel %vm243, %v1434, 0
      %v1460 = vsel %vm243, %v1435, 0
      %v1463 = vsel %vm243, %v1436, 0
      %v1466 = vsel %vm243, %v1437, 0
      %v1469 = vsel %vm243, %v1438, 0
      %v1472 = vsel %vm243, %v1439, 0
      %v1475 = vsel %vm243, %v1440, 0
      %v1478 = vsel %vm243, %v1441, 0
      %v1481 = vsel %vm243, %v1442, 0
      %v1484 = vsel %vm243, %v1443, 0
      %v1487 = vsel %vm243, %v1444, 0
      %v1490 = vsel %vm243, %v1445, 0
      %v1493 = vsel %vm243, %v1446, 0
      %v1496 = vsel %vm243, %v1447, 0
      %v1499 = vsel %vm501, %v1449, 0
      %1501 = vmatpush.bf16.msra.mxu0 0
      %1502 = vmatpush.bf16.msra.mxu0 0
      %1503 = vmatpush.bf16.msra.mxu0 0
      %1504 = vmatpush.bf16.msra.mxu0 0
      %1505 = vmatpush.bf16.msra.mxu0 0
      %1506 = vmatpush.bf16.msra.mxu0 0
      %1507 = vmatpush.bf16.msra.mxu0 0
      %1508 = vmatpush.bf16.msra.mxu0 %v1499
      %1509 = vmatmul.bf16.gmra.mxu0 %v1451
      %v1510 = vpop.f32.mrf.mxu0
      %v1511 = vadd.f32 0.0, %v1510
      %v1512 = vpop.f32.mrf.mxu0
      %v1513 = vadd.f32 0.0, %v1512
      %1514 = vmatmul.bf16.gmra.mxu0 %v1454
      %v1515 = vpop.f32.mrf.mxu0
      %v1516 = vadd.f32 0.0, %v1515
      %v1517 = vpop.f32.mrf.mxu0
      %v1518 = vadd.f32 0.0, %v1517
      %1519 = vmatmul.bf16.gmra.mxu0 %v1457
      %v1520 = vpop.f32.mrf.mxu0
      %v1521 = vadd.f32 0.0, %v1520
      %v1522 = vpop.f32.mrf.mxu0
      %v1523 = vadd.f32 0.0, %v1522
      %1524 = vmatmul.bf16.gmra.mxu0 %v1460
      %v1525 = vpop.f32.mrf.mxu0
      %v1526 = vadd.f32 0.0, %v1525
      %v1527 = vpop.f32.mrf.mxu0
      %v1528 = vadd.f32 0.0, %v1527
      %1529 = vmatmul.bf16.gmra.mxu0 %v1463
      %v1530 = vpop.f32.mrf.mxu0
      %v1531 = vadd.f32 0.0, %v1530
      %v1532 = vpop.f32.mrf.mxu0
      %v1533 = vadd.f32 0.0, %v1532
      %1534 = vmatmul.bf16.gmra.mxu0 %v1466
      %v1535 = vpop.f32.mrf.mxu0
      %v1536 = vadd.f32 0.0, %v1535
      %v1537 = vpop.f32.mrf.mxu0
      %v1538 = vadd.f32 0.0, %v1537
      %1539 = vmatmul.bf16.gmra.mxu0 %v1469
      %v1540 = vpop.f32.mrf.mxu0
      %v1541 = vadd.f32 0.0, %v1540
      %v1542 = vpop.f32.mrf.mxu0
      %v1543 = vadd.f32 0.0, %v1542
      %1544 = vmatmul.bf16.gmra.mxu0 %v1472
      %v1545 = vpop.f32.mrf.mxu0
      %v1546 = vadd.f32 0.0, %v1545
      %v1547 = vpop.f32.mrf.mxu0
      %v1548 = vadd.f32 0.0, %v1547
      %1549 = vmatmul.bf16.gmra.mxu0 %v1475
      %v1550 = vpop.f32.mrf.mxu0
      %v1551 = vadd.f32 0.0, %v1550
      %v1552 = vpop.f32.mrf.mxu0
      %v1553 = vadd.f32 0.0, %v1552
      %1554 = vmatmul.bf16.gmra.mxu0 %v1478
      %v1555 = vpop.f32.mrf.mxu0
      %v1556 = vadd.f32 0.0, %v1555
      %v1557 = vpop.f32.mrf.mxu0
      %v1558 = vadd.f32 0.0, %v1557
      %1559 = vmatmul.bf16.gmra.mxu0 %v1481
      %v1560 = vpop.f32.mrf.mxu0
      %v1561 = vadd.f32 0.0, %v1560
      %v1562 = vpop.f32.mrf.mxu0
      %v1563 = vadd.f32 0.0, %v1562
      %1564 = vmatmul.bf16.gmra.mxu0 %v1484
      %v1565 = vpop.f32.mrf.mxu0
      %v1566 = vadd.f32 0.0, %v1565
      %v1567 = vpop.f32.mrf.mxu0
      %v1568 = vadd.f32 0.0, %v1567
      %1569 = vmatmul.bf16.gmra.mxu0 %v1487
      %v1570 = vpop.f32.mrf.mxu0
      %v1571 = vadd.f32 0.0, %v1570
      %v1572 = vpop.f32.mrf.mxu0
      %v1573 = vadd.f32 0.0, %v1572
      %1574 = vmatmul.bf16.gmra.mxu0 %v1490
      %v1575 = vpop.f32.mrf.mxu0
      %v1576 = vadd.f32 0.0, %v1575
      %v1577 = vpop.f32.mrf.mxu0
      %v1578 = vadd.f32 0.0, %v1577
      %1579 = vmatmul.bf16.gmra.mxu0 %v1493
      %v1580 = vpop.f32.mrf.mxu0
      %v1581 = vadd.f32 0.0, %v1580
      %v1582 = vpop.f32.mrf.mxu0
      %v1583 = vadd.f32 0.0, %v1582
      %1584 = vmatmul.bf16.gmra.mxu0 %v1496
      %v1585 = vpop.f32.mrf.mxu0
      %v1586 = vadd.f32 0.0, %v1585
      %v1587 = vpop.f32.mrf.mxu0
      %v1588 = vadd.f32 0.0, %v1587
      %1589 = vdwg.mxu0
      %v1590 = vadd.f32 %v1368, %v1511
      %v1591 = vadd.f32 %v1369, %v1513
      %v1592 = vadd.f32 %v1370, %v1516
      %v1593 = vadd.f32 %v1371, %v1518
      %v1594 = vadd.f32 %v1372, %v1521
      %v1595 = vadd.f32 %v1373, %v1523
      %v1596 = vadd.f32 %v1374, %v1526
      %v1597 = vadd.f32 %v1375, %v1528
      %v1598 = vadd.f32 %v1376, %v1531
      %v1599 = vadd.f32 %v1377, %v1533
      %v1600 = vadd.f32 %v1378, %v1536
      %v1601 = vadd.f32 %v1379, %v1538
      %v1602 = vadd.f32 %v1380, %v1541
      %v1603 = vadd.f32 %v1381, %v1543
      %v1604 = vadd.f32 %v1382, %v1546
      %v1605 = vadd.f32 %v1383, %v1548
      %v1606 = vadd.f32 %v1384, %v1551
      %v1607 = vadd.f32 %v1385, %v1553
      %v1608 = vadd.f32 %v1386, %v1556
      %v1609 = vadd.f32 %v1387, %v1558
      %v1610 = vadd.f32 %v1388, %v1561
      %v1611 = vadd.f32 %v1389, %v1563
      %v1612 = vadd.f32 %v1390, %v1566
      %v1613 = vadd.f32 %v1391, %v1568
      %v1614 = vadd.f32 %v1392, %v1571
      %v1615 = vadd.f32 %v1393, %v1573
      %v1616 = vadd.f32 %v1394, %v1576
      %v1617 = vadd.f32 %v1395, %v1578
      %v1618 = vadd.f32 %v1396, %v1581
      %v1619 = vadd.f32 %v1397, %v1583
      %v1620 = vadd.f32 %v1398, %v1586
      %v1621 = vadd.f32 %v1399, %v1588
      %s1622 = scalar_lea.vmem [#allocation2], 48
      %v1623 = vld [vmem:[%s1622] sm:$0xff]
      %v1624 = vld [vmem:[%s1622 + $0x8] sm:$0xff]
      %v1625 = vld [vmem:[%s1622 + $0x18] sm:$0xff]
      %v1626 = vld [vmem:[%s1622 + $0x20] sm:$0xff]
      %v1627 = vld [vmem:[%s1622 + $0x30] sm:$0xff]
      %v1628 = vld [vmem:[%s1622 + $0x38] sm:$0xff]
      %v1629 = vld [vmem:[%s1622 + $0x48] sm:$0xff]
      %v1630 = vld [vmem:[%s1622 + $0x50] sm:$0xff]
      %v1631 = vld [vmem:[%s1622 + $0x60] sm:$0xff]
      %v1632 = vld [vmem:[%s1622 + $0x68] sm:$0xff]
      %v1633 = vld [vmem:[%s1622 + $0x78] sm:$0xff]
      %v1634 = vld [vmem:[%s1622 + $0x80] sm:$0xff]
      %v1635 = vld [vmem:[%s1622 + $0x90] sm:$0xff]
      %v1636 = vld [vmem:[%s1622 + $0x98] sm:$0xff]
      %v1637 = vld [vmem:[%s1622 + $0xa8] sm:$0xff]
      %v1638 = vld [vmem:[%s1622 + $0xb0] sm:$0xff]
      %v1639 = vld [vmem:[%s1622 + $0xc0] sm:$0xff]
      %v1640 = vld [vmem:[%s1622 + $0xc8] sm:$0xff]
      %v1641 = vld [vmem:[%s1622 + $0xd8] sm:$0xff]
      %v1642 = vld [vmem:[%s1622 + $0xe0] sm:$0xff]
      %v1643 = vld [vmem:[%s1622 + $0xf0] sm:$0xff]
      %v1644 = vld [vmem:[%s1622 + $0xf8] sm:$0xff]
      %v1645 = vld [vmem:[%s1622 + $0x108] sm:$0xff]
      %v1646 = vld [vmem:[%s1622 + $0x110] sm:$0xff]
      %v1647 = vld [vmem:[%s1622 + $0x120] sm:$0xff]
      %v1648 = vld [vmem:[%s1622 + $0x128] sm:$0xff]
      %v1649 = vld [vmem:[%s1622 + $0x138] sm:$0xff]
      %v1650 = vld [vmem:[%s1622 + $0x140] sm:$0xff]
      %v1651 = vld [vmem:[%s1622 + $0x150] sm:$0xff]
      %v1652 = vld [vmem:[%s1622 + $0x158] sm:$0xff]
      %v1653 = vld [vmem:[%s1622 + $0x168] sm:$0xff]
      %v1654 = vld [vmem:[%s1622 + $0x170] sm:$0xff]
      %v1655 = vpack.c.bf16 %v1624, %v1623
      %v1656 = vpack.c.bf16 %v1626, %v1625
      %v1657 = vpack.c.bf16 %v1628, %v1627
      %v1658 = vpack.c.bf16 %v1630, %v1629
      %v1659 = vpack.c.bf16 %v1632, %v1631
      %v1660 = vpack.c.bf16 %v1634, %v1633
      %v1661 = vpack.c.bf16 %v1636, %v1635
      %v1662 = vpack.c.bf16 %v1638, %v1637
      %v1663 = vpack.c.bf16 %v1640, %v1639
      %v1664 = vpack.c.bf16 %v1642, %v1641
      %v1665 = vpack.c.bf16 %v1644, %v1643
      %v1666 = vpack.c.bf16 %v1646, %v1645
      %v1667 = vpack.c.bf16 %v1648, %v1647
      %v1668 = vpack.c.bf16 %v1650, %v1649
      %v1669 = vpack.c.bf16 %v1652, %v1651
      %v1670 = vpack.c.bf16 %v1654, %v1653
      %s1671 = scalar_lea.vmem %s1, 12
      %v1672 = vld [vmem:[%s1671] sm:$0x3]
      %v1674 = vsel %vm243, %v1655, 0
      %v1677 = vsel %vm243, %v1656, 0
      %v1680 = vsel %vm243, %v1657, 0
      %v1683 = vsel %vm243, %v1658, 0
      %v1686 = vsel %vm243, %v1659, 0
      %v1689 = vsel %vm243, %v1660, 0
      %v1692 = vsel %vm243, %v1661, 0
      %v1695 = vsel %vm243, %v1662, 0
      %v1698 = vsel %vm243, %v1663, 0
      %v1701 = vsel %vm243, %v1664, 0
      %v1704 = vsel %vm243, %v1665, 0
      %v1707 = vsel %vm243, %v1666, 0
      %v1710 = vsel %vm243, %v1667, 0
      %v1713 = vsel %vm243, %v1668, 0
      %v1716 = vsel %vm243, %v1669, 0
      %v1719 = vsel %vm243, %v1670, 0
      %v1722 = vsel %vm501, %v1672, 0
      %1724 = vmatpush.bf16.msra.mxu0 0
      %1725 = vmatpush.bf16.msra.mxu0 0
      %1726 = vmatpush.bf16.msra.mxu0 0
      %1727 = vmatpush.bf16.msra.mxu0 0
      %1728 = vmatpush.bf16.msra.mxu0 0
      %1729 = vmatpush.bf16.msra.mxu0 0
      %1730 = vmatpush.bf16.msra.mxu0 0
      %1731 = vmatpush.bf16.msra.mxu0 %v1722
      %1732 = vmatmul.bf16.gmra.mxu0 %v1674
      %v1733 = vpop.f32.mrf.mxu0
      %v1734 = vadd.f32 0.0, %v1733
      %v1735 = vpop.f32.mrf.mxu0
      %v1736 = vadd.f32 0.0, %v1735
      %1737 = vmatmul.bf16.gmra.mxu0 %v1677
      %v1738 = vpop.f32.mrf.mxu0
      %v1739 = vadd.f32 0.0, %v1738
      %v1740 = vpop.f32.mrf.mxu0
      %v1741 = vadd.f32 0.0, %v1740
      %1742 = vmatmul.bf16.gmra.mxu0 %v1680
      %v1743 = vpop.f32.mrf.mxu0
      %v1744 = vadd.f32 0.0, %v1743
      %v1745 = vpop.f32.mrf.mxu0
      %v1746 = vadd.f32 0.0, %v1745
      %1747 = vmatmul.bf16.gmra.mxu0 %v1683
      %v1748 = vpop.f32.mrf.mxu0
      %v1749 = vadd.f32 0.0, %v1748
      %v1750 = vpop.f32.mrf.mxu0
      %v1751 = vadd.f32 0.0, %v1750
      %1752 = vmatmul.bf16.gmra.mxu0 %v1686
      %v1753 = vpop.f32.mrf.mxu0
      %v1754 = vadd.f32 0.0, %v1753
      %v1755 = vpop.f32.mrf.mxu0
      %v1756 = vadd.f32 0.0, %v1755
      %1757 = vmatmul.bf16.gmra.mxu0 %v1689
      %v1758 = vpop.f32.mrf.mxu0
      %v1759 = vadd.f32 0.0, %v1758
      %v1760 = vpop.f32.mrf.mxu0
      %v1761 = vadd.f32 0.0, %v1760
      %1762 = vmatmul.bf16.gmra.mxu0 %v1692
      %v1763 = vpop.f32.mrf.mxu0
      %v1764 = vadd.f32 0.0, %v1763
      %v1765 = vpop.f32.mrf.mxu0
      %v1766 = vadd.f32 0.0, %v1765
      %1767 = vmatmul.bf16.gmra.mxu0 %v1695
      %v1768 = vpop.f32.mrf.mxu0
      %v1769 = vadd.f32 0.0, %v1768
      %v1770 = vpop.f32.mrf.mxu0
      %v1771 = vadd.f32 0.0, %v1770
      %1772 = vmatmul.bf16.gmra.mxu0 %v1698
      %v1773 = vpop.f32.mrf.mxu0
      %v1774 = vadd.f32 0.0, %v1773
      %v1775 = vpop.f32.mrf.mxu0
      %v1776 = vadd.f32 0.0, %v1775
      %1777 = vmatmul.bf16.gmra.mxu0 %v1701
      %v1778 = vpop.f32.mrf.mxu0
      %v1779 = vadd.f32 0.0, %v1778
      %v1780 = vpop.f32.mrf.mxu0
      %v1781 = vadd.f32 0.0, %v1780
      %1782 = vmatmul.bf16.gmra.mxu0 %v1704
      %v1783 = vpop.f32.mrf.mxu0
      %v1784 = vadd.f32 0.0, %v1783
      %v1785 = vpop.f32.mrf.mxu0
      %v1786 = vadd.f32 0.0, %v1785
      %1787 = vmatmul.bf16.gmra.mxu0 %v1707
      %v1788 = vpop.f32.mrf.mxu0
      %v1789 = vadd.f32 0.0, %v1788
      %v1790 = vpop.f32.mrf.mxu0
      %v1791 = vadd.f32 0.0, %v1790
      %1792 = vmatmul.bf16.gmra.mxu0 %v1710
      %v1793 = vpop.f32.mrf.mxu0
      %v1794 = vadd.f32 0.0, %v1793
      %v1795 = vpop.f32.mrf.mxu0
      %v1796 = vadd.f32 0.0, %v1795
      %1797 = vmatmul.bf16.gmra.mxu0 %v1713
      %v1798 = vpop.f32.mrf.mxu0
      %v1799 = vadd.f32 0.0, %v1798
      %v1800 = vpop.f32.mrf.mxu0
      %v1801 = vadd.f32 0.0, %v1800
      %1802 = vmatmul.bf16.gmra.mxu0 %v1716
      %v1803 = vpop.f32.mrf.mxu0
      %v1804 = vadd.f32 0.0, %v1803
      %v1805 = vpop.f32.mrf.mxu0
      %v1806 = vadd.f32 0.0, %v1805
      %1807 = vmatmul.bf16.gmra.mxu0 %v1719
      %v1808 = vpop.f32.mrf.mxu0
      %v1809 = vadd.f32 0.0, %v1808
      %v1810 = vpop.f32.mrf.mxu0
      %v1811 = vadd.f32 0.0, %v1810
      %1812 = vdwg.mxu0
      %v1813 = vadd.f32 %v1590, %v1734
      %v1814 = vadd.f32 %v1591, %v1736
      %v1815 = vadd.f32 %v1592, %v1739
      %v1816 = vadd.f32 %v1593, %v1741
      %v1817 = vadd.f32 %v1594, %v1744
      %v1818 = vadd.f32 %v1595, %v1746
      %v1819 = vadd.f32 %v1596, %v1749
      %v1820 = vadd.f32 %v1597, %v1751
      %v1821 = vadd.f32 %v1598, %v1754
      %v1822 = vadd.f32 %v1599, %v1756
      %v1823 = vadd.f32 %v1600, %v1759
      %v1824 = vadd.f32 %v1601, %v1761
      %v1825 = vadd.f32 %v1602, %v1764
      %v1826 = vadd.f32 %v1603, %v1766
      %v1827 = vadd.f32 %v1604, %v1769
      %v1828 = vadd.f32 %v1605, %v1771
      %v1829 = vadd.f32 %v1606, %v1774
      %v1830 = vadd.f32 %v1607, %v1776
      %v1831 = vadd.f32 %v1608, %v1779
      %v1832 = vadd.f32 %v1609, %v1781
      %v1833 = vadd.f32 %v1610, %v1784
      %v1834 = vadd.f32 %v1611, %v1786
      %v1835 = vadd.f32 %v1612, %v1789
      %v1836 = vadd.f32 %v1613, %v1791
      %v1837 = vadd.f32 %v1614, %v1794
      %v1838 = vadd.f32 %v1615, %v1796
      %v1839 = vadd.f32 %v1616, %v1799
      %v1840 = vadd.f32 %v1617, %v1801
      %v1841 = vadd.f32 %v1618, %v1804
      %v1842 = vadd.f32 %v1619, %v1806
      %v1843 = vadd.f32 %v1620, %v1809
      %v1844 = vadd.f32 %v1621, %v1811
      %v1845 = vld [vmem:[%s1622 + $0x1] sm:$0xff]
      %v1846 = vld [vmem:[%s1622 + $0x9] sm:$0xff]
      %v1847 = vld [vmem:[%s1622 + $0x19] sm:$0xff]
      %v1848 = vld [vmem:[%s1622 + $0x21] sm:$0xff]
      %v1849 = vld [vmem:[%s1622 + $0x31] sm:$0xff]
      %v1850 = vld [vmem:[%s1622 + $0x39] sm:$0xff]
      %v1851 = vld [vmem:[%s1622 + $0x49] sm:$0xff]
      %v1852 = vld [vmem:[%s1622 + $0x51] sm:$0xff]
      %v1853 = vld [vmem:[%s1622 + $0x61] sm:$0xff]
      %v1854 = vld [vmem:[%s1622 + $0x69] sm:$0xff]
      %v1855 = vld [vmem:[%s1622 + $0x79] sm:$0xff]
      %v1856 = vld [vmem:[%s1622 + $0x81] sm:$0xff]
      %v1857 = vld [vmem:[%s1622 + $0x91] sm:$0xff]
      %v1858 = vld [vmem:[%s1622 + $0x99] sm:$0xff]
      %v1859 = vld [vmem:[%s1622 + $0xa9] sm:$0xff]
      %v1860 = vld [vmem:[%s1622 + $0xb1] sm:$0xff]
      %v1861 = vld [vmem:[%s1622 + $0xc1] sm:$0xff]
      %v1862 = vld [vmem:[%s1622 + $0xc9] sm:$0xff]
      %v1863 = vld [vmem:[%s1622 + $0xd9] sm:$0xff]
      %v1864 = vld [vmem:[%s1622 + $0xe1] sm:$0xff]
      %v1865 = vld [vmem:[%s1622 + $0xf1] sm:$0xff]
      %v1866 = vld [vmem:[%s1622 + $0xf9] sm:$0xff]
      %v1867 = vld [vmem:[%s1622 + $0x109] sm:$0xff]
      %v1868 = vld [vmem:[%s1622 + $0x111] sm:$0xff]
      %v1869 = vld [vmem:[%s1622 + $0x121] sm:$0xff]
      %v1870 = vld [vmem:[%s1622 + $0x129] sm:$0xff]
      %v1871 = vld [vmem:[%s1622 + $0x139] sm:$0xff]
      %v1872 = vld [vmem:[%s1622 + $0x141] sm:$0xff]
      %v1873 = vld [vmem:[%s1622 + $0x151] sm:$0xff]
      %v1874 = vld [vmem:[%s1622 + $0x159] sm:$0xff]
      %v1875 = vld [vmem:[%s1622 + $0x169] sm:$0xff]
      %v1876 = vld [vmem:[%s1622 + $0x171] sm:$0xff]
      %v1877 = vpack.c.bf16 %v1846, %v1845
      %v1878 = vpack.c.bf16 %v1848, %v1847
      %v1879 = vpack.c.bf16 %v1850, %v1849
      %v1880 = vpack.c.bf16 %v1852, %v1851
      %v1881 = vpack.c.bf16 %v1854, %v1853
      %v1882 = vpack.c.bf16 %v1856, %v1855
      %v1883 = vpack.c.bf16 %v1858, %v1857
      %v1884 = vpack.c.bf16 %v1860, %v1859
      %v1885 = vpack.c.bf16 %v1862, %v1861
      %v1886 = vpack.c.bf16 %v1864, %v1863
      %v1887 = vpack.c.bf16 %v1866, %v1865
      %v1888 = vpack.c.bf16 %v1868, %v1867
      %v1889 = vpack.c.bf16 %v1870, %v1869
      %v1890 = vpack.c.bf16 %v1872, %v1871
      %v1891 = vpack.c.bf16 %v1874, %v1873
      %v1892 = vpack.c.bf16 %v1876, %v1875
      %s1893 = scalar_lea.vmem %s1, 14
      %v1894 = vld [vmem:[%s1893] sm:$0x3]
      %v1896 = vsel %vm243, %v1877, 0
      %v1899 = vsel %vm243, %v1878, 0
      %v1902 = vsel %vm243, %v1879, 0
      %v1905 = vsel %vm243, %v1880, 0
      %v1908 = vsel %vm243, %v1881, 0
      %v1911 = vsel %vm243, %v1882, 0
      %v1914 = vsel %vm243, %v1883, 0
      %v1917 = vsel %vm243, %v1884, 0
      %v1920 = vsel %vm243, %v1885, 0
      %v1923 = vsel %vm243, %v1886, 0
      %v1926 = vsel %vm243, %v1887, 0
      %v1929 = vsel %vm243, %v1888, 0
      %v1932 = vsel %vm243, %v1889, 0
      %v1935 = vsel %vm243, %v1890, 0
      %v1938 = vsel %vm243, %v1891, 0
      %v1941 = vsel %vm243, %v1892, 0
      %v1944 = vsel %vm501, %v1894, 0
      %1946 = vmatpush.bf16.msra.mxu0 0
      %1947 = vmatpush.bf16.msra.mxu0 0
      %1948 = vmatpush.bf16.msra.mxu0 0
      %1949 = vmatpush.bf16.msra.mxu0 0
      %1950 = vmatpush.bf16.msra.mxu0 0
      %1951 = vmatpush.bf16.msra.mxu0 0
      %1952 = vmatpush.bf16.msra.mxu0 0
      %1953 = vmatpush.bf16.msra.mxu0 %v1944
      %1954 = vmatmul.bf16.gmra.mxu0 %v1896
      %v1955 = vpop.f32.mrf.mxu0
      %v1956 = vadd.f32 0.0, %v1955
      %v1957 = vpop.f32.mrf.mxu0
      %v1958 = vadd.f32 0.0, %v1957
      %1959 = vmatmul.bf16.gmra.mxu0 %v1899
      %v1960 = vpop.f32.mrf.mxu0
      %v1961 = vadd.f32 0.0, %v1960
      %v1962 = vpop.f32.mrf.mxu0
      %v1963 = vadd.f32 0.0, %v1962
      %1964 = vmatmul.bf16.gmra.mxu0 %v1902
      %v1965 = vpop.f32.mrf.mxu0
      %v1966 = vadd.f32 0.0, %v1965
      %v1967 = vpop.f32.mrf.mxu0
      %v1968 = vadd.f32 0.0, %v1967
      %1969 = vmatmul.bf16.gmra.mxu0 %v1905
      %v1970 = vpop.f32.mrf.mxu0
      %v1971 = vadd.f32 0.0, %v1970
      %v1972 = vpop.f32.mrf.mxu0
      %v1973 = vadd.f32 0.0, %v1972
      %1974 = vmatmul.bf16.gmra.mxu0 %v1908
      %v1975 = vpop.f32.mrf.mxu0
      %v1976 = vadd.f32 0.0, %v1975
      %v1977 = vpop.f32.mrf.mxu0
      %v1978 = vadd.f32 0.0, %v1977
      %1979 = vmatmul.bf16.gmra.mxu0 %v1911
      %v1980 = vpop.f32.mrf.mxu0
      %v1981 = vadd.f32 0.0, %v1980
      %v1982 = vpop.f32.mrf.mxu0
      %v1983 = vadd.f32 0.0, %v1982
      %1984 = vmatmul.bf16.gmra.mxu0 %v1914
      %v1985 = vpop.f32.mrf.mxu0
      %v1986 = vadd.f32 0.0, %v1985
      %v1987 = vpop.f32.mrf.mxu0
      %v1988 = vadd.f32 0.0, %v1987
      %1989 = vmatmul.bf16.gmra.mxu0 %v1917
      %v1990 = vpop.f32.mrf.mxu0
      %v1991 = vadd.f32 0.0, %v1990
      %v1992 = vpop.f32.mrf.mxu0
      %v1993 = vadd.f32 0.0, %v1992
      %1994 = vmatmul.bf16.gmra.mxu0 %v1920
      %v1995 = vpop.f32.mrf.mxu0
      %v1996 = vadd.f32 0.0, %v1995
      %v1997 = vpop.f32.mrf.mxu0
      %v1998 = vadd.f32 0.0, %v1997
      %1999 = vmatmul.bf16.gmra.mxu0 %v1923
      %v2000 = vpop.f32.mrf.mxu0
      %v2001 = vadd.f32 0.0, %v2000
      %v2002 = vpop.f32.mrf.mxu0
      %v2003 = vadd.f32 0.0, %v2002
      %2004 = vmatmul.bf16.gmra.mxu0 %v1926
      %v2005 = vpop.f32.mrf.mxu0
      %v2006 = vadd.f32 0.0, %v2005
      %v2007 = vpop.f32.mrf.mxu0
      %v2008 = vadd.f32 0.0, %v2007
      %2009 = vmatmul.bf16.gmra.mxu0 %v1929
      %v2010 = vpop.f32.mrf.mxu0
      %v2011 = vadd.f32 0.0, %v2010
      %v2012 = vpop.f32.mrf.mxu0
      %v2013 = vadd.f32 0.0, %v2012
      %2014 = vmatmul.bf16.gmra.mxu0 %v1932
      %v2015 = vpop.f32.mrf.mxu0
      %v2016 = vadd.f32 0.0, %v2015
      %v2017 = vpop.f32.mrf.mxu0
      %v2018 = vadd.f32 0.0, %v2017
      %2019 = vmatmul.bf16.gmra.mxu0 %v1935
      %v2020 = vpop.f32.mrf.mxu0
      %v2021 = vadd.f32 0.0, %v2020
      %v2022 = vpop.f32.mrf.mxu0
      %v2023 = vadd.f32 0.0, %v2022
      %2024 = vmatmul.bf16.gmra.mxu0 %v1938
      %v2025 = vpop.f32.mrf.mxu0
      %v2026 = vadd.f32 0.0, %v2025
      %v2027 = vpop.f32.mrf.mxu0
      %v2028 = vadd.f32 0.0, %v2027
      %2029 = vmatmul.bf16.gmra.mxu0 %v1941
      %v2030 = vpop.f32.mrf.mxu0
      %v2031 = vadd.f32 0.0, %v2030
      %v2032 = vpop.f32.mrf.mxu0
      %v2033 = vadd.f32 0.0, %v2032
      %2034 = vdwg.mxu0
      %v2035 = vadd.f32 %v1813, %v1956
      %v2036 = vadd.f32 %v1814, %v1958
      %v2037 = vadd.f32 %v1815, %v1961
      %v2038 = vadd.f32 %v1816, %v1963
      %v2039 = vadd.f32 %v1817, %v1966
      %v2040 = vadd.f32 %v1818, %v1968
      %v2041 = vadd.f32 %v1819, %v1971
      %v2042 = vadd.f32 %v1820, %v1973
      %v2043 = vadd.f32 %v1821, %v1976
      %v2044 = vadd.f32 %v1822, %v1978
      %v2045 = vadd.f32 %v1823, %v1981
      %v2046 = vadd.f32 %v1824, %v1983
      %v2047 = vadd.f32 %v1825, %v1986
      %v2048 = vadd.f32 %v1826, %v1988
      %v2049 = vadd.f32 %v1827, %v1991
      %v2050 = vadd.f32 %v1828, %v1993
      %v2051 = vadd.f32 %v1829, %v1996
      %v2052 = vadd.f32 %v1830, %v1998
      %v2053 = vadd.f32 %v1831, %v2001
      %v2054 = vadd.f32 %v1832, %v2003
      %v2055 = vadd.f32 %v1833, %v2006
      %v2056 = vadd.f32 %v1834, %v2008
      %v2057 = vadd.f32 %v1835, %v2011
      %v2058 = vadd.f32 %v1836, %v2013
      %v2059 = vadd.f32 %v1837, %v2016
      %v2060 = vadd.f32 %v1838, %v2018
      %v2061 = vadd.f32 %v1839, %v2021
      %v2062 = vadd.f32 %v1840, %v2023
      %v2063 = vadd.f32 %v1841, %v2026
      %v2064 = vadd.f32 %v1842, %v2028
      %v2065 = vadd.f32 %v1843, %v2031
      %v2066 = vadd.f32 %v1844, %v2033
      %v2067 = vld [vmem:[%s1622 + $0x2] sm:$0xff]
      %v2068 = vld [vmem:[%s1622 + $0xa] sm:$0xff]
      %v2069 = vld [vmem:[%s1622 + $0x1a] sm:$0xff]
      %v2070 = vld [vmem:[%s1622 + $0x22] sm:$0xff]
      %v2071 = vld [vmem:[%s1622 + $0x32] sm:$0xff]
      %v2072 = vld [vmem:[%s1622 + $0x3a] sm:$0xff]
      %v2073 = vld [vmem:[%s1622 + $0x4a] sm:$0xff]
      %v2074 = vld [vmem:[%s1622 + $0x52] sm:$0xff]
      %v2075 = vld [vmem:[%s1622 + $0x62] sm:$0xff]
      %v2076 = vld [vmem:[%s1622 + $0x6a] sm:$0xff]
      %v2077 = vld [vmem:[%s1622 + $0x7a] sm:$0xff]
      %v2078 = vld [vmem:[%s1622 + $0x82] sm:$0xff]
      %v2079 = vld [vmem:[%s1622 + $0x92] sm:$0xff]
      %v2080 = vld [vmem:[%s1622 + $0x9a] sm:$0xff]
      %v2081 = vld [vmem:[%s1622 + $0xaa] sm:$0xff]
      %v2082 = vld [vmem:[%s1622 + $0xb2] sm:$0xff]
      %v2083 = vld [vmem:[%s1622 + $0xc2] sm:$0xff]
      %v2084 = vld [vmem:[%s1622 + $0xca] sm:$0xff]
      %v2085 = vld [vmem:[%s1622 + $0xda] sm:$0xff]
      %v2086 = vld [vmem:[%s1622 + $0xe2] sm:$0xff]
      %v2087 = vld [vmem:[%s1622 + $0xf2] sm:$0xff]
      %v2088 = vld [vmem:[%s1622 + $0xfa] sm:$0xff]
      %v2089 = vld [vmem:[%s1622 + $0x10a] sm:$0xff]
      %v2090 = vld [vmem:[%s1622 + $0x112] sm:$0xff]
      %v2091 = vld [vmem:[%s1622 + $0x122] sm:$0xff]
      %v2092 = vld [vmem:[%s1622 + $0x12a] sm:$0xff]
      %v2093 = vld [vmem:[%s1622 + $0x13a] sm:$0xff]
      %v2094 = vld [vmem:[%s1622 + $0x142] sm:$0xff]
      %v2095 = vld [vmem:[%s1622 + $0x152] sm:$0xff]
      %v2096 = vld [vmem:[%s1622 + $0x15a] sm:$0xff]
      %v2097 = vld [vmem:[%s1622 + $0x16a] sm:$0xff]
      %v2098 = vld [vmem:[%s1622 + $0x172] sm:$0xff]
      %v2099 = vpack.c.bf16 %v2068, %v2067
      %v2100 = vpack.c.bf16 %v2070, %v2069
      %v2101 = vpack.c.bf16 %v2072, %v2071
      %v2102 = vpack.c.bf16 %v2074, %v2073
      %v2103 = vpack.c.bf16 %v2076, %v2075
      %v2104 = vpack.c.bf16 %v2078, %v2077
      %v2105 = vpack.c.bf16 %v2080, %v2079
      %v2106 = vpack.c.bf16 %v2082, %v2081
      %v2107 = vpack.c.bf16 %v2084, %v2083
      %v2108 = vpack.c.bf16 %v2086, %v2085
      %v2109 = vpack.c.bf16 %v2088, %v2087
      %v2110 = vpack.c.bf16 %v2090, %v2089
      %v2111 = vpack.c.bf16 %v2092, %v2091
      %v2112 = vpack.c.bf16 %v2094, %v2093
      %v2113 = vpack.c.bf16 %v2096, %v2095
      %v2114 = vpack.c.bf16 %v2098, %v2097
      %s2115 = scalar_lea.vmem %s1, 16
      %v2116 = vld [vmem:[%s2115] sm:$0x3]
      %v2118 = vsel %vm243, %v2099, 0
      %v2121 = vsel %vm243, %v2100, 0
      %v2124 = vsel %vm243, %v2101, 0
      %v2127 = vsel %vm243, %v2102, 0
      %v2130 = vsel %vm243, %v2103, 0
      %v2133 = vsel %vm243, %v2104, 0
      %v2136 = vsel %vm243, %v2105, 0
      %v2139 = vsel %vm243, %v2106, 0
      %v2142 = vsel %vm243, %v2107, 0
      %v2145 = vsel %vm243, %v2108, 0
      %v2148 = vsel %vm243, %v2109, 0
      %v2151 = vsel %vm243, %v2110, 0
      %v2154 = vsel %vm243, %v2111, 0
      %v2157 = vsel %vm243, %v2112, 0
      %v2160 = vsel %vm243, %v2113, 0
      %v2163 = vsel %vm243, %v2114, 0
      %v2166 = vsel %vm501, %v2116, 0
      %2168 = vmatpush.bf16.msra.mxu0 0
      %2169 = vmatpush.bf16.msra.mxu0 0
      %2170 = vmatpush.bf16.msra.mxu0 0
      %2171 = vmatpush.bf16.msra.mxu0 0
      %2172 = vmatpush.bf16.msra.mxu0 0
      %2173 = vmatpush.bf16.msra.mxu0 0
      %2174 = vmatpush.bf16.msra.mxu0 0
      %2175 = vmatpush.bf16.msra.mxu0 %v2166
      %2176 = vmatmul.bf16.gmra.mxu0 %v2118
      %v2177 = vpop.f32.mrf.mxu0
      %v2178 = vadd.f32 0.0, %v2177
      %v2179 = vpop.f32.mrf.mxu0
      %v2180 = vadd.f32 0.0, %v2179
      %2181 = vmatmul.bf16.gmra.mxu0 %v2121
      %v2182 = vpop.f32.mrf.mxu0
      %v2183 = vadd.f32 0.0, %v2182
      %v2184 = vpop.f32.mrf.mxu0
      %v2185 = vadd.f32 0.0, %v2184
      %2186 = vmatmul.bf16.gmra.mxu0 %v2124
      %v2187 = vpop.f32.mrf.mxu0
      %v2188 = vadd.f32 0.0, %v2187
      %v2189 = vpop.f32.mrf.mxu0
      %v2190 = vadd.f32 0.0, %v2189
      %2191 = vmatmul.bf16.gmra.mxu0 %v2127
      %v2192 = vpop.f32.mrf.mxu0
      %v2193 = vadd.f32 0.0, %v2192
      %v2194 = vpop.f32.mrf.mxu0
      %v2195 = vadd.f32 0.0, %v2194
      %2196 = vmatmul.bf16.gmra.mxu0 %v2130
      %v2197 = vpop.f32.mrf.mxu0
      %v2198 = vadd.f32 0.0, %v2197
      %v2199 = vpop.f32.mrf.mxu0
      %v2200 = vadd.f32 0.0, %v2199
      %2201 = vmatmul.bf16.gmra.mxu0 %v2133
      %v2202 = vpop.f32.mrf.mxu0
      %v2203 = vadd.f32 0.0, %v2202
      %v2204 = vpop.f32.mrf.mxu0
      %v2205 = vadd.f32 0.0, %v2204
      %2206 = vmatmul.bf16.gmra.mxu0 %v2136
      %v2207 = vpop.f32.mrf.mxu0
      %v2208 = vadd.f32 0.0, %v2207
      %v2209 = vpop.f32.mrf.mxu0
      %v2210 = vadd.f32 0.0, %v2209
      %2211 = vmatmul.bf16.gmra.mxu0 %v2139
      %v2212 = vpop.f32.mrf.mxu0
      %v2213 = vadd.f32 0.0, %v2212
      %v2214 = vpop.f32.mrf.mxu0
      %v2215 = vadd.f32 0.0, %v2214
      %2216 = vmatmul.bf16.gmra.mxu0 %v2142
      %v2217 = vpop.f32.mrf.mxu0
      %v2218 = vadd.f32 0.0, %v2217
      %v2219 = vpop.f32.mrf.mxu0
      %v2220 = vadd.f32 0.0, %v2219
      %2221 = vmatmul.bf16.gmra.mxu0 %v2145
      %v2222 = vpop.f32.mrf.mxu0
      %v2223 = vadd.f32 0.0, %v2222
      %v2224 = vpop.f32.mrf.mxu0
      %v2225 = vadd.f32 0.0, %v2224
      %2226 = vmatmul.bf16.gmra.mxu0 %v2148
      %v2227 = vpop.f32.mrf.mxu0
      %v2228 = vadd.f32 0.0, %v2227
      %v2229 = vpop.f32.mrf.mxu0
      %v2230 = vadd.f32 0.0, %v2229
      %2231 = vmatmul.bf16.gmra.mxu0 %v2151
      %v2232 = vpop.f32.mrf.mxu0
      %v2233 = vadd.f32 0.0, %v2232
      %v2234 = vpop.f32.mrf.mxu0
      %v2235 = vadd.f32 0.0, %v2234
      %2236 = vmatmul.bf16.gmra.mxu0 %v2154
      %v2237 = vpop.f32.mrf.mxu0
      %v2238 = vadd.f32 0.0, %v2237
      %v2239 = vpop.f32.mrf.mxu0
      %v2240 = vadd.f32 0.0, %v2239
      %2241 = vmatmul.bf16.gmra.mxu0 %v2157
      %v2242 = vpop.f32.mrf.mxu0
      %v2243 = vadd.f32 0.0, %v2242
      %v2244 = vpop.f32.mrf.mxu0
      %v2245 = vadd.f32 0.0, %v2244
      %2246 = vmatmul.bf16.gmra.mxu0 %v2160
      %v2247 = vpop.f32.mrf.mxu0
      %v2248 = vadd.f32 0.0, %v2247
      %v2249 = vpop.f32.mrf.mxu0
      %v2250 = vadd.f32 0.0, %v2249
      %2251 = vmatmul.bf16.gmra.mxu0 %v2163
      %v2252 = vpop.f32.mrf.mxu0
      %v2253 = vadd.f32 0.0, %v2252
      %v2254 = vpop.f32.mrf.mxu0
      %v2255 = vadd.f32 0.0, %v2254
      %2256 = vdwg.mxu0
      %v2257 = vadd.f32 %v2035, %v2178
      %v2258 = vadd.f32 %v2036, %v2180
      %v2259 = vadd.f32 %v2037, %v2183
      %v2260 = vadd.f32 %v2038, %v2185
      %v2261 = vadd.f32 %v2039, %v2188
      %v2262 = vadd.f32 %v2040, %v2190
      %v2263 = vadd.f32 %v2041, %v2193
      %v2264 = vadd.f32 %v2042, %v2195
      %v2265 = vadd.f32 %v2043, %v2198
      %v2266 = vadd.f32 %v2044, %v2200
      %v2267 = vadd.f32 %v2045, %v2203
      %v2268 = vadd.f32 %v2046, %v2205
      %v2269 = vadd.f32 %v2047, %v2208
      %v2270 = vadd.f32 %v2048, %v2210
      %v2271 = vadd.f32 %v2049, %v2213
      %v2272 = vadd.f32 %v2050, %v2215
      %v2273 = vadd.f32 %v2051, %v2218
      %v2274 = vadd.f32 %v2052, %v2220
      %v2275 = vadd.f32 %v2053, %v2223
      %v2276 = vadd.f32 %v2054, %v2225
      %v2277 = vadd.f32 %v2055, %v2228
      %v2278 = vadd.f32 %v2056, %v2230
      %v2279 = vadd.f32 %v2057, %v2233
      %v2280 = vadd.f32 %v2058, %v2235
      %v2281 = vadd.f32 %v2059, %v2238
      %v2282 = vadd.f32 %v2060, %v2240
      %v2283 = vadd.f32 %v2061, %v2243
      %v2284 = vadd.f32 %v2062, %v2245
      %v2285 = vadd.f32 %v2063, %v2248
      %v2286 = vadd.f32 %v2064, %v2250
      %v2287 = vadd.f32 %v2065, %v2253
      %v2288 = vadd.f32 %v2066, %v2255
      %v2289 = vld [vmem:[%s2] sm:$0x1]
      %v2291 = vperm.slane %v2289, 0
      %v2293 = vadd.f32 %v2257, %v2291
      %v2294 = vadd.f32 %v2258, %v2291
      %v2295 = vadd.f32 %v2259, %v2291
      %v2296 = vadd.f32 %v2260, %v2291
      %v2297 = vadd.f32 %v2261, %v2291
      %v2298 = vadd.f32 %v2262, %v2291
      %v2299 = vadd.f32 %v2263, %v2291
      %v2300 = vadd.f32 %v2264, %v2291
      %v2301 = vadd.f32 %v2265, %v2291
      %v2302 = vadd.f32 %v2266, %v2291
      %v2303 = vadd.f32 %v2267, %v2291
      %v2304 = vadd.f32 %v2268, %v2291
      %v2305 = vadd.f32 %v2269, %v2291
      %v2306 = vadd.f32 %v2270, %v2291
      %v2307 = vadd.f32 %v2271, %v2291
      %v2308 = vadd.f32 %v2272, %v2291
      %v2309 = vadd.f32 %v2273, %v2291
      %v2310 = vadd.f32 %v2274, %v2291
      %v2311 = vadd.f32 %v2275, %v2291
      %v2312 = vadd.f32 %v2276, %v2291
      %v2313 = vadd.f32 %v2277, %v2291
      %v2314 = vadd.f32 %v2278, %v2291
      %v2315 = vadd.f32 %v2279, %v2291
      %v2316 = vadd.f32 %v2280, %v2291
      %v2317 = vadd.f32 %v2281, %v2291
      %v2318 = vadd.f32 %v2282, %v2291
      %v2319 = vadd.f32 %v2283, %v2291
      %v2320 = vadd.f32 %v2284, %v2291
      %v2321 = vadd.f32 %v2285, %v2291
      %v2322 = vadd.f32 %v2286, %v2291
      %v2323 = vadd.f32 %v2287, %v2291
      %v2324 = vadd.f32 %v2288, %v2291
      %vm2325 = vcmp.ge.f32.partialorder %v2293, 0.0
      %vm2326 = vcmp.ge.f32.partialorder %v2294, 0.0
      %vm2327 = vcmp.ge.f32.partialorder %v2295, 0.0
      %vm2328 = vcmp.ge.f32.partialorder %v2296, 0.0
      %vm2329 = vcmp.ge.f32.partialorder %v2297, 0.0
      %vm2330 = vcmp.ge.f32.partialorder %v2298, 0.0
      %vm2331 = vcmp.ge.f32.partialorder %v2299, 0.0
      %vm2332 = vcmp.ge.f32.partialorder %v2300, 0.0
      %vm2333 = vcmp.ge.f32.partialorder %v2301, 0.0
      %vm2334 = vcmp.ge.f32.partialorder %v2302, 0.0
      %vm2335 = vcmp.ge.f32.partialorder %v2303, 0.0
      %vm2336 = vcmp.ge.f32.partialorder %v2304, 0.0
      %vm2337 = vcmp.ge.f32.partialorder %v2305, 0.0
      %vm2338 = vcmp.ge.f32.partialorder %v2306, 0.0
      %vm2339 = vcmp.ge.f32.partialorder %v2307, 0.0
      %vm2340 = vcmp.ge.f32.partialorder %v2308, 0.0
      %vm2341 = vcmp.ge.f32.partialorder %v2309, 0.0
      %vm2342 = vcmp.ge.f32.partialorder %v2310, 0.0
      %vm2343 = vcmp.ge.f32.partialorder %v2311, 0.0
      %vm2344 = vcmp.ge.f32.partialorder %v2312, 0.0
      %vm2345 = vcmp.ge.f32.partialorder %v2313, 0.0
      %vm2346 = vcmp.ge.f32.partialorder %v2314, 0.0
      %vm2347 = vcmp.ge.f32.partialorder %v2315, 0.0
      %vm2348 = vcmp.ge.f32.partialorder %v2316, 0.0
      %vm2349 = vcmp.ge.f32.partialorder %v2317, 0.0
      %vm2350 = vcmp.ge.f32.partialorder %v2318, 0.0
      %vm2351 = vcmp.ge.f32.partialorder %v2319, 0.0
      %vm2352 = vcmp.ge.f32.partialorder %v2320, 0.0
      %vm2353 = vcmp.ge.f32.partialorder %v2321, 0.0
      %vm2354 = vcmp.ge.f32.partialorder %v2322, 0.0
      %vm2355 = vcmp.ge.f32.partialorder %v2323, 0.0
      %vm2356 = vcmp.ge.f32.partialorder %v2324, 0.0
      %v2357 = vmul.f32 %v2293, 0.01
      %v2358 = vmul.f32 %v2294, 0.01
      %v2359 = vmul.f32 %v2295, 0.01
      %v2360 = vmul.f32 %v2296, 0.01
      %v2361 = vmul.f32 %v2297, 0.01
      %v2362 = vmul.f32 %v2298, 0.01
      %v2363 = vmul.f32 %v2299, 0.01
      %v2364 = vmul.f32 %v2300, 0.01
      %v2365 = vmul.f32 %v2301, 0.01
      %v2366 = vmul.f32 %v2302, 0.01
      %v2367 = vmul.f32 %v2303, 0.01
      %v2368 = vmul.f32 %v2304, 0.01
      %v2369 = vmul.f32 %v2305, 0.01
      %v2370 = vmul.f32 %v2306, 0.01
      %v2371 = vmul.f32 %v2307, 0.01
      %v2372 = vmul.f32 %v2308, 0.01
      %v2373 = vmul.f32 %v2309, 0.01
      %v2374 = vmul.f32 %v2310, 0.01
      %v2375 = vmul.f32 %v2311, 0.01
      %v2376 = vmul.f32 %v2312, 0.01
      %v2377 = vmul.f32 %v2313, 0.01
      %v2378 = vmul.f32 %v2314, 0.01
      %v2379 = vmul.f32 %v2315, 0.01
      %v2380 = vmul.f32 %v2316, 0.01
      %v2381 = vmul.f32 %v2317, 0.01
      %v2382 = vmul.f32 %v2318, 0.01
      %v2383 = vmul.f32 %v2319, 0.01
      %v2384 = vmul.f32 %v2320, 0.01
      %v2385 = vmul.f32 %v2321, 0.01
      %v2386 = vmul.f32 %v2322, 0.01
      %v2387 = vmul.f32 %v2323, 0.01
      %v2388 = vmul.f32 %v2324, 0.01
      %v2389 = vsel %vm2325, %v2293, %v2357
      %v2390 = vsel %vm2326, %v2294, %v2358
      %v2391 = vsel %vm2327, %v2295, %v2359
      %v2392 = vsel %vm2328, %v2296, %v2360
      %v2393 = vsel %vm2329, %v2297, %v2361
      %v2394 = vsel %vm2330, %v2298, %v2362
      %v2395 = vsel %vm2331, %v2299, %v2363
      %v2396 = vsel %vm2332, %v2300, %v2364
      %v2397 = vsel %vm2333, %v2301, %v2365
      %v2398 = vsel %vm2334, %v2302, %v2366
      %v2399 = vsel %vm2335, %v2303, %v2367
      %v2400 = vsel %vm2336, %v2304, %v2368
      %v2401 = vsel %vm2337, %v2305, %v2369
      %v2402 = vsel %vm2338, %v2306, %v2370
      %v2403 = vsel %vm2339, %v2307, %v2371
      %v2404 = vsel %vm2340, %v2308, %v2372
      %v2405 = vsel %vm2341, %v2309, %v2373
      %v2406 = vsel %vm2342, %v2310, %v2374
      %v2407 = vsel %vm2343, %v2311, %v2375
      %v2408 = vsel %vm2344, %v2312, %v2376
      %v2409 = vsel %vm2345, %v2313, %v2377
      %v2410 = vsel %vm2346, %v2314, %v2378
      %v2411 = vsel %vm2347, %v2315, %v2379
      %v2412 = vsel %vm2348, %v2316, %v2380
      %v2413 = vsel %vm2349, %v2317, %v2381
      %v2414 = vsel %vm2350, %v2318, %v2382
      %v2415 = vsel %vm2351, %v2319, %v2383
      %v2416 = vsel %vm2352, %v2320, %v2384
      %v2417 = vsel %vm2353, %v2321, %v2385
      %v2418 = vsel %vm2354, %v2322, %v2386
      %v2419 = vsel %vm2355, %v2323, %v2387
      %v2420 = vsel %vm2356, %v2324, %v2388
      %v2421 = vpack.c.bf16 %v2389, %v2389
      %v2422 = vpack.c.bf16 %v2390, %v2390
      %v2423 = vpack.c.bf16 %v2391, %v2391
      %v2424 = vpack.c.bf16 %v2392, %v2392
      %v2425 = vpack.c.bf16 %v2393, %v2393
      %v2426 = vpack.c.bf16 %v2394, %v2394
      %v2427 = vpack.c.bf16 %v2395, %v2395
      %v2428 = vpack.c.bf16 %v2396, %v2396
      %v2429 = vpack.c.bf16 %v2397, %v2397
      %v2430 = vpack.c.bf16 %v2398, %v2398
      %v2431 = vpack.c.bf16 %v2399, %v2399
      %v2432 = vpack.c.bf16 %v2400, %v2400
      %v2433 = vpack.c.bf16 %v2401, %v2401
      %v2434 = vpack.c.bf16 %v2402, %v2402
      %v2435 = vpack.c.bf16 %v2403, %v2403
      %v2436 = vpack.c.bf16 %v2404, %v2404
      %v2437 = vpack.c.bf16 %v2405, %v2405
      %v2438 = vpack.c.bf16 %v2406, %v2406
      %v2439 = vpack.c.bf16 %v2407, %v2407
      %v2440 = vpack.c.bf16 %v2408, %v2408
      %v2441 = vpack.c.bf16 %v2409, %v2409
      %v2442 = vpack.c.bf16 %v2410, %v2410
      %v2443 = vpack.c.bf16 %v2411, %v2411
      %v2444 = vpack.c.bf16 %v2412, %v2412
      %v2445 = vpack.c.bf16 %v2413, %v2413
      %v2446 = vpack.c.bf16 %v2414, %v2414
      %v2447 = vpack.c.bf16 %v2415, %v2415
      %v2448 = vpack.c.bf16 %v2416, %v2416
      %v2449 = vpack.c.bf16 %v2417, %v2417
      %v2450 = vpack.c.bf16 %v2418, %v2418
      %v2451 = vpack.c.bf16 %v2419, %v2419
      %v2452 = vpack.c.bf16 %v2420, %v2420
      %vm2453 = vcmask 27648
      %2454 = vst.msk [vmem:[%s235] sm:$0xf] %vm2453, %v2421
      %2455 = vst.msk [vmem:[%s235 + $0x4] sm:$0xf] %vm2453, %v2422
      %2456 = vst.msk [vmem:[%s235 + $0x8] sm:$0xf] %vm2453, %v2423
      %2457 = vst.msk [vmem:[%s235 + $0xc] sm:$0xf] %vm2453, %v2424
      %2458 = vst.msk [vmem:[%s235 + $0x10] sm:$0xf] %vm2453, %v2425
      %2459 = vst.msk [vmem:[%s235 + $0x14] sm:$0xf] %vm2453, %v2426
      %2460 = vst.msk [vmem:[%s235 + $0x18] sm:$0xf] %vm2453, %v2427
      %2461 = vst.msk [vmem:[%s235 + $0x1c] sm:$0xf] %vm2453, %v2428
      %2462 = vst.msk [vmem:[%s235 + $0x20] sm:$0xf] %vm2453, %v2429
      %2463 = vst.msk [vmem:[%s235 + $0x24] sm:$0xf] %vm2453, %v2430
      %2464 = vst.msk [vmem:[%s235 + $0x28] sm:$0xf] %vm2453, %v2431
      %2465 = vst.msk [vmem:[%s235 + $0x2c] sm:$0xf] %vm2453, %v2432
      %2466 = vst.msk [vmem:[%s235 + $0x30] sm:$0xf] %vm2453, %v2433
      %2467 = vst.msk [vmem:[%s235 + $0x34] sm:$0xf] %vm2453, %v2434
      %2468 = vst.msk [vmem:[%s235 + $0x38] sm:$0xf] %vm2453, %v2435
      %2469 = vst.msk [vmem:[%s235 + $0x3c] sm:$0xf] %vm2453, %v2436
      %2470 = vst.msk [vmem:[%s235 + $0x40] sm:$0xf] %vm2453, %v2437
      %2471 = vst.msk [vmem:[%s235 + $0x44] sm:$0xf] %vm2453, %v2438
      %2472 = vst.msk [vmem:[%s235 + $0x48] sm:$0xf] %vm2453, %v2439
      %2473 = vst.msk [vmem:[%s235 + $0x4c] sm:$0xf] %vm2453, %v2440
      %2474 = vst.msk [vmem:[%s235 + $0x50] sm:$0xf] %vm2453, %v2441
      %2475 = vst.msk [vmem:[%s235 + $0x54] sm:$0xf] %vm2453, %v2442
      %2476 = vst.msk [vmem:[%s235 + $0x58] sm:$0xf] %vm2453, %v2443
      %2477 = vst.msk [vmem:[%s235 + $0x5c] sm:$0xf] %vm2453, %v2444
      %2478 = vst.msk [vmem:[%s235 + $0x60] sm:$0xf] %vm2453, %v2445
      %2479 = vst.msk [vmem:[%s235 + $0x64] sm:$0xf] %vm2453, %v2446
      %2480 = vst.msk [vmem:[%s235 + $0x68] sm:$0xf] %vm2453, %v2447
      %2481 = vst.msk [vmem:[%s235 + $0x6c] sm:$0xf] %vm2453, %v2448
      %2482 = vst.msk [vmem:[%s235 + $0x70] sm:$0xf] %vm2453, %v2449
      %2483 = vst.msk [vmem:[%s235 + $0x74] sm:$0xf] %vm2453, %v2450
      %2484 = vst.msk [vmem:[%s235 + $0x78] sm:$0xf] %vm2453, %v2451
      %2485 = vst.msk [vmem:[%s235 + $0x7c] sm:$0xf] %vm2453, %v2452
      %v2486 = vsel %vm243, %v2389, 0.0
      %v2487 = vsel %vm243, %v2390, 0.0
      %v2488 = vadd.f32 %v2486, %v2487
      %v2489 = vsel %vm243, %v2391, 0.0
      %v2490 = vadd.f32 %v2488, %v2489
      %v2491 = vsel %vm243, %v2392, 0.0
      %v2492 = vadd.f32 %v2490, %v2491
      %v2493 = vsel %vm243, %v2393, 0.0
      %v2494 = vadd.f32 %v2492, %v2493
      %v2495 = vsel %vm243, %v2394, 0.0
      %v2496 = vadd.f32 %v2494, %v2495
      %v2497 = vsel %vm243, %v2395, 0.0
      %v2498 = vadd.f32 %v2496, %v2497
      %v2499 = vsel %vm243, %v2396, 0.0
      %v2500 = vadd.f32 %v2498, %v2499
      %v2501 = vsel %vm243, %v2397, 0.0
      %v2502 = vadd.f32 %v2500, %v2501
      %v2503 = vsel %vm243, %v2398, 0.0
      %v2504 = vadd.f32 %v2502, %v2503
      %v2505 = vsel %vm243, %v2399, 0.0
      %v2506 = vadd.f32 %v2504, %v2505
      %v2507 = vsel %vm243, %v2400, 0.0
      %v2508 = vadd.f32 %v2506, %v2507
      %v2509 = vsel %vm243, %v2401, 0.0
      %v2510 = vadd.f32 %v2508, %v2509
      %v2511 = vsel %vm243, %v2402, 0.0
      %v2512 = vadd.f32 %v2510, %v2511
      %v2513 = vsel %vm243, %v2403, 0.0
      %v2514 = vadd.f32 %v2512, %v2513
      %v2515 = vsel %vm243, %v2404, 0.0
      %v2516 = vadd.f32 %v2514, %v2515
      %v2517 = vsel %vm243, %v2405, 0.0
      %v2518 = vadd.f32 %v2516, %v2517
      %v2519 = vsel %vm243, %v2406, 0.0
      %v2520 = vadd.f32 %v2518, %v2519
      %v2521 = vsel %vm243, %v2407, 0.0
      %v2522 = vadd.f32 %v2520, %v2521
      %v2523 = vsel %vm243, %v2408, 0.0
      %v2524 = vadd.f32 %v2522, %v2523
      %v2525 = vsel %vm243, %v2409, 0.0
      %v2526 = vadd.f32 %v2524, %v2525
      %v2527 = vsel %vm243, %v2410, 0.0
      %v2528 = vadd.f32 %v2526, %v2527
      %v2529 = vsel %vm243, %v2411, 0.0
      %v2530 = vadd.f32 %v2528, %v2529
      %v2531 = vsel %vm243, %v2412, 0.0
      %v2532 = vadd.f32 %v2530, %v2531
      %v2533 = vsel %vm243, %v2413, 0.0
      %v2534 = vadd.f32 %v2532, %v2533
      %v2535 = vsel %vm243, %v2414, 0.0
      %v2536 = vadd.f32 %v2534, %v2535
      %v2537 = vsel %vm243, %v2415, 0.0
      %v2538 = vadd.f32 %v2536, %v2537
      %v2539 = vsel %vm243, %v2416, 0.0
      %v2540 = vadd.f32 %v2538, %v2539
      %v2541 = vsel %vm243, %v2417, 0.0
      %v2542 = vadd.f32 %v2540, %v2541
      %v2543 = vsel %vm243, %v2418, 0.0
      %v2544 = vadd.f32 %v2542, %v2543
      %v2545 = vsel %vm243, %v2419, 0.0
      %v2546 = vadd.f32 %v2544, %v2545
      %v2547 = vsel %vm243, %v2420, 0.0
      %v2548 = vadd.f32 %v2546, %v2547
      %v2549 = vrot.slane %v2548, 4
      %v2550 = vadd.f32 %v2548, %v2549
      %v2551 = vrot.slane %v2550, 2
      %v2552 = vadd.f32 %v2550, %v2551
      %v2553 = vrot.slane %v2552, 1
      %v2554 = vadd.f32 %v2552, %v2553
      %2555 = vst.msk [vmem:[%s238] sm:$0x1] %vm252, %v2554
      %v2556 = vmul.f32 %v2389, %v2389
      %v2557 = vmul.f32 %v2390, %v2390
      %v2558 = vmul.f32 %v2391, %v2391
      %v2559 = vmul.f32 %v2392, %v2392
      %v2560 = vmul.f32 %v2393, %v2393
      %v2561 = vmul.f32 %v2394, %v2394
      %v2562 = vmul.f32 %v2395, %v2395
      %v2563 = vmul.f32 %v2396, %v2396
      %v2564 = vmul.f32 %v2397, %v2397
      %v2565 = vmul.f32 %v2398, %v2398
      %v2566 = vmul.f32 %v2399, %v2399
      %v2567 = vmul.f32 %v2400, %v2400
      %v2568 = vmul.f32 %v2401, %v2401
      %v2569 = vmul.f32 %v2402, %v2402
      %v2570 = vmul.f32 %v2403, %v2403
      %v2571 = vmul.f32 %v2404, %v2404
      %v2572 = vmul.f32 %v2405, %v2405
      %v2573 = vmul.f32 %v2406, %v2406
      %v2574 = vmul.f32 %v2407, %v2407
      %v2575 = vmul.f32 %v2408, %v2408
      %v2576 = vmul.f32 %v2409, %v2409
      %v2577 = vmul.f32 %v2410, %v2410
      %v2578 = vmul.f32 %v2411, %v2411
      %v2579 = vmul.f32 %v2412, %v2412
      %v2580 = vmul.f32 %v2413, %v2413
      %v2581 = vmul.f32 %v2414, %v2414
      %v2582 = vmul.f32 %v2415, %v2415
      %v2583 = vmul.f32 %v2416, %v2416
      %v2584 = vmul.f32 %v2417, %v2417
      %v2585 = vmul.f32 %v2418, %v2418
      %v2586 = vmul.f32 %v2419, %v2419
      %v2587 = vmul.f32 %v2420, %v2420
      %v2588 = vsel %vm243, %v2556, 0.0
      %v2589 = vsel %vm243, %v2557, 0.0
      %v2590 = vadd.f32 %v2588, %v2589
      %v2591 = vsel %vm243, %v2558, 0.0
      %v2592 = vadd.f32 %v2590, %v2591
      %v2593 = vsel %vm243, %v2559, 0.0
      %v2594 = vadd.f32 %v2592, %v2593
      %v2595 = vsel %vm243, %v2560, 0.0
      %v2596 = vadd.f32 %v2594, %v2595
      %v2597 = vsel %vm243, %v2561, 0.0
      %v2598 = vadd.f32 %v2596, %v2597
      %v2599 = vsel %vm243, %v2562, 0.0
      %v2600 = vadd.f32 %v2598, %v2599
      %v2601 = vsel %vm243, %v2563, 0.0
      %v2602 = vadd.f32 %v2600, %v2601
      %v2603 = vsel %vm243, %v2564, 0.0
      %v2604 = vadd.f32 %v2602, %v2603
      %v2605 = vsel %vm243, %v2565, 0.0
      %v2606 = vadd.f32 %v2604, %v2605
      %v2607 = vsel %vm243, %v2566, 0.0
      %v2608 = vadd.f32 %v2606, %v2607
      %v2609 = vsel %vm243, %v2567, 0.0
      %v2610 = vadd.f32 %v2608, %v2609
      %v2611 = vsel %vm243, %v2568, 0.0
      %v2612 = vadd.f32 %v2610, %v2611
      %v2613 = vsel %vm243, %v2569, 0.0
      %v2614 = vadd.f32 %v2612, %v2613
      %v2615 = vsel %vm243, %v2570, 0.0
      %v2616 = vadd.f32 %v2614, %v2615
      %v2617 = vsel %vm243, %v2571, 0.0
      %v2618 = vadd.f32 %v2616, %v2617
      %v2619 = vsel %vm243, %v2572, 0.0
      %v2620 = vadd.f32 %v2618, %v2619
      %v2621 = vsel %vm243, %v2573, 0.0
      %v2622 = vadd.f32 %v2620, %v2621
      %v2623 = vsel %vm243, %v2574, 0.0
      %v2624 = vadd.f32 %v2622, %v2623
      %v2625 = vsel %vm243, %v2575, 0.0
      %v2626 = vadd.f32 %v2624, %v2625
      %v2627 = vsel %vm243, %v2576, 0.0
      %v2628 = vadd.f32 %v2626, %v2627
      %v2629 = vsel %vm243, %v2577, 0.0
      %v2630 = vadd.f32 %v2628, %v2629
      %v2631 = vsel %vm243, %v2578, 0.0
      %v2632 = vadd.f32 %v2630, %v2631
      %v2633 = vsel %vm243, %v2579, 0.0
      %v2634 = vadd.f32 %v2632, %v2633
      %v2635 = vsel %vm243, %v2580, 0.0
      %v2636 = vadd.f32 %v2634, %v2635
      %v2637 = vsel %vm243, %v2581, 0.0
      %v2638 = vadd.f32 %v2636, %v2637
      %v2639 = vsel %vm243, %v2582, 0.0
      %v2640 = vadd.f32 %v2638, %v2639
      %v2641 = vsel %vm243, %v2583, 0.0
      %v2642 = vadd.f32 %v2640, %v2641
      %v2643 = vsel %vm243, %v2584, 0.0
      %v2644 = vadd.f32 %v2642, %v2643
      %v2645 = vsel %vm243, %v2585, 0.0
      %v2646 = vadd.f32 %v2644, %v2645
      %v2647 = vsel %vm243, %v2586, 0.0
      %v2648 = vadd.f32 %v2646, %v2647
      %v2649 = vsel %vm243, %v2587, 0.0
      %v2650 = vadd.f32 %v2648, %v2649
      %v2651 = vrot.slane %v2650, 4
      %v2652 = vadd.f32 %v2650, %v2651
      %v2653 = vrot.slane %v2652, 2
      %v2654 = vadd.f32 %v2652, %v2653
      %v2655 = vrot.slane %v2654, 1
      %v2656 = vadd.f32 %v2654, %v2655
      %2657 = vst.msk [vmem:[%s241] sm:$0x1] %vm252, %v2656
      %p2658 = scmp.lt.s32.totalorder %s17, 1
      %s2659 = scalar_select %p2658, %s17, 1
      %s2660 = smul.addr %s2659, 32
      %s2661 = smul.addr %s2660, 4
      %s2662 = scalar_lea.vmem %s3, %s2661
      %p2663 = scmp.lt.s32.totalorder %s17, 1
      %s2664 = scalar_select %p2663, %s17, 1
      %s2665 = scalar_lea.vmem %s4, %s2664
      %p2666 = scmp.lt.s32.totalorder %s17, 1
      %s2667 = scalar_select %p2666, %s17, 1
      %s2668 = scalar_lea.vmem %s5, %s2667
      // Predicated region
      $region33: #{downsample_forward.3} parent=31 // pred_check
        %p2669 = pneg %p103
      $region34: #{downsample_forward.3} parent=31 // pred_check_branch
        %2671 = sbr.rel (%p2669) target = $region36
      $region35: #{downsample_forward.3} parent=31 // pred_region
        _
      $region36: #{downsample_forward.3} parent=31 // pred_fallthru
        _
      // Predicated region
      $region37: #{downsample_forward.3} parent=31 // pred_check
        %p2672 = pneg %p129
      $region38: #{downsample_forward.3} parent=31 // pred_check_branch
        %2674 = sbr.rel (%p2672) target = $region40
      $region39: #{downsample_forward.3} parent=31 // pred_region
        _
      $region40: #{downsample_forward.3} parent=31 // pred_fallthru
        _
      // Predicated region
      $region41: #{downsample_forward.3} parent=31 // pred_check
        %p2675 = pneg %p155
      $region42: #{downsample_forward.3} parent=31 // pred_check_branch
        %2677 = sbr.rel (%p2675) target = $region44
      $region43: #{downsample_forward.3} parent=31 // pred_region
        _
      $region44: #{downsample_forward.3} parent=31 // pred_fallthru
        _
    $region32: #{downsample_forward.3} parent=5 // pred_fallthru
      _
    %p2678 = scmp.le.s32.totalorder 2, %s12
    // Predicated region
    $region45: #{downsample_forward.3} parent=5 // pred_check
      %p2679 = pneg %p2678
    $region46: #{downsample_forward.3} parent=5 // pred_check_branch
      %2681 = sbr.rel (%p2679) target = $region48
    $region47: #{downsample_forward.3} parent=5 // pred_region
      %s2682 = ssub.s32 %s12, 2
      // Predicated region
      $region49: #{downsample_forward.3} parent=47 // pred_check
        %p2683 = pneg %p109
      $region50: #{downsample_forward.3} parent=47 // pred_check_branch
        %2685 = sbr.rel (%p2683) target = $region52
      $region51: #{downsample_forward.3} parent=47 // pred_region
        %p2686 = scmp.lt.s32.totalorder %s18, 1
        %s2687 = scalar_select %p2686, %s18, 1
        %s2688 = smul.addr %s2687, 32
        %s2689 = smul.addr %s2688, 4
        %s2690 = scalar_lea.vmem %s3, %s2689
      $region52: #{downsample_forward.3} parent=47 // pred_fallthru
        _
      // Predicated region
      $region53: #{downsample_forward.3} parent=47 // pred_check
        %p2691 = pneg %p135
      $region54: #{downsample_forward.3} parent=47 // pred_check_branch
        %2693 = sbr.rel (%p2691) target = $region56
      $region55: #{downsample_forward.3} parent=47 // pred_region
        %p2694 = scmp.lt.s32.totalorder %s18, 1
        %s2695 = scalar_select %p2694, %s18, 1
        %s2696 = scalar_lea.vmem %s4, %s2695
      $region56: #{downsample_forward.3} parent=47 // pred_fallthru
        _
      // Predicated region
      $region57: #{downsample_forward.3} parent=47 // pred_check
        %p2697 = pneg %p161
      $region58: #{downsample_forward.3} parent=47 // pred_check_branch
        %2699 = sbr.rel (%p2697) target = $region60
      $region59: #{downsample_forward.3} parent=47 // pred_region
        %p2700 = scmp.lt.s32.totalorder %s18, 1
        %s2701 = scalar_select %p2700, %s18, 1
        %s2702 = scalar_lea.vmem %s5, %s2701
      $region60: #{downsample_forward.3} parent=47 // pred_fallthru
        _
    $region48: #{downsample_forward.3} parent=5 // pred_fallthru
      _
  $region6: #{downsample_forward.3} parent=0 // loop_footer
    %s16 = sadd.s32 1, %s12
  $region7: #{downsample_forward.3} parent=0 // loop_footer_branch
    %11 = sbr.rel target = $region3
  $region8: #{downsample_forward.3} parent=0 // loop_exit
    _

</llo_original>
